<compile_context>
chip_gen: v5e
topology: v5e:2x2
jax: 0.10.0
libtpu: 0.0.40
codegen_flags: <defaults>
</compile_context>

<pallas_src>
import functools

import jax
import jax.numpy as jnp
from jax.experimental import pallas as pl
from jax.experimental.pallas import tpu as pltpu


def _convt_sigmoid_kernel(w_ref, b_ref, x_ref, o_ref, *, H, W, Cin, Cout):
    """w_ref: (Cin*Cout*9,) f32 SMEM -- PyTorch ConvTranspose2d weight, flattened
                                        row-major from (Cin, Cout, 3, 3).
       b_ref: (Cout,)       f32 SMEM
       x_ref: (Cin, H*W)    f32 VMEM -- one image, channel-major, spatial flattened
       o_ref: (Cout, H*W)   f32 VMEM
    """
    HW = H * W
    x = x_ref[...]                                               # (Cin, HW)

    # Flat spatial index p = i*W + j and its column j (for padding=1 boundary masks).
    p = jax.lax.broadcasted_iota(jnp.int32, (1, HW), 1)
    if W & (W - 1) == 0:
        col = jnp.bitwise_and(p, W - 1)                          # j = p % W (W power of 2)
    else:
        col = p % W

    # One lane-dense (1, HW) accumulator per output channel, seeded with the bias.
    acc = [jnp.full((1, HW), b_ref[co], dtype=jnp.float32) for co in range(Cout)]

    # ConvTranspose2d(stride=1, padding=1):
    #   out[co,i,j] = b[co] + sum_{ci,dy,dx} x[ci, i+dy, j+dx] * W_pt[ci, co, 1-dy, 1-dx]
    # with x treated as zero outside the image.
    for dy in (-1, 0, 1):
        for dx in (-1, 0, 1):
            shift = dy * W + dx
            if shift == 0:
                t = x
            else:
                # t[p] = x_flat[p + shift] ; wrap-around positions are masked below.
                t = pltpu.roll(x, shift=(-shift) % HW, axis=1)
            conds = []
            if dy == -1:
                conds.append(p >= W)                  # source row i-1 >= 0
            elif dy == 1:
                conds.append(p < (H - 1) * W)         # source row i+1 <= H-1
            if dx == -1:
                conds.append(col >= 1)                # source col j-1 >= 0
            elif dx == 1:
                conds.append(col <= W - 2)            # source col j+1 <= W-1
            if conds:
                m = conds[0]
                for c in conds[1:]:
                    m = jnp.logical_and(m, c)
                t = jnp.where(m, t, 0.0)

            kh, kw = 1 - dy, 1 - dx
            for ci in range(Cin):
                t_ci = t[ci:ci + 1]                   # (1, HW) lane-dense plane
                for co in range(Cout):
                    widx = ((ci * Cout + co) * 3 + kh) * 3 + kw
                    acc[co] = acc[co] + w_ref[widx] * t_ci

    out = jnp.concatenate(acc, axis=0)                # (Cout, HW), lane-dense store
    o_ref[...] = jax.nn.sigmoid(out)


@jax.jit
def conv_transpose_sigmoid(x_nchw, w_pt, b_pt):
    """x_nchw: (N, Cin, H, W); w_pt: (Cin, Cout, 3, 3) (PyTorch ConvTranspose2d layout);
    b_pt: (Cout,). Returns sigmoid(conv_transpose2d(x_nchw)) as (N, Cout, H, W)."""
    N, Cin, H, W = x_nchw.shape
    Cout = w_pt.shape[1]
    HW = H * W

    # Free, layout-preserving reshapes (no transpose, no pad, no extra HBM pass).
    x_flat = x_nchw.reshape(N, Cin, HW).astype(jnp.float32)
    w_flat = w_pt.reshape(-1).astype(jnp.float32)      # (Cin*Cout*9,) scalars -> SMEM
    b_flat = b_pt.astype(jnp.float32)                  # (Cout,)               -> SMEM

    kernel = functools.partial(_convt_sigmoid_kernel, H=H, W=W, Cin=Cin, Cout=Cout)

    out = pl.pallas_call(
        kernel,
        out_shape=jax.ShapeDtypeStruct((N, Cout, HW), jnp.float32),
        grid=(N,),
        in_specs=[
            pl.BlockSpec(memory_space=pltpu.MemorySpace.SMEM),    # weights (scalars)
            pl.BlockSpec(memory_space=pltpu.MemorySpace.SMEM),    # bias (scalars)
            pl.BlockSpec((None, Cin, HW), lambda n: (n, 0, 0)),   # one image per step
        ],
        out_specs=pl.BlockSpec((None, Cout, HW), lambda n: (n, 0, 0)),
        compiler_params=pltpu.CompilerParams(dimension_semantics=("parallel",)),
    )(w_flat, b_flat, x_flat)

    return out.reshape(N, Cout, H, W)


def _reference(x_nchw, w_pt, b_pt):
    # Pure-JAX reference: conv with flipped kernel & swapped channel axes.
    w_oihw = jnp.transpose(jnp.flip(w_pt, axis=(2, 3)), (1, 0, 2, 3))
    y = jax.lax.conv_general_dilated(
        x_nchw, w_oihw, window_strides=(1, 1), padding=((1, 1), (1, 1)),
        dimension_numbers=("NCHW", "OIHW", "NCHW"))
    y = y + b_pt.reshape(1, -1, 1, 1)
    return jax.nn.sigmoid(y)


if __name__ == "__main__":
    key = jax.random.PRNGKey(0)
    kx, kw, kb = jax.random.split(key, 3)

    # Shapes from the module spec: x1 = (1, 3, 32, 32), ConvTranspose2d(3, 3, 3).
    N, Cin, H, W = 1, 3, 32, 32
    Cout, K = 3, 3

    x1 = jax.random.normal(kx, (N, Cin, H, W), dtype=jnp.float32)
    # Deterministic parameter init (PyTorch-like uniform range, fixed seed).
    fan = Cin * K * K
    bound = 1.0 / (fan ** 0.5)
    w_pt = jax.random.uniform(kw, (Cin, Cout, K, K), minval=-bound, maxval=bound,
                              dtype=jnp.float32)
    b_pt = jax.random.uniform(kb, (Cout,), minval=-bound, maxval=bound,
                              dtype=jnp.float32)

    out = conv_transpose_sigmoid(x1, w_pt, b_pt)
    out = jax.block_until_ready(out)

    ref = _reference(x1, w_pt, b_pt)
    assert out.shape == (N, Cout, H, W)
    assert jnp.allclose(out, ref, atol=1e-5, rtol=1e-5)

    print("KERNEL_OK")
</pallas_src>

<mosaic_0001>
module attributes {stable_mosaic.version = 11 : i64} {
  func.func @_convt_sigmoid_kernel(%arg0: i32, %arg1: memref<81xf32, #tpu.memory_space<smem>>, %arg2: memref<3xf32, #tpu.memory_space<smem>>, %arg3: memref<1x3x1024xf32, #tpu.memory_space<vmem>>, %arg4: memref<1x3x1024xf32, #tpu.memory_space<vmem>>) attributes {dimension_semantics = [#tpu.dimension_semantics<parallel>], iteration_bounds = array<i64: 1>, scalar_prefetch = 0 : i64, scratch_operands = 0 : i64, tpu.core_type = #tpu.core_type<tc>, window_params = [{transform_indices = @transform_0, window_bounds = array<i64: 81>}, {transform_indices = @transform_1, window_bounds = array<i64: 3>}, {transform_indices = @transform_2, window_bounds = array<i64: 1, 3, 1024>}, {transform_indices = @transform_3, window_bounds = array<i64: 1, 3, 1024>}]} {
    %c0 = arith.constant 0 : index
    %c0_0 = arith.constant 0 : index
    %c0_1 = arith.constant 0 : index
    %0 = vector.load %arg3[%c0, %c0_0, %c0_1] : memref<1x3x1024xf32, #tpu.memory_space<vmem>>, vector<1x3x1024xf32>
    %1 = vector.shape_cast %0 : vector<1x3x1024xf32> to vector<3x1024xf32>
    %2 = tpu.iota {dimensions = array<i32: 1>} : vector<1x1024xi32>
    %c31_i32 = arith.constant 31 : i32
    %3 = vector.broadcast %c31_i32 : i32 to vector<1x1024xi32>
    %4 = arith.andi %2, %3 : vector<1x1024xi32>
    %c0_2 = arith.constant 0 : index
    %5 = memref.load %arg2[%c0_2] : memref<3xf32, #tpu.memory_space<smem>>
    %6 = vector.broadcast %5 : f32 to vector<1x1024xf32>
    %c1 = arith.constant 1 : index
    %7 = memref.load %arg2[%c1] : memref<3xf32, #tpu.memory_space<smem>>
    %8 = vector.broadcast %7 : f32 to vector<1x1024xf32>
    %c2 = arith.constant 2 : index
    %9 = memref.load %arg2[%c2] : memref<3xf32, #tpu.memory_space<smem>>
    %10 = vector.broadcast %9 : f32 to vector<1x1024xf32>
    %c33_i32 = arith.constant 33 : i32
    %11 = tpu.dynamic_rotate %1 by %c33_i32 dim 1 : vector<3x1024xf32>, i32 -> vector<3x1024xf32>
    %c32_i32 = arith.constant 32 : i32
    %12 = vector.broadcast %c32_i32 : i32 to vector<1x1024xi32>
    %13 = arith.cmpi sge, %2, %12 : vector<1x1024xi32>
    %c1_i32 = arith.constant 1 : i32
    %14 = vector.broadcast %c1_i32 : i32 to vector<1x1024xi32>
    %15 = arith.cmpi sge, %4, %14 : vector<1x1024xi32>
    %16 = arith.andi %13, %15 : vector<1x1024xi1>
    %cst = arith.constant 0.000000e+00 : f32
    %17 = vector.shape_cast %16 : vector<1x1024xi1> to vector<1x1024xi1>
    %18 = vector.broadcast %17 : vector<1x1024xi1> to vector<3x1024xi1>
    %19 = vector.broadcast %cst : f32 to vector<3x1024xf32>
    %20 = arith.select %18, %11, %19 : vector<3x1024xi1>, vector<3x1024xf32>
    %21 = vector.extract_strided_slice %20 {offsets = [0, 0], sizes = [1, 1024], strides = [1, 1]} : vector<3x1024xf32> to vector<1x1024xf32>
    %c8 = arith.constant 8 : index
    %22 = memref.load %arg1[%c8] : memref<81xf32, #tpu.memory_space<smem>>
    %23 = vector.broadcast %22 : f32 to vector<1x1024xf32>
    %24 = arith.mulf %23, %21 : vector<1x1024xf32>
    %25 = arith.addf %6, %24 : vector<1x1024xf32>
    %c17 = arith.constant 17 : index
    %26 = memref.load %arg1[%c17] : memref<81xf32, #tpu.memory_space<smem>>
    %27 = vector.broadcast %26 : f32 to vector<1x1024xf32>
    %28 = arith.mulf %27, %21 : vector<1x1024xf32>
    %29 = arith.addf %8, %28 : vector<1x1024xf32>
    %c26 = arith.constant 26 : index
    %30 = memref.load %arg1[%c26] : memref<81xf32, #tpu.memory_space<smem>>
    %31 = vector.broadcast %30 : f32 to vector<1x1024xf32>
    %32 = arith.mulf %31, %21 : vector<1x1024xf32>
    %33 = arith.addf %10, %32 : vector<1x1024xf32>
    %34 = vector.extract_strided_slice %20 {offsets = [1, 0], sizes = [1, 1024], strides = [1, 1]} : vector<3x1024xf32> to vector<1x1024xf32>
    %c35 = arith.constant 35 : index
    %35 = memref.load %arg1[%c35] : memref<81xf32, #tpu.memory_space<smem>>
    %36 = vector.broadcast %35 : f32 to vector<1x1024xf32>
    %37 = arith.mulf %36, %34 : vector<1x1024xf32>
    %38 = arith.addf %25, %37 : vector<1x1024xf32>
    %c44 = arith.constant 44 : index
    %39 = memref.load %arg1[%c44] : memref<81xf32, #tpu.memory_space<smem>>
    %40 = vector.broadcast %39 : f32 to vector<1x1024xf32>
    %41 = arith.mulf %40, %34 : vector<1x1024xf32>
    %42 = arith.addf %29, %41 : vector<1x1024xf32>
    %c53 = arith.constant 53 : index
    %43 = memref.load %arg1[%c53] : memref<81xf32, #tpu.memory_space<smem>>
    %44 = vector.broadcast %43 : f32 to vector<1x1024xf32>
    %45 = arith.mulf %44, %34 : vector<1x1024xf32>
    %46 = arith.addf %33, %45 : vector<1x1024xf32>
    %47 = vector.extract_strided_slice %20 {offsets = [2, 0], sizes = [1, 1024], strides = [1, 1]} : vector<3x1024xf32> to vector<1x1024xf32>
    %c62 = arith.constant 62 : index
    %48 = memref.load %arg1[%c62] : memref<81xf32, #tpu.memory_space<smem>>
    %49 = vector.broadcast %48 : f32 to vector<1x1024xf32>
    %50 = arith.mulf %49, %47 : vector<1x1024xf32>
    %51 = arith.addf %38, %50 : vector<1x1024xf32>
    %c71 = arith.constant 71 : index
    %52 = memref.load %arg1[%c71] : memref<81xf32, #tpu.memory_space<smem>>
    %53 = vector.broadcast %52 : f32 to vector<1x1024xf32>
    %54 = arith.mulf %53, %47 : vector<1x1024xf32>
    %55 = arith.addf %42, %54 : vector<1x1024xf32>
    %c80 = arith.constant 80 : index
    %56 = memref.load %arg1[%c80] : memref<81xf32, #tpu.memory_space<smem>>
    %57 = vector.broadcast %56 : f32 to vector<1x1024xf32>
    %58 = arith.mulf %57, %47 : vector<1x1024xf32>
    %59 = arith.addf %46, %58 : vector<1x1024xf32>
    %c32_i32_3 = arith.constant 32 : i32
    %60 = tpu.dynamic_rotate %1 by %c32_i32_3 dim 1 : vector<3x1024xf32>, i32 -> vector<3x1024xf32>
    %c32_i32_4 = arith.constant 32 : i32
    %61 = vector.broadcast %c32_i32_4 : i32 to vector<1x1024xi32>
    %62 = arith.cmpi sge, %2, %61 : vector<1x1024xi32>
    %cst_5 = arith.constant 0.000000e+00 : f32
    %63 = vector.shape_cast %62 : vector<1x1024xi1> to vector<1x1024xi1>
    %64 = vector.broadcast %63 : vector<1x1024xi1> to vector<3x1024xi1>
    %65 = vector.broadcast %cst_5 : f32 to vector<3x1024xf32>
    %66 = arith.select %64, %60, %65 : vector<3x1024xi1>, vector<3x1024xf32>
    %67 = vector.extract_strided_slice %66 {offsets = [0, 0], sizes = [1, 1024], strides = [1, 1]} : vector<3x1024xf32> to vector<1x1024xf32>
    %c7 = arith.constant 7 : index
    %68 = memref.load %arg1[%c7] : memref<81xf32, #tpu.memory_space<smem>>
    %69 = vector.broadcast %68 : f32 to vector<1x1024xf32>
    %70 = arith.mulf %69, %67 : vector<1x1024xf32>
    %71 = arith.addf %51, %70 : vector<1x1024xf32>
    %c16 = arith.constant 16 : index
    %72 = memref.load %arg1[%c16] : memref<81xf32, #tpu.memory_space<smem>>
    %73 = vector.broadcast %72 : f32 to vector<1x1024xf32>
    %74 = arith.mulf %73, %67 : vector<1x1024xf32>
    %75 = arith.addf %55, %74 : vector<1x1024xf32>
    %c25 = arith.constant 25 : index
    %76 = memref.load %arg1[%c25] : memref<81xf32, #tpu.memory_space<smem>>
    %77 = vector.broadcast %76 : f32 to vector<1x1024xf32>
    %78 = arith.mulf %77, %67 : vector<1x1024xf32>
    %79 = arith.addf %59, %78 : vector<1x1024xf32>
    %80 = vector.extract_strided_slice %66 {offsets = [1, 0], sizes = [1, 1024], strides = [1, 1]} : vector<3x1024xf32> to vector<1x1024xf32>
    %c34 = arith.constant 34 : index
    %81 = memref.load %arg1[%c34] : memref<81xf32, #tpu.memory_space<smem>>
    %82 = vector.broadcast %81 : f32 to vector<1x1024xf32>
    %83 = arith.mulf %82, %80 : vector<1x1024xf32>
    %84 = arith.addf %71, %83 : vector<1x1024xf32>
    %c43 = arith.constant 43 : index
    %85 = memref.load %arg1[%c43] : memref<81xf32, #tpu.memory_space<smem>>
    %86 = vector.broadcast %85 : f32 to vector<1x1024xf32>
    %87 = arith.mulf %86, %80 : vector<1x1024xf32>
    %88 = arith.addf %75, %87 : vector<1x1024xf32>
    %c52 = arith.constant 52 : index
    %89 = memref.load %arg1[%c52] : memref<81xf32, #tpu.memory_space<smem>>
    %90 = vector.broadcast %89 : f32 to vector<1x1024xf32>
    %91 = arith.mulf %90, %80 : vector<1x1024xf32>
    %92 = arith.addf %79, %91 : vector<1x1024xf32>
    %93 = vector.extract_strided_slice %66 {offsets = [2, 0], sizes = [1, 1024], strides = [1, 1]} : vector<3x1024xf32> to vector<1x1024xf32>
    %c61 = arith.constant 61 : index
    %94 = memref.load %arg1[%c61] : memref<81xf32, #tpu.memory_space<smem>>
    %95 = vector.broadcast %94 : f32 to vector<1x1024xf32>
    %96 = arith.mulf %95, %93 : vector<1x1024xf32>
    %97 = arith.addf %84, %96 : vector<1x1024xf32>
    %c70 = arith.constant 70 : index
    %98 = memref.load %arg1[%c70] : memref<81xf32, #tpu.memory_space<smem>>
    %99 = vector.broadcast %98 : f32 to vector<1x1024xf32>
    %100 = arith.mulf %99, %93 : vector<1x1024xf32>
    %101 = arith.addf %88, %100 : vector<1x1024xf32>
    %c79 = arith.constant 79 : index
    %102 = memref.load %arg1[%c79] : memref<81xf32, #tpu.memory_space<smem>>
    %103 = vector.broadcast %102 : f32 to vector<1x1024xf32>
    %104 = arith.mulf %103, %93 : vector<1x1024xf32>
    %105 = arith.addf %92, %104 : vector<1x1024xf32>
    %c31_i32_6 = arith.constant 31 : i32
    %106 = tpu.dynamic_rotate %1 by %c31_i32_6 dim 1 : vector<3x1024xf32>, i32 -> vector<3x1024xf32>
    %c32_i32_7 = arith.constant 32 : i32
    %107 = vector.broadcast %c32_i32_7 : i32 to vector<1x1024xi32>
    %108 = arith.cmpi sge, %2, %107 : vector<1x1024xi32>
    %c30_i32 = arith.constant 30 : i32
    %109 = vector.broadcast %c30_i32 : i32 to vector<1x1024xi32>
    %110 = arith.cmpi sle, %4, %109 : vector<1x1024xi32>
    %111 = arith.andi %108, %110 : vector<1x1024xi1>
    %cst_8 = arith.constant 0.000000e+00 : f32
    %112 = vector.shape_cast %111 : vector<1x1024xi1> to vector<1x1024xi1>
    %113 = vector.broadcast %112 : vector<1x1024xi1> to vector<3x1024xi1>
    %114 = vector.broadcast %cst_8 : f32 to vector<3x1024xf32>
    %115 = arith.select %113, %106, %114 : vector<3x1024xi1>, vector<3x1024xf32>
    %116 = vector.extract_strided_slice %115 {offsets = [0, 0], sizes = [1, 1024], strides = [1, 1]} : vector<3x1024xf32> to vector<1x1024xf32>
    %c6 = arith.constant 6 : index
    %117 = memref.load %arg1[%c6] : memref<81xf32, #tpu.memory_space<smem>>
    %118 = vector.broadcast %117 : f32 to vector<1x1024xf32>
    %119 = arith.mulf %118, %116 : vector<1x1024xf32>
    %120 = arith.addf %97, %119 : vector<1x1024xf32>
    %c15 = arith.constant 15 : index
    %121 = memref.load %arg1[%c15] : memref<81xf32, #tpu.memory_space<smem>>
    %122 = vector.broadcast %121 : f32 to vector<1x1024xf32>
    %123 = arith.mulf %122, %116 : vector<1x1024xf32>
    %124 = arith.addf %101, %123 : vector<1x1024xf32>
    %c24 = arith.constant 24 : index
    %125 = memref.load %arg1[%c24] : memref<81xf32, #tpu.memory_space<smem>>
    %126 = vector.broadcast %125 : f32 to vector<1x1024xf32>
    %127 = arith.mulf %126, %116 : vector<1x1024xf32>
    %128 = arith.addf %105, %127 : vector<1x1024xf32>
    %129 = vector.extract_strided_slice %115 {offsets = [1, 0], sizes = [1, 1024], strides = [1, 1]} : vector<3x1024xf32> to vector<1x1024xf32>
    %c33 = arith.constant 33 : index
    %130 = memref.load %arg1[%c33] : memref<81xf32, #tpu.memory_space<smem>>
    %131 = vector.broadcast %130 : f32 to vector<1x1024xf32>
    %132 = arith.mulf %131, %129 : vector<1x1024xf32>
    %133 = arith.addf %120, %132 : vector<1x1024xf32>
    %c42 = arith.constant 42 : index
    %134 = memref.load %arg1[%c42] : memref<81xf32, #tpu.memory_space<smem>>
    %135 = vector.broadcast %134 : f32 to vector<1x1024xf32>
    %136 = arith.mulf %135, %129 : vector<1x1024xf32>
    %137 = arith.addf %124, %136 : vector<1x1024xf32>
    %c51 = arith.constant 51 : index
    %138 = memref.load %arg1[%c51] : memref<81xf32, #tpu.memory_space<smem>>
    %139 = vector.broadcast %138 : f32 to vector<1x1024xf32>
    %140 = arith.mulf %139, %129 : vector<1x1024xf32>
    %141 = arith.addf %128, %140 : vector<1x1024xf32>
    %142 = vector.extract_strided_slice %115 {offsets = [2, 0], sizes = [1, 1024], strides = [1, 1]} : vector<3x1024xf32> to vector<1x1024xf32>
    %c60 = arith.constant 60 : index
    %143 = memref.load %arg1[%c60] : memref<81xf32, #tpu.memory_space<smem>>
    %144 = vector.broadcast %143 : f32 to vector<1x1024xf32>
    %145 = arith.mulf %144, %142 : vector<1x1024xf32>
    %146 = arith.addf %133, %145 : vector<1x1024xf32>
    %c69 = arith.constant 69 : index
    %147 = memref.load %arg1[%c69] : memref<81xf32, #tpu.memory_space<smem>>
    %148 = vector.broadcast %147 : f32 to vector<1x1024xf32>
    %149 = arith.mulf %148, %142 : vector<1x1024xf32>
    %150 = arith.addf %137, %149 : vector<1x1024xf32>
    %c78 = arith.constant 78 : index
    %151 = memref.load %arg1[%c78] : memref<81xf32, #tpu.memory_space<smem>>
    %152 = vector.broadcast %151 : f32 to vector<1x1024xf32>
    %153 = arith.mulf %152, %142 : vector<1x1024xf32>
    %154 = arith.addf %141, %153 : vector<1x1024xf32>
    %c1_i32_9 = arith.constant 1 : i32
    %155 = tpu.dynamic_rotate %1 by %c1_i32_9 dim 1 : vector<3x1024xf32>, i32 -> vector<3x1024xf32>
    %c1_i32_10 = arith.constant 1 : i32
    %156 = vector.broadcast %c1_i32_10 : i32 to vector<1x1024xi32>
    %157 = arith.cmpi sge, %4, %156 : vector<1x1024xi32>
    %cst_11 = arith.constant 0.000000e+00 : f32
    %158 = vector.shape_cast %157 : vector<1x1024xi1> to vector<1x1024xi1>
    %159 = vector.broadcast %158 : vector<1x1024xi1> to vector<3x1024xi1>
    %160 = vector.broadcast %cst_11 : f32 to vector<3x1024xf32>
    %161 = arith.select %159, %155, %160 : vector<3x1024xi1>, vector<3x1024xf32>
    %162 = vector.extract_strided_slice %161 {offsets = [0, 0], sizes = [1, 1024], strides = [1, 1]} : vector<3x1024xf32> to vector<1x1024xf32>
    %c5 = arith.constant 5 : index
    %163 = memref.load %arg1[%c5] : memref<81xf32, #tpu.memory_space<smem>>
    %164 = vector.broadcast %163 : f32 to vector<1x1024xf32>
    %165 = arith.mulf %164, %162 : vector<1x1024xf32>
    %166 = arith.addf %146, %165 : vector<1x1024xf32>
    %c14 = arith.constant 14 : index
    %167 = memref.load %arg1[%c14] : memref<81xf32, #tpu.memory_space<smem>>
    %168 = vector.broadcast %167 : f32 to vector<1x1024xf32>
    %169 = arith.mulf %168, %162 : vector<1x1024xf32>
    %170 = arith.addf %150, %169 : vector<1x1024xf32>
    %c23 = arith.constant 23 : index
    %171 = memref.load %arg1[%c23] : memref<81xf32, #tpu.memory_space<smem>>
    %172 = vector.broadcast %171 : f32 to vector<1x1024xf32>
    %173 = arith.mulf %172, %162 : vector<1x1024xf32>
    %174 = arith.addf %154, %173 : vector<1x1024xf32>
    %175 = vector.extract_strided_slice %161 {offsets = [1, 0], sizes = [1, 1024], strides = [1, 1]} : vector<3x1024xf32> to vector<1x1024xf32>
    %c32 = arith.constant 32 : index
    %176 = memref.load %arg1[%c32] : memref<81xf32, #tpu.memory_space<smem>>
    %177 = vector.broadcast %176 : f32 to vector<1x1024xf32>
    %178 = arith.mulf %177, %175 : vector<1x1024xf32>
    %179 = arith.addf %166, %178 : vector<1x1024xf32>
    %c41 = arith.constant 41 : index
    %180 = memref.load %arg1[%c41] : memref<81xf32, #tpu.memory_space<smem>>
    %181 = vector.broadcast %180 : f32 to vector<1x1024xf32>
    %182 = arith.mulf %181, %175 : vector<1x1024xf32>
    %183 = arith.addf %170, %182 : vector<1x1024xf32>
    %c50 = arith.constant 50 : index
    %184 = memref.load %arg1[%c50] : memref<81xf32, #tpu.memory_space<smem>>
    %185 = vector.broadcast %184 : f32 to vector<1x1024xf32>
    %186 = arith.mulf %185, %175 : vector<1x1024xf32>
    %187 = arith.addf %174, %186 : vector<1x1024xf32>
    %188 = vector.extract_strided_slice %161 {offsets = [2, 0], sizes = [1, 1024], strides = [1, 1]} : vector<3x1024xf32> to vector<1x1024xf32>
    %c59 = arith.constant 59 : index
    %189 = memref.load %arg1[%c59] : memref<81xf32, #tpu.memory_space<smem>>
    %190 = vector.broadcast %189 : f32 to vector<1x1024xf32>
    %191 = arith.mulf %190, %188 : vector<1x1024xf32>
    %192 = arith.addf %179, %191 : vector<1x1024xf32>
    %c68 = arith.constant 68 : index
    %193 = memref.load %arg1[%c68] : memref<81xf32, #tpu.memory_space<smem>>
    %194 = vector.broadcast %193 : f32 to vector<1x1024xf32>
    %195 = arith.mulf %194, %188 : vector<1x1024xf32>
    %196 = arith.addf %183, %195 : vector<1x1024xf32>
    %c77 = arith.constant 77 : index
    %197 = memref.load %arg1[%c77] : memref<81xf32, #tpu.memory_space<smem>>
    %198 = vector.broadcast %197 : f32 to vector<1x1024xf32>
    %199 = arith.mulf %198, %188 : vector<1x1024xf32>
    %200 = arith.addf %187, %199 : vector<1x1024xf32>
    %201 = vector.extract_strided_slice %1 {offsets = [0, 0], sizes = [1, 1024], strides = [1, 1]} : vector<3x1024xf32> to vector<1x1024xf32>
    %c4 = arith.constant 4 : index
    %202 = memref.load %arg1[%c4] : memref<81xf32, #tpu.memory_space<smem>>
    %203 = vector.broadcast %202 : f32 to vector<1x1024xf32>
    %204 = arith.mulf %203, %201 : vector<1x1024xf32>
    %205 = arith.addf %192, %204 : vector<1x1024xf32>
    %c13 = arith.constant 13 : index
    %206 = memref.load %arg1[%c13] : memref<81xf32, #tpu.memory_space<smem>>
    %207 = vector.broadcast %206 : f32 to vector<1x1024xf32>
    %208 = arith.mulf %207, %201 : vector<1x1024xf32>
    %209 = arith.addf %196, %208 : vector<1x1024xf32>
    %c22 = arith.constant 22 : index
    %210 = memref.load %arg1[%c22] : memref<81xf32, #tpu.memory_space<smem>>
    %211 = vector.broadcast %210 : f32 to vector<1x1024xf32>
    %212 = arith.mulf %211, %201 : vector<1x1024xf32>
    %213 = arith.addf %200, %212 : vector<1x1024xf32>
    %214 = vector.extract_strided_slice %1 {offsets = [1, 0], sizes = [1, 1024], strides = [1, 1]} : vector<3x1024xf32> to vector<1x1024xf32>
    %c31 = arith.constant 31 : index
    %215 = memref.load %arg1[%c31] : memref<81xf32, #tpu.memory_space<smem>>
    %216 = vector.broadcast %215 : f32 to vector<1x1024xf32>
    %217 = arith.mulf %216, %214 : vector<1x1024xf32>
    %218 = arith.addf %205, %217 : vector<1x1024xf32>
    %c40 = arith.constant 40 : index
    %219 = memref.load %arg1[%c40] : memref<81xf32, #tpu.memory_space<smem>>
    %220 = vector.broadcast %219 : f32 to vector<1x1024xf32>
    %221 = arith.mulf %220, %214 : vector<1x1024xf32>
    %222 = arith.addf %209, %221 : vector<1x1024xf32>
    %c49 = arith.constant 49 : index
    %223 = memref.load %arg1[%c49] : memref<81xf32, #tpu.memory_space<smem>>
    %224 = vector.broadcast %223 : f32 to vector<1x1024xf32>
    %225 = arith.mulf %224, %214 : vector<1x1024xf32>
    %226 = arith.addf %213, %225 : vector<1x1024xf32>
    %227 = vector.extract_strided_slice %1 {offsets = [2, 0], sizes = [1, 1024], strides = [1, 1]} : vector<3x1024xf32> to vector<1x1024xf32>
    %c58 = arith.constant 58 : index
    %228 = memref.load %arg1[%c58] : memref<81xf32, #tpu.memory_space<smem>>
    %229 = vector.broadcast %228 : f32 to vector<1x1024xf32>
    %230 = arith.mulf %229, %227 : vector<1x1024xf32>
    %231 = arith.addf %218, %230 : vector<1x1024xf32>
    %c67 = arith.constant 67 : index
    %232 = memref.load %arg1[%c67] : memref<81xf32, #tpu.memory_space<smem>>
    %233 = vector.broadcast %232 : f32 to vector<1x1024xf32>
    %234 = arith.mulf %233, %227 : vector<1x1024xf32>
    %235 = arith.addf %222, %234 : vector<1x1024xf32>
    %c76 = arith.constant 76 : index
    %236 = memref.load %arg1[%c76] : memref<81xf32, #tpu.memory_space<smem>>
    %237 = vector.broadcast %236 : f32 to vector<1x1024xf32>
    %238 = arith.mulf %237, %227 : vector<1x1024xf32>
    %239 = arith.addf %226, %238 : vector<1x1024xf32>
    %c1023_i32 = arith.constant 1023 : i32
    %240 = tpu.dynamic_rotate %1 by %c1023_i32 dim 1 : vector<3x1024xf32>, i32 -> vector<3x1024xf32>
    %c30_i32_12 = arith.constant 30 : i32
    %241 = vector.broadcast %c30_i32_12 : i32 to vector<1x1024xi32>
    %242 = arith.cmpi sle, %4, %241 : vector<1x1024xi32>
    %cst_13 = arith.constant 0.000000e+00 : f32
    %243 = vector.shape_cast %242 : vector<1x1024xi1> to vector<1x1024xi1>
    %244 = vector.broadcast %243 : vector<1x1024xi1> to vector<3x1024xi1>
    %245 = vector.broadcast %cst_13 : f32 to vector<3x1024xf32>
    %246 = arith.select %244, %240, %245 : vector<3x1024xi1>, vector<3x1024xf32>
    %247 = vector.extract_strided_slice %246 {offsets = [0, 0], sizes = [1, 1024], strides = [1, 1]} : vector<3x1024xf32> to vector<1x1024xf32>
    %c3 = arith.constant 3 : index
    %248 = memref.load %arg1[%c3] : memref<81xf32, #tpu.memory_space<smem>>
    %249 = vector.broadcast %248 : f32 to vector<1x1024xf32>
    %250 = arith.mulf %249, %247 : vector<1x1024xf32>
    %251 = arith.addf %231, %250 : vector<1x1024xf32>
    %c12 = arith.constant 12 : index
    %252 = memref.load %arg1[%c12] : memref<81xf32, #tpu.memory_space<smem>>
    %253 = vector.broadcast %252 : f32 to vector<1x1024xf32>
    %254 = arith.mulf %253, %247 : vector<1x1024xf32>
    %255 = arith.addf %235, %254 : vector<1x1024xf32>
    %c21 = arith.constant 21 : index
    %256 = memref.load %arg1[%c21] : memref<81xf32, #tpu.memory_space<smem>>
    %257 = vector.broadcast %256 : f32 to vector<1x1024xf32>
    %258 = arith.mulf %257, %247 : vector<1x1024xf32>
    %259 = arith.addf %239, %258 : vector<1x1024xf32>
    %260 = vector.extract_strided_slice %246 {offsets = [1, 0], sizes = [1, 1024], strides = [1, 1]} : vector<3x1024xf32> to vector<1x1024xf32>
    %c30 = arith.constant 30 : index
    %261 = memref.load %arg1[%c30] : memref<81xf32, #tpu.memory_space<smem>>
    %262 = vector.broadcast %261 : f32 to vector<1x1024xf32>
    %263 = arith.mulf %262, %260 : vector<1x1024xf32>
    %264 = arith.addf %251, %263 : vector<1x1024xf32>
    %c39 = arith.constant 39 : index
    %265 = memref.load %arg1[%c39] : memref<81xf32, #tpu.memory_space<smem>>
    %266 = vector.broadcast %265 : f32 to vector<1x1024xf32>
    %267 = arith.mulf %266, %260 : vector<1x1024xf32>
    %268 = arith.addf %255, %267 : vector<1x1024xf32>
    %c48 = arith.constant 48 : index
    %269 = memref.load %arg1[%c48] : memref<81xf32, #tpu.memory_space<smem>>
    %270 = vector.broadcast %269 : f32 to vector<1x1024xf32>
    %271 = arith.mulf %270, %260 : vector<1x1024xf32>
    %272 = arith.addf %259, %271 : vector<1x1024xf32>
    %273 = vector.extract_strided_slice %246 {offsets = [2, 0], sizes = [1, 1024], strides = [1, 1]} : vector<3x1024xf32> to vector<1x1024xf32>
    %c57 = arith.constant 57 : index
    %274 = memref.load %arg1[%c57] : memref<81xf32, #tpu.memory_space<smem>>
    %275 = vector.broadcast %274 : f32 to vector<1x1024xf32>
    %276 = arith.mulf %275, %273 : vector<1x1024xf32>
    %277 = arith.addf %264, %276 : vector<1x1024xf32>
    %c66 = arith.constant 66 : index
    %278 = memref.load %arg1[%c66] : memref<81xf32, #tpu.memory_space<smem>>
    %279 = vector.broadcast %278 : f32 to vector<1x1024xf32>
    %280 = arith.mulf %279, %273 : vector<1x1024xf32>
    %281 = arith.addf %268, %280 : vector<1x1024xf32>
    %c75 = arith.constant 75 : index
    %282 = memref.load %arg1[%c75] : memref<81xf32, #tpu.memory_space<smem>>
    %283 = vector.broadcast %282 : f32 to vector<1x1024xf32>
    %284 = arith.mulf %283, %273 : vector<1x1024xf32>
    %285 = arith.addf %272, %284 : vector<1x1024xf32>
    %c993_i32 = arith.constant 993 : i32
    %286 = tpu.dynamic_rotate %1 by %c993_i32 dim 1 : vector<3x1024xf32>, i32 -> vector<3x1024xf32>
    %c992_i32 = arith.constant 992 : i32
    %287 = vector.broadcast %c992_i32 : i32 to vector<1x1024xi32>
    %288 = arith.cmpi slt, %2, %287 : vector<1x1024xi32>
    %c1_i32_14 = arith.constant 1 : i32
    %289 = vector.broadcast %c1_i32_14 : i32 to vector<1x1024xi32>
    %290 = arith.cmpi sge, %4, %289 : vector<1x1024xi32>
    %291 = arith.andi %288, %290 : vector<1x1024xi1>
    %cst_15 = arith.constant 0.000000e+00 : f32
    %292 = vector.shape_cast %291 : vector<1x1024xi1> to vector<1x1024xi1>
    %293 = vector.broadcast %292 : vector<1x1024xi1> to vector<3x1024xi1>
    %294 = vector.broadcast %cst_15 : f32 to vector<3x1024xf32>
    %295 = arith.select %293, %286, %294 : vector<3x1024xi1>, vector<3x1024xf32>
    %296 = vector.extract_strided_slice %295 {offsets = [0, 0], sizes = [1, 1024], strides = [1, 1]} : vector<3x1024xf32> to vector<1x1024xf32>
    %c2_16 = arith.constant 2 : index
    %297 = memref.load %arg1[%c2_16] : memref<81xf32, #tpu.memory_space<smem>>
    %298 = vector.broadcast %297 : f32 to vector<1x1024xf32>
    %299 = arith.mulf %298, %296 : vector<1x1024xf32>
    %300 = arith.addf %277, %299 : vector<1x1024xf32>
    %c11 = arith.constant 11 : index
    %301 = memref.load %arg1[%c11] : memref<81xf32, #tpu.memory_space<smem>>
    %302 = vector.broadcast %301 : f32 to vector<1x1024xf32>
    %303 = arith.mulf %302, %296 : vector<1x1024xf32>
    %304 = arith.addf %281, %303 : vector<1x1024xf32>
    %c20 = arith.constant 20 : index
    %305 = memref.load %arg1[%c20] : memref<81xf32, #tpu.memory_space<smem>>
    %306 = vector.broadcast %305 : f32 to vector<1x1024xf32>
    %307 = arith.mulf %306, %296 : vector<1x1024xf32>
    %308 = arith.addf %285, %307 : vector<1x1024xf32>
    %309 = vector.extract_strided_slice %295 {offsets = [1, 0], sizes = [1, 1024], strides = [1, 1]} : vector<3x1024xf32> to vector<1x1024xf32>
    %c29 = arith.constant 29 : index
    %310 = memref.load %arg1[%c29] : memref<81xf32, #tpu.memory_space<smem>>
    %311 = vector.broadcast %310 : f32 to vector<1x1024xf32>
    %312 = arith.mulf %311, %309 : vector<1x1024xf32>
    %313 = arith.addf %300, %312 : vector<1x1024xf32>
    %c38 = arith.constant 38 : index
    %314 = memref.load %arg1[%c38] : memref<81xf32, #tpu.memory_space<smem>>
    %315 = vector.broadcast %314 : f32 to vector<1x1024xf32>
    %316 = arith.mulf %315, %309 : vector<1x1024xf32>
    %317 = arith.addf %304, %316 : vector<1x1024xf32>
    %c47 = arith.constant 47 : index
    %318 = memref.load %arg1[%c47] : memref<81xf32, #tpu.memory_space<smem>>
    %319 = vector.broadcast %318 : f32 to vector<1x1024xf32>
    %320 = arith.mulf %319, %309 : vector<1x1024xf32>
    %321 = arith.addf %308, %320 : vector<1x1024xf32>
    %322 = vector.extract_strided_slice %295 {offsets = [2, 0], sizes = [1, 1024], strides = [1, 1]} : vector<3x1024xf32> to vector<1x1024xf32>
    %c56 = arith.constant 56 : index
    %323 = memref.load %arg1[%c56] : memref<81xf32, #tpu.memory_space<smem>>
    %324 = vector.broadcast %323 : f32 to vector<1x1024xf32>
    %325 = arith.mulf %324, %322 : vector<1x1024xf32>
    %326 = arith.addf %313, %325 : vector<1x1024xf32>
    %c65 = arith.constant 65 : index
    %327 = memref.load %arg1[%c65] : memref<81xf32, #tpu.memory_space<smem>>
    %328 = vector.broadcast %327 : f32 to vector<1x1024xf32>
    %329 = arith.mulf %328, %322 : vector<1x1024xf32>
    %330 = arith.addf %317, %329 : vector<1x1024xf32>
    %c74 = arith.constant 74 : index
    %331 = memref.load %arg1[%c74] : memref<81xf32, #tpu.memory_space<smem>>
    %332 = vector.broadcast %331 : f32 to vector<1x1024xf32>
    %333 = arith.mulf %332, %322 : vector<1x1024xf32>
    %334 = arith.addf %321, %333 : vector<1x1024xf32>
    %c992_i32_17 = arith.constant 992 : i32
    %335 = tpu.dynamic_rotate %1 by %c992_i32_17 dim 1 : vector<3x1024xf32>, i32 -> vector<3x1024xf32>
    %c992_i32_18 = arith.constant 992 : i32
    %336 = vector.broadcast %c992_i32_18 : i32 to vector<1x1024xi32>
    %337 = arith.cmpi slt, %2, %336 : vector<1x1024xi32>
    %cst_19 = arith.constant 0.000000e+00 : f32
    %338 = vector.shape_cast %337 : vector<1x1024xi1> to vector<1x1024xi1>
    %339 = vector.broadcast %338 : vector<1x1024xi1> to vector<3x1024xi1>
    %340 = vector.broadcast %cst_19 : f32 to vector<3x1024xf32>
    %341 = arith.select %339, %335, %340 : vector<3x1024xi1>, vector<3x1024xf32>
    %342 = vector.extract_strided_slice %341 {offsets = [0, 0], sizes = [1, 1024], strides = [1, 1]} : vector<3x1024xf32> to vector<1x1024xf32>
    %c1_20 = arith.constant 1 : index
    %343 = memref.load %arg1[%c1_20] : memref<81xf32, #tpu.memory_space<smem>>
    %344 = vector.broadcast %343 : f32 to vector<1x1024xf32>
    %345 = arith.mulf %344, %342 : vector<1x1024xf32>
    %346 = arith.addf %326, %345 : vector<1x1024xf32>
    %c10 = arith.constant 10 : index
    %347 = memref.load %arg1[%c10] : memref<81xf32, #tpu.memory_space<smem>>
    %348 = vector.broadcast %347 : f32 to vector<1x1024xf32>
    %349 = arith.mulf %348, %342 : vector<1x1024xf32>
    %350 = arith.addf %330, %349 : vector<1x1024xf32>
    %c19 = arith.constant 19 : index
    %351 = memref.load %arg1[%c19] : memref<81xf32, #tpu.memory_space<smem>>
    %352 = vector.broadcast %351 : f32 to vector<1x1024xf32>
    %353 = arith.mulf %352, %342 : vector<1x1024xf32>
    %354 = arith.addf %334, %353 : vector<1x1024xf32>
    %355 = vector.extract_strided_slice %341 {offsets = [1, 0], sizes = [1, 1024], strides = [1, 1]} : vector<3x1024xf32> to vector<1x1024xf32>
    %c28 = arith.constant 28 : index
    %356 = memref.load %arg1[%c28] : memref<81xf32, #tpu.memory_space<smem>>
    %357 = vector.broadcast %356 : f32 to vector<1x1024xf32>
    %358 = arith.mulf %357, %355 : vector<1x1024xf32>
    %359 = arith.addf %346, %358 : vector<1x1024xf32>
    %c37 = arith.constant 37 : index
    %360 = memref.load %arg1[%c37] : memref<81xf32, #tpu.memory_space<smem>>
    %361 = vector.broadcast %360 : f32 to vector<1x1024xf32>
    %362 = arith.mulf %361, %355 : vector<1x1024xf32>
    %363 = arith.addf %350, %362 : vector<1x1024xf32>
    %c46 = arith.constant 46 : index
    %364 = memref.load %arg1[%c46] : memref<81xf32, #tpu.memory_space<smem>>
    %365 = vector.broadcast %364 : f32 to vector<1x1024xf32>
    %366 = arith.mulf %365, %355 : vector<1x1024xf32>
    %367 = arith.addf %354, %366 : vector<1x1024xf32>
    %368 = vector.extract_strided_slice %341 {offsets = [2, 0], sizes = [1, 1024], strides = [1, 1]} : vector<3x1024xf32> to vector<1x1024xf32>
    %c55 = arith.constant 55 : index
    %369 = memref.load %arg1[%c55] : memref<81xf32, #tpu.memory_space<smem>>
    %370 = vector.broadcast %369 : f32 to vector<1x1024xf32>
    %371 = arith.mulf %370, %368 : vector<1x1024xf32>
    %372 = arith.addf %359, %371 : vector<1x1024xf32>
    %c64 = arith.constant 64 : index
    %373 = memref.load %arg1[%c64] : memref<81xf32, #tpu.memory_space<smem>>
    %374 = vector.broadcast %373 : f32 to vector<1x1024xf32>
    %375 = arith.mulf %374, %368 : vector<1x1024xf32>
    %376 = arith.addf %363, %375 : vector<1x1024xf32>
    %c73 = arith.constant 73 : index
    %377 = memref.load %arg1[%c73] : memref<81xf32, #tpu.memory_space<smem>>
    %378 = vector.broadcast %377 : f32 to vector<1x1024xf32>
    %379 = arith.mulf %378, %368 : vector<1x1024xf32>
    %380 = arith.addf %367, %379 : vector<1x1024xf32>
    %c991_i32 = arith.constant 991 : i32
    %381 = tpu.dynamic_rotate %1 by %c991_i32 dim 1 : vector<3x1024xf32>, i32 -> vector<3x1024xf32>
    %c992_i32_21 = arith.constant 992 : i32
    %382 = vector.broadcast %c992_i32_21 : i32 to vector<1x1024xi32>
    %383 = arith.cmpi slt, %2, %382 : vector<1x1024xi32>
    %c30_i32_22 = arith.constant 30 : i32
    %384 = vector.broadcast %c30_i32_22 : i32 to vector<1x1024xi32>
    %385 = arith.cmpi sle, %4, %384 : vector<1x1024xi32>
    %386 = arith.andi %383, %385 : vector<1x1024xi1>
    %cst_23 = arith.constant 0.000000e+00 : f32
    %387 = vector.shape_cast %386 : vector<1x1024xi1> to vector<1x1024xi1>
    %388 = vector.broadcast %387 : vector<1x1024xi1> to vector<3x1024xi1>
    %389 = vector.broadcast %cst_23 : f32 to vector<3x1024xf32>
    %390 = arith.select %388, %381, %389 : vector<3x1024xi1>, vector<3x1024xf32>
    %391 = vector.extract_strided_slice %390 {offsets = [0, 0], sizes = [1, 1024], strides = [1, 1]} : vector<3x1024xf32> to vector<1x1024xf32>
    %c0_24 = arith.constant 0 : index
    %392 = memref.load %arg1[%c0_24] : memref<81xf32, #tpu.memory_space<smem>>
    %393 = vector.broadcast %392 : f32 to vector<1x1024xf32>
    %394 = arith.mulf %393, %391 : vector<1x1024xf32>
    %395 = arith.addf %372, %394 : vector<1x1024xf32>
    %c9 = arith.constant 9 : index
    %396 = memref.load %arg1[%c9] : memref<81xf32, #tpu.memory_space<smem>>
    %397 = vector.broadcast %396 : f32 to vector<1x1024xf32>
    %398 = arith.mulf %397, %391 : vector<1x1024xf32>
    %399 = arith.addf %376, %398 : vector<1x1024xf32>
    %c18 = arith.constant 18 : index
    %400 = memref.load %arg1[%c18] : memref<81xf32, #tpu.memory_space<smem>>
    %401 = vector.broadcast %400 : f32 to vector<1x1024xf32>
    %402 = arith.mulf %401, %391 : vector<1x1024xf32>
    %403 = arith.addf %380, %402 : vector<1x1024xf32>
    %404 = vector.extract_strided_slice %390 {offsets = [1, 0], sizes = [1, 1024], strides = [1, 1]} : vector<3x1024xf32> to vector<1x1024xf32>
    %c27 = arith.constant 27 : index
    %405 = memref.load %arg1[%c27] : memref<81xf32, #tpu.memory_space<smem>>
    %406 = vector.broadcast %405 : f32 to vector<1x1024xf32>
    %407 = arith.mulf %406, %404 : vector<1x1024xf32>
    %408 = arith.addf %395, %407 : vector<1x1024xf32>
    %c36 = arith.constant 36 : index
    %409 = memref.load %arg1[%c36] : memref<81xf32, #tpu.memory_space<smem>>
    %410 = vector.broadcast %409 : f32 to vector<1x1024xf32>
    %411 = arith.mulf %410, %404 : vector<1x1024xf32>
    %412 = arith.addf %399, %411 : vector<1x1024xf32>
    %c45 = arith.constant 45 : index
    %413 = memref.load %arg1[%c45] : memref<81xf32, #tpu.memory_space<smem>>
    %414 = vector.broadcast %413 : f32 to vector<1x1024xf32>
    %415 = arith.mulf %414, %404 : vector<1x1024xf32>
    %416 = arith.addf %403, %415 : vector<1x1024xf32>
    %417 = vector.extract_strided_slice %390 {offsets = [2, 0], sizes = [1, 1024], strides = [1, 1]} : vector<3x1024xf32> to vector<1x1024xf32>
    %c54 = arith.constant 54 : index
    %418 = memref.load %arg1[%c54] : memref<81xf32, #tpu.memory_space<smem>>
    %419 = vector.broadcast %418 : f32 to vector<1x1024xf32>
    %420 = arith.mulf %419, %417 : vector<1x1024xf32>
    %421 = arith.addf %408, %420 : vector<1x1024xf32>
    %c63 = arith.constant 63 : index
    %422 = memref.load %arg1[%c63] : memref<81xf32, #tpu.memory_space<smem>>
    %423 = vector.broadcast %422 : f32 to vector<1x1024xf32>
    %424 = arith.mulf %423, %417 : vector<1x1024xf32>
    %425 = arith.addf %412, %424 : vector<1x1024xf32>
    %c72 = arith.constant 72 : index
    %426 = memref.load %arg1[%c72] : memref<81xf32, #tpu.memory_space<smem>>
    %427 = vector.broadcast %426 : f32 to vector<1x1024xf32>
    %428 = arith.mulf %427, %417 : vector<1x1024xf32>
    %429 = arith.addf %416, %428 : vector<1x1024xf32>
    %430 = tpu.concatenate %421, %425, %429 in 0 : vector<1x1024xf32>, vector<1x1024xf32>, vector<1x1024xf32> -> vector<3x1024xf32>
    %431 = arith.negf %430 : vector<3x1024xf32>
    %432 = math.exp %431 : vector<3x1024xf32>
    %cst_25 = arith.constant 1.000000e+00 : f32
    %433 = vector.broadcast %cst_25 : f32 to vector<3x1024xf32>
    %434 = arith.addf %433, %432 : vector<3x1024xf32>
    %435 = arith.divf %433, %434 : vector<3x1024xf32>
    %c0_26 = arith.constant 0 : index
    %c0_27 = arith.constant 0 : index
    %c0_28 = arith.constant 0 : index
    %436 = vector.load %arg4[%c0_26, %c0_27, %c0_28] : memref<1x3x1024xf32, #tpu.memory_space<vmem>>, vector<1x3x1024xf32>
    %437 = vector.shape_cast %436 : vector<1x3x1024xf32> to vector<3x1024xf32>
    %438 = vector.shape_cast %435 : vector<3x1024xf32> to vector<1x3x1024xf32>
    tpu.vector_store %arg4[%c0_26, %c0_27, %c0_28], %438 {strides = array<i32>} : memref<1x3x1024xf32, #tpu.memory_space<vmem>>, vector<1x3x1024xf32>,
    return
  }
  func.func @transform_0(%arg0: i32) -> i32 {
    %c0_i32 = arith.constant 0 : i32
    %c0_i32_0 = arith.constant 0 : i32
    return %c0_i32 : i32
  }
  func.func @transform_1(%arg0: i32) -> i32 {
    %c0_i32 = arith.constant 0 : i32
    %c0_i32_0 = arith.constant 0 : i32
    return %c0_i32 : i32
  }
  func.func @transform_2(%arg0: i32) -> (i32, i32, i32) {
    %c0_i32 = arith.constant 0 : i32
    %c0_i32_0 = arith.constant 0 : i32
    %c0_i32_1 = arith.constant 0 : i32
    return %arg0, %c0_i32, %c0_i32_0 : i32, i32, i32
  }
  func.func @transform_3(%arg0: i32) -> (i32, i32, i32) {
    %c0_i32 = arith.constant 0 : i32
    %c0_i32_0 = arith.constant 0 : i32
    %c0_i32_1 = arith.constant 0 : i32
    return %arg0, %c0_i32, %c0_i32_0 : i32, i32, i32
  }
}

</mosaic_0001>

<llo_original>
// kernel: conv_transpose_sigmoid.1
$region0: #{conv_transpose_sigmoid.1}
  #allocation0 [shape = 'u32[]', space=smem, size = 0x4, offset = 0x4, fixed_abs, tag = 'smem constant byte address 0x4 - core index']
  #allocation1 [shape = 'u32[72,128]{1,0:T(1,128)}', space=vmem, size = 0x9000, scoped, tag = 'internal scratch']
  %s0 = inlined_call_operand.vmem [shape: f32[81], index: 0, kind: input, shape index: {}]
  %s1 = inlined_call_operand.vmem [shape: f32[3], index: 1, kind: input, shape index: {}]
  %s2 = inlined_call_operand.vmem [shape: f32[1,3,1024], index: 2, kind: input, shape index: {}]
  %s3 = inlined_call_operand.vmem [shape: f32[1,3,1024], index: 3, kind: output, shape index: {}]
  %s4 = sld [smem:[#allocation0]]
  $region30: #{conv_transpose_sigmoid.1} parent=0
    _
  %s6 = ssub.s32 1, %s4
  %s7 = scalar_select 0, %s6, %s4
  $region1: #{conv_transpose_sigmoid.1} parent=0
    #allocation2 [shape = 'u8[512]{0}', space=smem, size = 0x200, scoped, tag = 'input window, operand 0, single buffered']
    #allocation3 [shape = 's32[1]{0}', space=sflag, size = 0x4, scoped, tag = 'scoped memory for conv_transpose_sigmoid.1']
    #allocation4 [shape = 'u8[512]{0}', space=smem, size = 0x200, scoped, tag = 'input window, operand 1, single buffered']
    #allocation5 [shape = 's32[1]{0}', space=sflag, size = 0x4, scoped, tag = 'scoped memory for conv_transpose_sigmoid.1']
    %8 = vsyncpa [#allocation3], 0
    %9 = vsyncpa [#allocation5], 0
    // Predicated region
    $region2: #{conv_transpose_sigmoid.1} parent=1 // pred_check
      _
    $region3: #{conv_transpose_sigmoid.1} parent=1 // pred_check_branch
      %11 = sbr.rel (0) target = $region5
    $region4: #{conv_transpose_sigmoid.1} parent=1 // pred_region
      %13 = vsyncadd [#allocation3], 0
      %s15 = sshll.u32 %s0, 4
      %s16 = int_to_ptr.vmem [resolvable:$true] %s15
      %18 = dma.vmem_to_smem %s16, 16, [#allocation2], [#allocation3]
    $region5: #{conv_transpose_sigmoid.1} parent=1 // pred_fallthru
      _
    // Predicated region
    $region6: #{conv_transpose_sigmoid.1} parent=1 // pred_check
      _
    $region7: #{conv_transpose_sigmoid.1} parent=1 // pred_check_branch
      %20 = sbr.rel (0) target = $region9
    $region8: #{conv_transpose_sigmoid.1} parent=1 // pred_region
      %22 = vsyncadd [#allocation5], 0
      %s24 = sshll.u32 %s1, 4
      %s25 = int_to_ptr.vmem [resolvable:$true] %s24
      %27 = dma.vmem_to_smem %s25, 16, [#allocation4], [#allocation5]
    $region9: #{conv_transpose_sigmoid.1} parent=1 // pred_fallthru
      _
    // Predicated region
    $region10: #{conv_transpose_sigmoid.1} parent=1 // pred_check
      _
    $region11: #{conv_transpose_sigmoid.1} parent=1 // pred_check_branch
      %29 = sbr.rel (0) target = $region13
    $region12: #{conv_transpose_sigmoid.1} parent=1 // pred_region
      _
    $region13: #{conv_transpose_sigmoid.1} parent=1 // pred_fallthru
      _
    // Predicated region
    $region14: #{conv_transpose_sigmoid.1} parent=1 // pred_check
      _
    $region15: #{conv_transpose_sigmoid.1} parent=1 // pred_check_branch
      %31 = sbr.rel (0) target = $region17
    $region16: #{conv_transpose_sigmoid.1} parent=1 // pred_region
      %33 = dma.done [#allocation3], 16
    $region17: #{conv_transpose_sigmoid.1} parent=1 // pred_fallthru
      _
    // Predicated region
    $region18: #{conv_transpose_sigmoid.1} parent=1 // pred_check
      _
    $region19: #{conv_transpose_sigmoid.1} parent=1 // pred_check_branch
      %35 = sbr.rel (0) target = $region21
    $region20: #{conv_transpose_sigmoid.1} parent=1 // pred_region
      %37 = dma.done [#allocation5], 16
    $region21: #{conv_transpose_sigmoid.1} parent=1 // pred_fallthru
      _
    %38 = sfence
    %v39 = vld [vmem:[%s2] sm:$0x77]
    %v40 = vld [vmem:[%s2 + $0x8] sm:$0x77]
    %v41 = vld [vmem:[%s2 + $0x10] sm:$0x77]
    %v42 = vld [vmem:[%s2 + $0x18] sm:$0x77]
    %v43 = vlaneseq
    %v44 = vand.u32 %v43, 127
    %v45 = vadd.s32 %v44, 128
    %v46 = vadd.s32 %v44, 256
    %v47 = vadd.s32 %v44, 384
    %v48 = vadd.s32 %v44, 512
    %v49 = vadd.s32 %v44, 640
    %v50 = vadd.s32 %v44, 768
    %v51 = vadd.s32 %v44, 896
    %v52 = vand.u32 %v44, 31
    %v53 = vand.u32 %v45, 31
    %v54 = vand.u32 %v46, 31
    %v55 = vand.u32 %v47, 31
    %v56 = vand.u32 %v48, 31
    %v57 = vand.u32 %v49, 31
    %v58 = vand.u32 %v50, 31
    %v59 = vand.u32 %v51, 31
    %s60 = sld [smem:[#allocation4]]
    %v61 = vstv %s60
    %s62 = sld [smem:[#allocation4 + $0x1]]
    %v63 = vstv %s62
    %s64 = sld [smem:[#allocation4 + $0x2]]
    %v65 = vstv %s64
    %70 = vst [vmem:[#allocation1] ss:$2 sm:$0xff] %v39
    %s71 = scalar_lea.vmem [#allocation1], 16
    %72 = vst [vmem:[%s71] ss:$2 sm:$0xff] %v40
    %s73 = scalar_lea.vmem [#allocation1], 32
    %74 = vst [vmem:[%s73] ss:$2 sm:$0xff] %v41
    %s75 = scalar_lea.vmem [#allocation1], 48
    %76 = vst [vmem:[%s75] ss:$2 sm:$0xff] %v42
    %v77 = vld.sshfl [vmem:[#allocation1] sm:$0xff pattern:$0x75316420]
    %v78 = vld.sshfl [vmem:[#allocation1 + $0x8] sm:$0xff pattern:$0x75316420]
    %v79 = vld.sshfl [vmem:[#allocation1 + $0x10] sm:$0xff pattern:$0x75316420]
    %v80 = vld.sshfl [vmem:[#allocation1 + $0x18] sm:$0xff pattern:$0x75316420]
    %v81 = vld.sshfl [vmem:[#allocation1 + $0x20] sm:$0xff pattern:$0x75316420]
    %v82 = vld.sshfl [vmem:[#allocation1 + $0x28] sm:$0xff pattern:$0x75316420]
    %v83 = vld.sshfl [vmem:[#allocation1 + $0x30] sm:$0xff pattern:$0x75316420]
    %v84 = vld.sshfl [vmem:[#allocation1 + $0x38] sm:$0xff pattern:$0x75316420]
    %93 = vrot.lane.b32.xlu0 %v77, 33
    %v94 = vpop.permute.xlu0 %93
    %95 = vrot.lane.b32.xlu0 %v78, 33
    %v96 = vpop.permute.xlu0 %95
    %97 = vrot.lane.b32.xlu0 %v79, 33
    %v98 = vpop.permute.xlu0 %97
    %99 = vrot.lane.b32.xlu0 %v80, 33
    %v100 = vpop.permute.xlu0 %99
    %101 = vrot.lane.b32.xlu0 %v81, 33
    %v102 = vpop.permute.xlu0 %101
    %103 = vrot.lane.b32.xlu0 %v82, 33
    %v104 = vpop.permute.xlu0 %103
    %105 = vrot.lane.b32.xlu0 %v83, 33
    %v106 = vpop.permute.xlu0 %105
    %107 = vrot.lane.b32.xlu0 %v84, 33
    %v108 = vpop.permute.xlu0 %107
    %vm109 = vcmp.lt.s32.totalorder %v44, 33
    %v110 = vsel %vm109, %v106, %v108
    %v111 = vsel %vm109, %v104, %v106
    %v112 = vsel %vm109, %v102, %v104
    %v113 = vsel %vm109, %v100, %v102
    %v114 = vsel %vm109, %v98, %v100
    %v115 = vsel %vm109, %v96, %v98
    %v116 = vsel %vm109, %v94, %v96
    %v117 = vsel %vm109, %v108, %v94
    %vm118 = vcmp.ge.s32.totalorder %v44, 32
    %vm119 = vcmp.ge.s32.totalorder %v45, 32
    %vm120 = vcmp.ge.s32.totalorder %v46, 32
    %vm121 = vcmp.ge.s32.totalorder %v47, 32
    %vm122 = vcmp.ge.s32.totalorder %v48, 32
    %vm123 = vcmp.ge.s32.totalorder %v49, 32
    %vm124 = vcmp.ge.s32.totalorder %v50, 32
    %vm125 = vcmp.ge.s32.totalorder %v51, 32
    %vm126 = vcmp.ge.s32.totalorder %v52, 1
    %vm127 = vcmp.ge.s32.totalorder %v53, 1
    %vm128 = vcmp.ge.s32.totalorder %v54, 1
    %vm129 = vcmp.ge.s32.totalorder %v55, 1
    %vm130 = vcmp.ge.s32.totalorder %v56, 1
    %vm131 = vcmp.ge.s32.totalorder %v57, 1
    %vm132 = vcmp.ge.s32.totalorder %v58, 1
    %vm133 = vcmp.ge.s32.totalorder %v59, 1
    %vm134 = vmand %vm118, %vm126
    %vm135 = vmand %vm119, %vm127
    %vm136 = vmand %vm120, %vm128
    %vm137 = vmand %vm121, %vm129
    %vm138 = vmand %vm122, %vm130
    %vm139 = vmand %vm123, %vm131
    %vm140 = vmand %vm124, %vm132
    %vm141 = vmand %vm125, %vm133
    %v142 = vsel %vm134, 1, 0
    %v143 = vsel %vm135, 1, 0
    %v144 = vsel %vm136, 1, 0
    %v145 = vsel %vm137, 1, 0
    %v146 = vsel %vm138, 1, 0
    %v147 = vsel %vm139, 1, 0
    %v148 = vsel %vm140, 1, 0
    %v149 = vsel %vm141, 1, 0
    %vm150 = vcmp.eq.s32.totalorder %v142, 1
    %vm151 = vcmp.eq.s32.totalorder %v143, 1
    %vm152 = vcmp.eq.s32.totalorder %v144, 1
    %vm153 = vcmp.eq.s32.totalorder %v145, 1
    %vm154 = vcmp.eq.s32.totalorder %v146, 1
    %vm155 = vcmp.eq.s32.totalorder %v147, 1
    %vm156 = vcmp.eq.s32.totalorder %v148, 1
    %vm157 = vcmp.eq.s32.totalorder %v149, 1
    %v158 = vsel %vm150, %v117, 0.0
    %v159 = vsel %vm151, %v116, 0.0
    %v160 = vsel %vm152, %v115, 0.0
    %v161 = vsel %vm153, %v114, 0.0
    %v162 = vsel %vm154, %v113, 0.0
    %v163 = vsel %vm155, %v112, 0.0
    %v164 = vsel %vm156, %v111, 0.0
    %v165 = vsel %vm157, %v110, 0.0
    %s166 = sld [smem:[#allocation2 + $0x8]]
    %v167 = vstv %s166
    %v168 = vmul.f32 %v167, %v158
    %v169 = vmul.f32 %v167, %v159
    %v170 = vmul.f32 %v167, %v160
    %v171 = vmul.f32 %v167, %v161
    %v172 = vmul.f32 %v167, %v162
    %v173 = vmul.f32 %v167, %v163
    %v174 = vmul.f32 %v167, %v164
    %v175 = vmul.f32 %v167, %v165
    %v176 = vadd.f32 %v61, %v168
    %v177 = vadd.f32 %v61, %v169
    %v178 = vadd.f32 %v61, %v170
    %v179 = vadd.f32 %v61, %v171
    %v180 = vadd.f32 %v61, %v172
    %v181 = vadd.f32 %v61, %v173
    %v182 = vadd.f32 %v61, %v174
    %v183 = vadd.f32 %v61, %v175
    %s184 = sld [smem:[#allocation2 + $0x11]]
    %v185 = vstv %s184
    %v186 = vmul.f32 %v185, %v158
    %v187 = vmul.f32 %v185, %v159
    %v188 = vmul.f32 %v185, %v160
    %v189 = vmul.f32 %v185, %v161
    %v190 = vmul.f32 %v185, %v162
    %v191 = vmul.f32 %v185, %v163
    %v192 = vmul.f32 %v185, %v164
    %v193 = vmul.f32 %v185, %v165
    %v194 = vadd.f32 %v63, %v186
    %v195 = vadd.f32 %v63, %v187
    %v196 = vadd.f32 %v63, %v188
    %v197 = vadd.f32 %v63, %v189
    %v198 = vadd.f32 %v63, %v190
    %v199 = vadd.f32 %v63, %v191
    %v200 = vadd.f32 %v63, %v192
    %v201 = vadd.f32 %v63, %v193
    %s202 = sld [smem:[#allocation2 + $0x1a]]
    %v203 = vstv %s202
    %v204 = vmul.f32 %v203, %v158
    %v205 = vmul.f32 %v203, %v159
    %v206 = vmul.f32 %v203, %v160
    %v207 = vmul.f32 %v203, %v161
    %v208 = vmul.f32 %v203, %v162
    %v209 = vmul.f32 %v203, %v163
    %v210 = vmul.f32 %v203, %v164
    %v211 = vmul.f32 %v203, %v165
    %v212 = vadd.f32 %v65, %v204
    %v213 = vadd.f32 %v65, %v205
    %v214 = vadd.f32 %v65, %v206
    %v215 = vadd.f32 %v65, %v207
    %v216 = vadd.f32 %v65, %v208
    %v217 = vadd.f32 %v65, %v209
    %v218 = vadd.f32 %v65, %v210
    %v219 = vadd.f32 %v65, %v211
    %s220 = sld [smem:[#allocation2 + $0x23]]
    %v221 = vstv %s220
    %v222 = vmul.f32 %v221, %v158
    %v223 = vmul.f32 %v221, %v159
    %v224 = vmul.f32 %v221, %v160
    %v225 = vmul.f32 %v221, %v161
    %v226 = vmul.f32 %v221, %v162
    %v227 = vmul.f32 %v221, %v163
    %v228 = vmul.f32 %v221, %v164
    %v229 = vmul.f32 %v221, %v165
    %v238 = vrot.slane %v222, 1
    %v239 = vrot.slane %v223, 1
    %v240 = vrot.slane %v224, 1
    %v241 = vrot.slane %v225, 1
    %v242 = vrot.slane %v226, 1
    %v243 = vrot.slane %v227, 1
    %v244 = vrot.slane %v228, 1
    %v245 = vrot.slane %v229, 1
    %v254 = vadd.f32 %v176, %v238
    %v255 = vadd.f32 %v177, %v239
    %v256 = vadd.f32 %v178, %v240
    %v257 = vadd.f32 %v179, %v241
    %v258 = vadd.f32 %v180, %v242
    %v259 = vadd.f32 %v181, %v243
    %v260 = vadd.f32 %v182, %v244
    %v261 = vadd.f32 %v183, %v245
    %s262 = sld [smem:[#allocation2 + $0x2c]]
    %v263 = vstv %s262
    %v264 = vmul.f32 %v263, %v158
    %v265 = vmul.f32 %v263, %v159
    %v266 = vmul.f32 %v263, %v160
    %v267 = vmul.f32 %v263, %v161
    %v268 = vmul.f32 %v263, %v162
    %v269 = vmul.f32 %v263, %v163
    %v270 = vmul.f32 %v263, %v164
    %v271 = vmul.f32 %v263, %v165
    %v280 = vrot.slane %v264, 1
    %v281 = vrot.slane %v265, 1
    %v282 = vrot.slane %v266, 1
    %v283 = vrot.slane %v267, 1
    %v284 = vrot.slane %v268, 1
    %v285 = vrot.slane %v269, 1
    %v286 = vrot.slane %v270, 1
    %v287 = vrot.slane %v271, 1
    %v296 = vadd.f32 %v194, %v280
    %v297 = vadd.f32 %v195, %v281
    %v298 = vadd.f32 %v196, %v282
    %v299 = vadd.f32 %v197, %v283
    %v300 = vadd.f32 %v198, %v284
    %v301 = vadd.f32 %v199, %v285
    %v302 = vadd.f32 %v200, %v286
    %v303 = vadd.f32 %v201, %v287
    %s304 = sld [smem:[#allocation2 + $0x35]]
    %v305 = vstv %s304
    %v306 = vmul.f32 %v305, %v158
    %v307 = vmul.f32 %v305, %v159
    %v308 = vmul.f32 %v305, %v160
    %v309 = vmul.f32 %v305, %v161
    %v310 = vmul.f32 %v305, %v162
    %v311 = vmul.f32 %v305, %v163
    %v312 = vmul.f32 %v305, %v164
    %v313 = vmul.f32 %v305, %v165
    %v322 = vrot.slane %v306, 1
    %v323 = vrot.slane %v307, 1
    %v324 = vrot.slane %v308, 1
    %v325 = vrot.slane %v309, 1
    %v326 = vrot.slane %v310, 1
    %v327 = vrot.slane %v311, 1
    %v328 = vrot.slane %v312, 1
    %v329 = vrot.slane %v313, 1
    %v338 = vadd.f32 %v212, %v322
    %v339 = vadd.f32 %v213, %v323
    %v340 = vadd.f32 %v214, %v324
    %v341 = vadd.f32 %v215, %v325
    %v342 = vadd.f32 %v216, %v326
    %v343 = vadd.f32 %v217, %v327
    %v344 = vadd.f32 %v218, %v328
    %v345 = vadd.f32 %v219, %v329
    %s346 = sld [smem:[#allocation2 + $0x3e]]
    %v347 = vstv %s346
    %v348 = vmul.f32 %v347, %v158
    %v349 = vmul.f32 %v347, %v159
    %v350 = vmul.f32 %v347, %v160
    %v351 = vmul.f32 %v347, %v161
    %v352 = vmul.f32 %v347, %v162
    %v353 = vmul.f32 %v347, %v163
    %v354 = vmul.f32 %v347, %v164
    %v355 = vmul.f32 %v347, %v165
    %v364 = vrot.slane %v348, 2
    %v365 = vrot.slane %v349, 2
    %v366 = vrot.slane %v350, 2
    %v367 = vrot.slane %v351, 2
    %v368 = vrot.slane %v352, 2
    %v369 = vrot.slane %v353, 2
    %v370 = vrot.slane %v354, 2
    %v371 = vrot.slane %v355, 2
    %v380 = vadd.f32 %v254, %v364
    %v381 = vadd.f32 %v255, %v365
    %v382 = vadd.f32 %v256, %v366
    %v383 = vadd.f32 %v257, %v367
    %v384 = vadd.f32 %v258, %v368
    %v385 = vadd.f32 %v259, %v369
    %v386 = vadd.f32 %v260, %v370
    %v387 = vadd.f32 %v261, %v371
    %s388 = sld [smem:[#allocation2 + $0x47]]
    %v389 = vstv %s388
    %v390 = vmul.f32 %v389, %v158
    %v391 = vmul.f32 %v389, %v159
    %v392 = vmul.f32 %v389, %v160
    %v393 = vmul.f32 %v389, %v161
    %v394 = vmul.f32 %v389, %v162
    %v395 = vmul.f32 %v389, %v163
    %v396 = vmul.f32 %v389, %v164
    %v397 = vmul.f32 %v389, %v165
    %v406 = vrot.slane %v390, 2
    %v407 = vrot.slane %v391, 2
    %v408 = vrot.slane %v392, 2
    %v409 = vrot.slane %v393, 2
    %v410 = vrot.slane %v394, 2
    %v411 = vrot.slane %v395, 2
    %v412 = vrot.slane %v396, 2
    %v413 = vrot.slane %v397, 2
    %v422 = vadd.f32 %v296, %v406
    %v423 = vadd.f32 %v297, %v407
    %v424 = vadd.f32 %v298, %v408
    %v425 = vadd.f32 %v299, %v409
    %v426 = vadd.f32 %v300, %v410
    %v427 = vadd.f32 %v301, %v411
    %v428 = vadd.f32 %v302, %v412
    %v429 = vadd.f32 %v303, %v413
    %s430 = sld [smem:[#allocation2 + $0x50]]
    %v431 = vstv %s430
    %v432 = vmul.f32 %v431, %v158
    %v433 = vmul.f32 %v431, %v159
    %v434 = vmul.f32 %v431, %v160
    %v435 = vmul.f32 %v431, %v161
    %v436 = vmul.f32 %v431, %v162
    %v437 = vmul.f32 %v431, %v163
    %v438 = vmul.f32 %v431, %v164
    %v439 = vmul.f32 %v431, %v165
    %v448 = vrot.slane %v432, 2
    %v449 = vrot.slane %v433, 2
    %v450 = vrot.slane %v434, 2
    %v451 = vrot.slane %v435, 2
    %v452 = vrot.slane %v436, 2
    %v453 = vrot.slane %v437, 2
    %v454 = vrot.slane %v438, 2
    %v455 = vrot.slane %v439, 2
    %v464 = vadd.f32 %v338, %v448
    %v465 = vadd.f32 %v339, %v449
    %v466 = vadd.f32 %v340, %v450
    %v467 = vadd.f32 %v341, %v451
    %v468 = vadd.f32 %v342, %v452
    %v469 = vadd.f32 %v343, %v453
    %v470 = vadd.f32 %v344, %v454
    %v471 = vadd.f32 %v345, %v455
    %472 = vst [vmem:[#allocation1] ss:$2 sm:$0xff] %v39
    %s473 = scalar_lea.vmem [#allocation1], 16
    %474 = vst [vmem:[%s473] ss:$2 sm:$0xff] %v40
    %s475 = scalar_lea.vmem [#allocation1], 32
    %476 = vst [vmem:[%s475] ss:$2 sm:$0xff] %v41
    %s477 = scalar_lea.vmem [#allocation1], 48
    %478 = vst [vmem:[%s477] ss:$2 sm:$0xff] %v42
    %v479 = vld.sshfl [vmem:[#allocation1] sm:$0xff pattern:$0x75316420]
    %v480 = vld.sshfl [vmem:[#allocation1 + $0x8] sm:$0xff pattern:$0x75316420]
    %v481 = vld.sshfl [vmem:[#allocation1 + $0x10] sm:$0xff pattern:$0x75316420]
    %v482 = vld.sshfl [vmem:[#allocation1 + $0x18] sm:$0xff pattern:$0x75316420]
    %v483 = vld.sshfl [vmem:[#allocation1 + $0x20] sm:$0xff pattern:$0x75316420]
    %v484 = vld.sshfl [vmem:[#allocation1 + $0x28] sm:$0xff pattern:$0x75316420]
    %v485 = vld.sshfl [vmem:[#allocation1 + $0x30] sm:$0xff pattern:$0x75316420]
    %v486 = vld.sshfl [vmem:[#allocation1 + $0x38] sm:$0xff pattern:$0x75316420]
    %495 = vrot.lane.b32.xlu0 %v479, 32
    %v496 = vpop.permute.xlu0 %495
    %497 = vrot.lane.b32.xlu0 %v480, 32
    %v498 = vpop.permute.xlu0 %497
    %499 = vrot.lane.b32.xlu0 %v481, 32
    %v500 = vpop.permute.xlu0 %499
    %501 = vrot.lane.b32.xlu0 %v482, 32
    %v502 = vpop.permute.xlu0 %501
    %503 = vrot.lane.b32.xlu0 %v483, 32
    %v504 = vpop.permute.xlu0 %503
    %505 = vrot.lane.b32.xlu0 %v484, 32
    %v506 = vpop.permute.xlu0 %505
    %507 = vrot.lane.b32.xlu0 %v485, 32
    %v508 = vpop.permute.xlu0 %507
    %509 = vrot.lane.b32.xlu0 %v486, 32
    %v510 = vpop.permute.xlu0 %509
    %vm511 = vcmp.lt.s32.totalorder %v44, 32
    %v512 = vsel %vm511, %v508, %v510
    %v513 = vsel %vm511, %v506, %v508
    %v514 = vsel %vm511, %v504, %v506
    %v515 = vsel %vm511, %v502, %v504
    %v516 = vsel %vm511, %v500, %v502
    %v517 = vsel %vm511, %v498, %v500
    %v518 = vsel %vm511, %v496, %v498
    %v519 = vsel %vm511, %v510, %v496
    %v520 = vsel %vm118, 1, 0
    %v521 = vsel %vm119, 1, 0
    %v522 = vsel %vm120, 1, 0
    %v523 = vsel %vm121, 1, 0
    %v524 = vsel %vm122, 1, 0
    %v525 = vsel %vm123, 1, 0
    %v526 = vsel %vm124, 1, 0
    %v527 = vsel %vm125, 1, 0
    %vm528 = vcmp.eq.s32.totalorder %v520, 1
    %vm529 = vcmp.eq.s32.totalorder %v521, 1
    %vm530 = vcmp.eq.s32.totalorder %v522, 1
    %vm531 = vcmp.eq.s32.totalorder %v523, 1
    %vm532 = vcmp.eq.s32.totalorder %v524, 1
    %vm533 = vcmp.eq.s32.totalorder %v525, 1
    %vm534 = vcmp.eq.s32.totalorder %v526, 1
    %vm535 = vcmp.eq.s32.totalorder %v527, 1
    %v536 = vsel %vm528, %v519, 0.0
    %v537 = vsel %vm529, %v518, 0.0
    %v538 = vsel %vm530, %v517, 0.0
    %v539 = vsel %vm531, %v516, 0.0
    %v540 = vsel %vm532, %v515, 0.0
    %v541 = vsel %vm533, %v514, 0.0
    %v542 = vsel %vm534, %v513, 0.0
    %v543 = vsel %vm535, %v512, 0.0
    %s544 = sld [smem:[#allocation2 + $0x7]]
    %v545 = vstv %s544
    %v546 = vmul.f32 %v545, %v536
    %v547 = vmul.f32 %v545, %v537
    %v548 = vmul.f32 %v545, %v538
    %v549 = vmul.f32 %v545, %v539
    %v550 = vmul.f32 %v545, %v540
    %v551 = vmul.f32 %v545, %v541
    %v552 = vmul.f32 %v545, %v542
    %v553 = vmul.f32 %v545, %v543
    %v554 = vadd.f32 %v380, %v546
    %v555 = vadd.f32 %v381, %v547
    %v556 = vadd.f32 %v382, %v548
    %v557 = vadd.f32 %v383, %v549
    %v558 = vadd.f32 %v384, %v550
    %v559 = vadd.f32 %v385, %v551
    %v560 = vadd.f32 %v386, %v552
    %v561 = vadd.f32 %v387, %v553
    %s562 = sld [smem:[#allocation2 + $0x10]]
    %v563 = vstv %s562
    %v564 = vmul.f32 %v563, %v536
    %v565 = vmul.f32 %v563, %v537
    %v566 = vmul.f32 %v563, %v538
    %v567 = vmul.f32 %v563, %v539
    %v568 = vmul.f32 %v563, %v540
    %v569 = vmul.f32 %v563, %v541
    %v570 = vmul.f32 %v563, %v542
    %v571 = vmul.f32 %v563, %v543
    %v572 = vadd.f32 %v422, %v564
    %v573 = vadd.f32 %v423, %v565
    %v574 = vadd.f32 %v424, %v566
    %v575 = vadd.f32 %v425, %v567
    %v576 = vadd.f32 %v426, %v568
    %v577 = vadd.f32 %v427, %v569
    %v578 = vadd.f32 %v428, %v570
    %v579 = vadd.f32 %v429, %v571
    %s580 = sld [smem:[#allocation2 + $0x19]]
    %v581 = vstv %s580
    %v582 = vmul.f32 %v581, %v536
    %v583 = vmul.f32 %v581, %v537
    %v584 = vmul.f32 %v581, %v538
    %v585 = vmul.f32 %v581, %v539
    %v586 = vmul.f32 %v581, %v540
    %v587 = vmul.f32 %v581, %v541
    %v588 = vmul.f32 %v581, %v542
    %v589 = vmul.f32 %v581, %v543
    %v590 = vadd.f32 %v464, %v582
    %v591 = vadd.f32 %v465, %v583
    %v592 = vadd.f32 %v466, %v584
    %v593 = vadd.f32 %v467, %v585
    %v594 = vadd.f32 %v468, %v586
    %v595 = vadd.f32 %v469, %v587
    %v596 = vadd.f32 %v470, %v588
    %v597 = vadd.f32 %v471, %v589
    %s598 = sld [smem:[#allocation2 + $0x22]]
    %v599 = vstv %s598
    %v600 = vmul.f32 %v599, %v536
    %v601 = vmul.f32 %v599, %v537
    %v602 = vmul.f32 %v599, %v538
    %v603 = vmul.f32 %v599, %v539
    %v604 = vmul.f32 %v599, %v540
    %v605 = vmul.f32 %v599, %v541
    %v606 = vmul.f32 %v599, %v542
    %v607 = vmul.f32 %v599, %v543
    %v616 = vrot.slane %v600, 1
    %v617 = vrot.slane %v601, 1
    %v618 = vrot.slane %v602, 1
    %v619 = vrot.slane %v603, 1
    %v620 = vrot.slane %v604, 1
    %v621 = vrot.slane %v605, 1
    %v622 = vrot.slane %v606, 1
    %v623 = vrot.slane %v607, 1
    %v632 = vadd.f32 %v554, %v616
    %v633 = vadd.f32 %v555, %v617
    %v634 = vadd.f32 %v556, %v618
    %v635 = vadd.f32 %v557, %v619
    %v636 = vadd.f32 %v558, %v620
    %v637 = vadd.f32 %v559, %v621
    %v638 = vadd.f32 %v560, %v622
    %v639 = vadd.f32 %v561, %v623
    %s640 = sld [smem:[#allocation2 + $0x2b]]
    %v641 = vstv %s640
    %v642 = vmul.f32 %v641, %v536
    %v643 = vmul.f32 %v641, %v537
    %v644 = vmul.f32 %v641, %v538
    %v645 = vmul.f32 %v641, %v539
    %v646 = vmul.f32 %v641, %v540
    %v647 = vmul.f32 %v641, %v541
    %v648 = vmul.f32 %v641, %v542
    %v649 = vmul.f32 %v641, %v543
    %v658 = vrot.slane %v642, 1
    %v659 = vrot.slane %v643, 1
    %v660 = vrot.slane %v644, 1
    %v661 = vrot.slane %v645, 1
    %v662 = vrot.slane %v646, 1
    %v663 = vrot.slane %v647, 1
    %v664 = vrot.slane %v648, 1
    %v665 = vrot.slane %v649, 1
    %v674 = vadd.f32 %v572, %v658
    %v675 = vadd.f32 %v573, %v659
    %v676 = vadd.f32 %v574, %v660
    %v677 = vadd.f32 %v575, %v661
    %v678 = vadd.f32 %v576, %v662
    %v679 = vadd.f32 %v577, %v663
    %v680 = vadd.f32 %v578, %v664
    %v681 = vadd.f32 %v579, %v665
    %s682 = sld [smem:[#allocation2 + $0x34]]
    %v683 = vstv %s682
    %v684 = vmul.f32 %v683, %v536
    %v685 = vmul.f32 %v683, %v537
    %v686 = vmul.f32 %v683, %v538
    %v687 = vmul.f32 %v683, %v539
    %v688 = vmul.f32 %v683, %v540
    %v689 = vmul.f32 %v683, %v541
    %v690 = vmul.f32 %v683, %v542
    %v691 = vmul.f32 %v683, %v543
    %v700 = vrot.slane %v684, 1
    %v701 = vrot.slane %v685, 1
    %v702 = vrot.slane %v686, 1
    %v703 = vrot.slane %v687, 1
    %v704 = vrot.slane %v688, 1
    %v705 = vrot.slane %v689, 1
    %v706 = vrot.slane %v690, 1
    %v707 = vrot.slane %v691, 1
    %v716 = vadd.f32 %v590, %v700
    %v717 = vadd.f32 %v591, %v701
    %v718 = vadd.f32 %v592, %v702
    %v719 = vadd.f32 %v593, %v703
    %v720 = vadd.f32 %v594, %v704
    %v721 = vadd.f32 %v595, %v705
    %v722 = vadd.f32 %v596, %v706
    %v723 = vadd.f32 %v597, %v707
    %s724 = sld [smem:[#allocation2 + $0x3d]]
    %v725 = vstv %s724
    %v726 = vmul.f32 %v725, %v536
    %v727 = vmul.f32 %v725, %v537
    %v728 = vmul.f32 %v725, %v538
    %v729 = vmul.f32 %v725, %v539
    %v730 = vmul.f32 %v725, %v540
    %v731 = vmul.f32 %v725, %v541
    %v732 = vmul.f32 %v725, %v542
    %v733 = vmul.f32 %v725, %v543
    %v742 = vrot.slane %v726, 2
    %v743 = vrot.slane %v727, 2
    %v744 = vrot.slane %v728, 2
    %v745 = vrot.slane %v729, 2
    %v746 = vrot.slane %v730, 2
    %v747 = vrot.slane %v731, 2
    %v748 = vrot.slane %v732, 2
    %v749 = vrot.slane %v733, 2
    %v758 = vadd.f32 %v632, %v742
    %v759 = vadd.f32 %v633, %v743
    %v760 = vadd.f32 %v634, %v744
    %v761 = vadd.f32 %v635, %v745
    %v762 = vadd.f32 %v636, %v746
    %v763 = vadd.f32 %v637, %v747
    %v764 = vadd.f32 %v638, %v748
    %v765 = vadd.f32 %v639, %v749
    %s766 = sld [smem:[#allocation2 + $0x46]]
    %v767 = vstv %s766
    %v768 = vmul.f32 %v767, %v536
    %v769 = vmul.f32 %v767, %v537
    %v770 = vmul.f32 %v767, %v538
    %v771 = vmul.f32 %v767, %v539
    %v772 = vmul.f32 %v767, %v540
    %v773 = vmul.f32 %v767, %v541
    %v774 = vmul.f32 %v767, %v542
    %v775 = vmul.f32 %v767, %v543
    %v784 = vrot.slane %v768, 2
    %v785 = vrot.slane %v769, 2
    %v786 = vrot.slane %v770, 2
    %v787 = vrot.slane %v771, 2
    %v788 = vrot.slane %v772, 2
    %v789 = vrot.slane %v773, 2
    %v790 = vrot.slane %v774, 2
    %v791 = vrot.slane %v775, 2
    %v800 = vadd.f32 %v674, %v784
    %v801 = vadd.f32 %v675, %v785
    %v802 = vadd.f32 %v676, %v786
    %v803 = vadd.f32 %v677, %v787
    %v804 = vadd.f32 %v678, %v788
    %v805 = vadd.f32 %v679, %v789
    %v806 = vadd.f32 %v680, %v790
    %v807 = vadd.f32 %v681, %v791
    %s808 = sld [smem:[#allocation2 + $0x4f]]
    %v809 = vstv %s808
    %v810 = vmul.f32 %v809, %v536
    %v811 = vmul.f32 %v809, %v537
    %v812 = vmul.f32 %v809, %v538
    %v813 = vmul.f32 %v809, %v539
    %v814 = vmul.f32 %v809, %v540
    %v815 = vmul.f32 %v809, %v541
    %v816 = vmul.f32 %v809, %v542
    %v817 = vmul.f32 %v809, %v543
    %v826 = vrot.slane %v810, 2
    %v827 = vrot.slane %v811, 2
    %v828 = vrot.slane %v812, 2
    %v829 = vrot.slane %v813, 2
    %v830 = vrot.slane %v814, 2
    %v831 = vrot.slane %v815, 2
    %v832 = vrot.slane %v816, 2
    %v833 = vrot.slane %v817, 2
    %v842 = vadd.f32 %v716, %v826
    %v843 = vadd.f32 %v717, %v827
    %v844 = vadd.f32 %v718, %v828
    %v845 = vadd.f32 %v719, %v829
    %v846 = vadd.f32 %v720, %v830
    %v847 = vadd.f32 %v721, %v831
    %v848 = vadd.f32 %v722, %v832
    %v849 = vadd.f32 %v723, %v833
    %850 = vst [vmem:[#allocation1] ss:$2 sm:$0xff] %v39
    %s851 = scalar_lea.vmem [#allocation1], 16
    %852 = vst [vmem:[%s851] ss:$2 sm:$0xff] %v40
    %s853 = scalar_lea.vmem [#allocation1], 32
    %854 = vst [vmem:[%s853] ss:$2 sm:$0xff] %v41
    %s855 = scalar_lea.vmem [#allocation1], 48
    %856 = vst [vmem:[%s855] ss:$2 sm:$0xff] %v42
    %v857 = vld.sshfl [vmem:[#allocation1] sm:$0xff pattern:$0x75316420]
    %v858 = vld.sshfl [vmem:[#allocation1 + $0x8] sm:$0xff pattern:$0x75316420]
    %v859 = vld.sshfl [vmem:[#allocation1 + $0x10] sm:$0xff pattern:$0x75316420]
    %v860 = vld.sshfl [vmem:[#allocation1 + $0x18] sm:$0xff pattern:$0x75316420]
    %v861 = vld.sshfl [vmem:[#allocation1 + $0x20] sm:$0xff pattern:$0x75316420]
    %v862 = vld.sshfl [vmem:[#allocation1 + $0x28] sm:$0xff pattern:$0x75316420]
    %v863 = vld.sshfl [vmem:[#allocation1 + $0x30] sm:$0xff pattern:$0x75316420]
    %v864 = vld.sshfl [vmem:[#allocation1 + $0x38] sm:$0xff pattern:$0x75316420]
    %873 = vrot.lane.b32.xlu0 %v857, 31
    %v874 = vpop.permute.xlu0 %873
    %875 = vrot.lane.b32.xlu0 %v858, 31
    %v876 = vpop.permute.xlu0 %875
    %877 = vrot.lane.b32.xlu0 %v859, 31
    %v878 = vpop.permute.xlu0 %877
    %879 = vrot.lane.b32.xlu0 %v860, 31
    %v880 = vpop.permute.xlu0 %879
    %881 = vrot.lane.b32.xlu0 %v861, 31
    %v882 = vpop.permute.xlu0 %881
    %883 = vrot.lane.b32.xlu0 %v862, 31
    %v884 = vpop.permute.xlu0 %883
    %885 = vrot.lane.b32.xlu0 %v863, 31
    %v886 = vpop.permute.xlu0 %885
    %887 = vrot.lane.b32.xlu0 %v864, 31
    %v888 = vpop.permute.xlu0 %887
    %vm889 = vcmp.lt.s32.totalorder %v44, 31
    %v890 = vsel %vm889, %v886, %v888
    %v891 = vsel %vm889, %v884, %v886
    %v892 = vsel %vm889, %v882, %v884
    %v893 = vsel %vm889, %v880, %v882
    %v894 = vsel %vm889, %v878, %v880
    %v895 = vsel %vm889, %v876, %v878
    %v896 = vsel %vm889, %v874, %v876
    %v897 = vsel %vm889, %v888, %v874
    %vm898 = vcmp.le.s32.totalorder %v52, 30
    %vm899 = vcmp.le.s32.totalorder %v53, 30
    %vm900 = vcmp.le.s32.totalorder %v54, 30
    %vm901 = vcmp.le.s32.totalorder %v55, 30
    %vm902 = vcmp.le.s32.totalorder %v56, 30
    %vm903 = vcmp.le.s32.totalorder %v57, 30
    %vm904 = vcmp.le.s32.totalorder %v58, 30
    %vm905 = vcmp.le.s32.totalorder %v59, 30
    %vm906 = vmand %vm118, %vm898
    %vm907 = vmand %vm119, %vm899
    %vm908 = vmand %vm120, %vm900
    %vm909 = vmand %vm121, %vm901
    %vm910 = vmand %vm122, %vm902
    %vm911 = vmand %vm123, %vm903
    %vm912 = vmand %vm124, %vm904
    %vm913 = vmand %vm125, %vm905
    %v914 = vsel %vm906, 1, 0
    %v915 = vsel %vm907, 1, 0
    %v916 = vsel %vm908, 1, 0
    %v917 = vsel %vm909, 1, 0
    %v918 = vsel %vm910, 1, 0
    %v919 = vsel %vm911, 1, 0
    %v920 = vsel %vm912, 1, 0
    %v921 = vsel %vm913, 1, 0
    %vm922 = vcmp.eq.s32.totalorder %v914, 1
    %vm923 = vcmp.eq.s32.totalorder %v915, 1
    %vm924 = vcmp.eq.s32.totalorder %v916, 1
    %vm925 = vcmp.eq.s32.totalorder %v917, 1
    %vm926 = vcmp.eq.s32.totalorder %v918, 1
    %vm927 = vcmp.eq.s32.totalorder %v919, 1
    %vm928 = vcmp.eq.s32.totalorder %v920, 1
    %vm929 = vcmp.eq.s32.totalorder %v921, 1
    %v930 = vsel %vm922, %v897, 0.0
    %v931 = vsel %vm923, %v896, 0.0
    %v932 = vsel %vm924, %v895, 0.0
    %v933 = vsel %vm925, %v894, 0.0
    %v934 = vsel %vm926, %v893, 0.0
    %v935 = vsel %vm927, %v892, 0.0
    %v936 = vsel %vm928, %v891, 0.0
    %v937 = vsel %vm929, %v890, 0.0
    %s938 = sld [smem:[#allocation2 + $0x6]]
    %v939 = vstv %s938
    %v940 = vmul.f32 %v939, %v930
    %v941 = vmul.f32 %v939, %v931
    %v942 = vmul.f32 %v939, %v932
    %v943 = vmul.f32 %v939, %v933
    %v944 = vmul.f32 %v939, %v934
    %v945 = vmul.f32 %v939, %v935
    %v946 = vmul.f32 %v939, %v936
    %v947 = vmul.f32 %v939, %v937
    %v948 = vadd.f32 %v758, %v940
    %v949 = vadd.f32 %v759, %v941
    %v950 = vadd.f32 %v760, %v942
    %v951 = vadd.f32 %v761, %v943
    %v952 = vadd.f32 %v762, %v944
    %v953 = vadd.f32 %v763, %v945
    %v954 = vadd.f32 %v764, %v946
    %v955 = vadd.f32 %v765, %v947
    %s956 = sld [smem:[#allocation2 + $0xf]]
    %v957 = vstv %s956
    %v958 = vmul.f32 %v957, %v930
    %v959 = vmul.f32 %v957, %v931
    %v960 = vmul.f32 %v957, %v932
    %v961 = vmul.f32 %v957, %v933
    %v962 = vmul.f32 %v957, %v934
    %v963 = vmul.f32 %v957, %v935
    %v964 = vmul.f32 %v957, %v936
    %v965 = vmul.f32 %v957, %v937
    %v966 = vadd.f32 %v800, %v958
    %v967 = vadd.f32 %v801, %v959
    %v968 = vadd.f32 %v802, %v960
    %v969 = vadd.f32 %v803, %v961
    %v970 = vadd.f32 %v804, %v962
    %v971 = vadd.f32 %v805, %v963
    %v972 = vadd.f32 %v806, %v964
    %v973 = vadd.f32 %v807, %v965
    %s974 = sld [smem:[#allocation2 + $0x18]]
    %v975 = vstv %s974
    %v976 = vmul.f32 %v975, %v930
    %v977 = vmul.f32 %v975, %v931
    %v978 = vmul.f32 %v975, %v932
    %v979 = vmul.f32 %v975, %v933
    %v980 = vmul.f32 %v975, %v934
    %v981 = vmul.f32 %v975, %v935
    %v982 = vmul.f32 %v975, %v936
    %v983 = vmul.f32 %v975, %v937
    %v984 = vadd.f32 %v842, %v976
    %v985 = vadd.f32 %v843, %v977
    %v986 = vadd.f32 %v844, %v978
    %v987 = vadd.f32 %v845, %v979
    %v988 = vadd.f32 %v846, %v980
    %v989 = vadd.f32 %v847, %v981
    %v990 = vadd.f32 %v848, %v982
    %v991 = vadd.f32 %v849, %v983
    %s992 = sld [smem:[#allocation2 + $0x21]]
    %v993 = vstv %s992
    %v994 = vmul.f32 %v993, %v930
    %v995 = vmul.f32 %v993, %v931
    %v996 = vmul.f32 %v993, %v932
    %v997 = vmul.f32 %v993, %v933
    %v998 = vmul.f32 %v993, %v934
    %v999 = vmul.f32 %v993, %v935
    %v1000 = vmul.f32 %v993, %v936
    %v1001 = vmul.f32 %v993, %v937
    %v1010 = vrot.slane %v994, 1
    %v1011 = vrot.slane %v995, 1
    %v1012 = vrot.slane %v996, 1
    %v1013 = vrot.slane %v997, 1
    %v1014 = vrot.slane %v998, 1
    %v1015 = vrot.slane %v999, 1
    %v1016 = vrot.slane %v1000, 1
    %v1017 = vrot.slane %v1001, 1
    %v1026 = vadd.f32 %v948, %v1010
    %v1027 = vadd.f32 %v949, %v1011
    %v1028 = vadd.f32 %v950, %v1012
    %v1029 = vadd.f32 %v951, %v1013
    %v1030 = vadd.f32 %v952, %v1014
    %v1031 = vadd.f32 %v953, %v1015
    %v1032 = vadd.f32 %v954, %v1016
    %v1033 = vadd.f32 %v955, %v1017
    %s1034 = sld [smem:[#allocation2 + $0x2a]]
    %v1035 = vstv %s1034
    %v1036 = vmul.f32 %v1035, %v930
    %v1037 = vmul.f32 %v1035, %v931
    %v1038 = vmul.f32 %v1035, %v932
    %v1039 = vmul.f32 %v1035, %v933
    %v1040 = vmul.f32 %v1035, %v934
    %v1041 = vmul.f32 %v1035, %v935
    %v1042 = vmul.f32 %v1035, %v936
    %v1043 = vmul.f32 %v1035, %v937
    %v1052 = vrot.slane %v1036, 1
    %v1053 = vrot.slane %v1037, 1
    %v1054 = vrot.slane %v1038, 1
    %v1055 = vrot.slane %v1039, 1
    %v1056 = vrot.slane %v1040, 1
    %v1057 = vrot.slane %v1041, 1
    %v1058 = vrot.slane %v1042, 1
    %v1059 = vrot.slane %v1043, 1
    %v1068 = vadd.f32 %v966, %v1052
    %v1069 = vadd.f32 %v967, %v1053
    %v1070 = vadd.f32 %v968, %v1054
    %v1071 = vadd.f32 %v969, %v1055
    %v1072 = vadd.f32 %v970, %v1056
    %v1073 = vadd.f32 %v971, %v1057
    %v1074 = vadd.f32 %v972, %v1058
    %v1075 = vadd.f32 %v973, %v1059
    %s1076 = sld [smem:[#allocation2 + $0x33]]
    %v1077 = vstv %s1076
    %v1078 = vmul.f32 %v1077, %v930
    %v1079 = vmul.f32 %v1077, %v931
    %v1080 = vmul.f32 %v1077, %v932
    %v1081 = vmul.f32 %v1077, %v933
    %v1082 = vmul.f32 %v1077, %v934
    %v1083 = vmul.f32 %v1077, %v935
    %v1084 = vmul.f32 %v1077, %v936
    %v1085 = vmul.f32 %v1077, %v937
    %v1094 = vrot.slane %v1078, 1
    %v1095 = vrot.slane %v1079, 1
    %v1096 = vrot.slane %v1080, 1
    %v1097 = vrot.slane %v1081, 1
    %v1098 = vrot.slane %v1082, 1
    %v1099 = vrot.slane %v1083, 1
    %v1100 = vrot.slane %v1084, 1
    %v1101 = vrot.slane %v1085, 1
    %v1110 = vadd.f32 %v984, %v1094
    %v1111 = vadd.f32 %v985, %v1095
    %v1112 = vadd.f32 %v986, %v1096
    %v1113 = vadd.f32 %v987, %v1097
    %v1114 = vadd.f32 %v988, %v1098
    %v1115 = vadd.f32 %v989, %v1099
    %v1116 = vadd.f32 %v990, %v1100
    %v1117 = vadd.f32 %v991, %v1101
    %s1118 = sld [smem:[#allocation2 + $0x3c]]
    %v1119 = vstv %s1118
    %v1120 = vmul.f32 %v1119, %v930
    %v1121 = vmul.f32 %v1119, %v931
    %v1122 = vmul.f32 %v1119, %v932
    %v1123 = vmul.f32 %v1119, %v933
    %v1124 = vmul.f32 %v1119, %v934
    %v1125 = vmul.f32 %v1119, %v935
    %v1126 = vmul.f32 %v1119, %v936
    %v1127 = vmul.f32 %v1119, %v937
    %v1136 = vrot.slane %v1120, 2
    %v1137 = vrot.slane %v1121, 2
    %v1138 = vrot.slane %v1122, 2
    %v1139 = vrot.slane %v1123, 2
    %v1140 = vrot.slane %v1124, 2
    %v1141 = vrot.slane %v1125, 2
    %v1142 = vrot.slane %v1126, 2
    %v1143 = vrot.slane %v1127, 2
    %v1152 = vadd.f32 %v1026, %v1136
    %v1153 = vadd.f32 %v1027, %v1137
    %v1154 = vadd.f32 %v1028, %v1138
    %v1155 = vadd.f32 %v1029, %v1139
    %v1156 = vadd.f32 %v1030, %v1140
    %v1157 = vadd.f32 %v1031, %v1141
    %v1158 = vadd.f32 %v1032, %v1142
    %v1159 = vadd.f32 %v1033, %v1143
    %s1160 = sld [smem:[#allocation2 + $0x45]]
    %v1161 = vstv %s1160
    %v1162 = vmul.f32 %v1161, %v930
    %v1163 = vmul.f32 %v1161, %v931
    %v1164 = vmul.f32 %v1161, %v932
    %v1165 = vmul.f32 %v1161, %v933
    %v1166 = vmul.f32 %v1161, %v934
    %v1167 = vmul.f32 %v1161, %v935
    %v1168 = vmul.f32 %v1161, %v936
    %v1169 = vmul.f32 %v1161, %v937
    %v1178 = vrot.slane %v1162, 2
    %v1179 = vrot.slane %v1163, 2
    %v1180 = vrot.slane %v1164, 2
    %v1181 = vrot.slane %v1165, 2
    %v1182 = vrot.slane %v1166, 2
    %v1183 = vrot.slane %v1167, 2
    %v1184 = vrot.slane %v1168, 2
    %v1185 = vrot.slane %v1169, 2
    %v1194 = vadd.f32 %v1068, %v1178
    %v1195 = vadd.f32 %v1069, %v1179
    %v1196 = vadd.f32 %v1070, %v1180
    %v1197 = vadd.f32 %v1071, %v1181
    %v1198 = vadd.f32 %v1072, %v1182
    %v1199 = vadd.f32 %v1073, %v1183
    %v1200 = vadd.f32 %v1074, %v1184
    %v1201 = vadd.f32 %v1075, %v1185
    %s1202 = sld [smem:[#allocation2 + $0x4e]]
    %v1203 = vstv %s1202
    %v1204 = vmul.f32 %v1203, %v930
    %v1205 = vmul.f32 %v1203, %v931
    %v1206 = vmul.f32 %v1203, %v932
    %v1207 = vmul.f32 %v1203, %v933
    %v1208 = vmul.f32 %v1203, %v934
    %v1209 = vmul.f32 %v1203, %v935
    %v1210 = vmul.f32 %v1203, %v936
    %v1211 = vmul.f32 %v1203, %v937
    %v1220 = vrot.slane %v1204, 2
    %v1221 = vrot.slane %v1205, 2
    %v1222 = vrot.slane %v1206, 2
    %v1223 = vrot.slane %v1207, 2
    %v1224 = vrot.slane %v1208, 2
    %v1225 = vrot.slane %v1209, 2
    %v1226 = vrot.slane %v1210, 2
    %v1227 = vrot.slane %v1211, 2
    %v1236 = vadd.f32 %v1110, %v1220
    %v1237 = vadd.f32 %v1111, %v1221
    %v1238 = vadd.f32 %v1112, %v1222
    %v1239 = vadd.f32 %v1113, %v1223
    %v1240 = vadd.f32 %v1114, %v1224
    %v1241 = vadd.f32 %v1115, %v1225
    %v1242 = vadd.f32 %v1116, %v1226
    %v1243 = vadd.f32 %v1117, %v1227
    %1244 = vst [vmem:[#allocation1] ss:$2 sm:$0xff] %v39
    %s1245 = scalar_lea.vmem [#allocation1], 16
    %1246 = vst [vmem:[%s1245] ss:$2 sm:$0xff] %v40
    %s1247 = scalar_lea.vmem [#allocation1], 32
    %1248 = vst [vmem:[%s1247] ss:$2 sm:$0xff] %v41
    %s1249 = scalar_lea.vmem [#allocation1], 48
    %1250 = vst [vmem:[%s1249] ss:$2 sm:$0xff] %v42
    %v1251 = vld.sshfl [vmem:[#allocation1] sm:$0xff pattern:$0x75316420]
    %v1252 = vld.sshfl [vmem:[#allocation1 + $0x8] sm:$0xff pattern:$0x75316420]
    %v1253 = vld.sshfl [vmem:[#allocation1 + $0x10] sm:$0xff pattern:$0x75316420]
    %v1254 = vld.sshfl [vmem:[#allocation1 + $0x18] sm:$0xff pattern:$0x75316420]
    %v1255 = vld.sshfl [vmem:[#allocation1 + $0x20] sm:$0xff pattern:$0x75316420]
    %v1256 = vld.sshfl [vmem:[#allocation1 + $0x28] sm:$0xff pattern:$0x75316420]
    %v1257 = vld.sshfl [vmem:[#allocation1 + $0x30] sm:$0xff pattern:$0x75316420]
    %v1258 = vld.sshfl [vmem:[#allocation1 + $0x38] sm:$0xff pattern:$0x75316420]
    %1267 = vrot.lane.b32.xlu0 %v1251, 1
    %v1268 = vpop.permute.xlu0 %1267
    %1269 = vrot.lane.b32.xlu0 %v1252, 1
    %v1270 = vpop.permute.xlu0 %1269
    %1271 = vrot.lane.b32.xlu0 %v1253, 1
    %v1272 = vpop.permute.xlu0 %1271
    %1273 = vrot.lane.b32.xlu0 %v1254, 1
    %v1274 = vpop.permute.xlu0 %1273
    %1275 = vrot.lane.b32.xlu0 %v1255, 1
    %v1276 = vpop.permute.xlu0 %1275
    %1277 = vrot.lane.b32.xlu0 %v1256, 1
    %v1278 = vpop.permute.xlu0 %1277
    %1279 = vrot.lane.b32.xlu0 %v1257, 1
    %v1280 = vpop.permute.xlu0 %1279
    %1281 = vrot.lane.b32.xlu0 %v1258, 1
    %v1282 = vpop.permute.xlu0 %1281
    %vm1283 = vcmp.lt.s32.totalorder %v44, 1
    %v1284 = vsel %vm1283, %v1280, %v1282
    %v1285 = vsel %vm1283, %v1278, %v1280
    %v1286 = vsel %vm1283, %v1276, %v1278
    %v1287 = vsel %vm1283, %v1274, %v1276
    %v1288 = vsel %vm1283, %v1272, %v1274
    %v1289 = vsel %vm1283, %v1270, %v1272
    %v1290 = vsel %vm1283, %v1268, %v1270
    %v1291 = vsel %vm1283, %v1282, %v1268
    %v1292 = vsel %vm126, 1, 0
    %v1293 = vsel %vm127, 1, 0
    %v1294 = vsel %vm128, 1, 0
    %v1295 = vsel %vm129, 1, 0
    %v1296 = vsel %vm130, 1, 0
    %v1297 = vsel %vm131, 1, 0
    %v1298 = vsel %vm132, 1, 0
    %v1299 = vsel %vm133, 1, 0
    %vm1300 = vcmp.eq.s32.totalorder %v1292, 1
    %vm1301 = vcmp.eq.s32.totalorder %v1293, 1
    %vm1302 = vcmp.eq.s32.totalorder %v1294, 1
    %vm1303 = vcmp.eq.s32.totalorder %v1295, 1
    %vm1304 = vcmp.eq.s32.totalorder %v1296, 1
    %vm1305 = vcmp.eq.s32.totalorder %v1297, 1
    %vm1306 = vcmp.eq.s32.totalorder %v1298, 1
    %vm1307 = vcmp.eq.s32.totalorder %v1299, 1
    %v1308 = vsel %vm1300, %v1291, 0.0
    %v1309 = vsel %vm1301, %v1290, 0.0
    %v1310 = vsel %vm1302, %v1289, 0.0
    %v1311 = vsel %vm1303, %v1288, 0.0
    %v1312 = vsel %vm1304, %v1287, 0.0
    %v1313 = vsel %vm1305, %v1286, 0.0
    %v1314 = vsel %vm1306, %v1285, 0.0
    %v1315 = vsel %vm1307, %v1284, 0.0
    %s1316 = sld [smem:[#allocation2 + $0x5]]
    %v1317 = vstv %s1316
    %v1318 = vmul.f32 %v1317, %v1308
    %v1319 = vmul.f32 %v1317, %v1309
    %v1320 = vmul.f32 %v1317, %v1310
    %v1321 = vmul.f32 %v1317, %v1311
    %v1322 = vmul.f32 %v1317, %v1312
    %v1323 = vmul.f32 %v1317, %v1313
    %v1324 = vmul.f32 %v1317, %v1314
    %v1325 = vmul.f32 %v1317, %v1315
    %v1326 = vadd.f32 %v1152, %v1318
    %v1327 = vadd.f32 %v1153, %v1319
    %v1328 = vadd.f32 %v1154, %v1320
    %v1329 = vadd.f32 %v1155, %v1321
    %v1330 = vadd.f32 %v1156, %v1322
    %v1331 = vadd.f32 %v1157, %v1323
    %v1332 = vadd.f32 %v1158, %v1324
    %v1333 = vadd.f32 %v1159, %v1325
    %s1334 = sld [smem:[#allocation2 + $0xe]]
    %v1335 = vstv %s1334
    %v1336 = vmul.f32 %v1335, %v1308
    %v1337 = vmul.f32 %v1335, %v1309
    %v1338 = vmul.f32 %v1335, %v1310
    %v1339 = vmul.f32 %v1335, %v1311
    %v1340 = vmul.f32 %v1335, %v1312
    %v1341 = vmul.f32 %v1335, %v1313
    %v1342 = vmul.f32 %v1335, %v1314
    %v1343 = vmul.f32 %v1335, %v1315
    %v1344 = vadd.f32 %v1194, %v1336
    %v1345 = vadd.f32 %v1195, %v1337
    %v1346 = vadd.f32 %v1196, %v1338
    %v1347 = vadd.f32 %v1197, %v1339
    %v1348 = vadd.f32 %v1198, %v1340
    %v1349 = vadd.f32 %v1199, %v1341
    %v1350 = vadd.f32 %v1200, %v1342
    %v1351 = vadd.f32 %v1201, %v1343
    %s1352 = sld [smem:[#allocation2 + $0x17]]
    %v1353 = vstv %s1352
    %v1354 = vmul.f32 %v1353, %v1308
    %v1355 = vmul.f32 %v1353, %v1309
    %v1356 = vmul.f32 %v1353, %v1310
    %v1357 = vmul.f32 %v1353, %v1311
    %v1358 = vmul.f32 %v1353, %v1312
    %v1359 = vmul.f32 %v1353, %v1313
    %v1360 = vmul.f32 %v1353, %v1314
    %v1361 = vmul.f32 %v1353, %v1315
    %v1362 = vadd.f32 %v1236, %v1354
    %v1363 = vadd.f32 %v1237, %v1355
    %v1364 = vadd.f32 %v1238, %v1356
    %v1365 = vadd.f32 %v1239, %v1357
    %v1366 = vadd.f32 %v1240, %v1358
    %v1367 = vadd.f32 %v1241, %v1359
    %v1368 = vadd.f32 %v1242, %v1360
    %v1369 = vadd.f32 %v1243, %v1361
    %s1370 = sld [smem:[#allocation2 + $0x20]]
    %v1371 = vstv %s1370
    %v1372 = vmul.f32 %v1371, %v1308
    %v1373 = vmul.f32 %v1371, %v1309
    %v1374 = vmul.f32 %v1371, %v1310
    %v1375 = vmul.f32 %v1371, %v1311
    %v1376 = vmul.f32 %v1371, %v1312
    %v1377 = vmul.f32 %v1371, %v1313
    %v1378 = vmul.f32 %v1371, %v1314
    %v1379 = vmul.f32 %v1371, %v1315
    %v1388 = vrot.slane %v1372, 1
    %v1389 = vrot.slane %v1373, 1
    %v1390 = vrot.slane %v1374, 1
    %v1391 = vrot.slane %v1375, 1
    %v1392 = vrot.slane %v1376, 1
    %v1393 = vrot.slane %v1377, 1
    %v1394 = vrot.slane %v1378, 1
    %v1395 = vrot.slane %v1379, 1
    %v1404 = vadd.f32 %v1326, %v1388
    %v1405 = vadd.f32 %v1327, %v1389
    %v1406 = vadd.f32 %v1328, %v1390
    %v1407 = vadd.f32 %v1329, %v1391
    %v1408 = vadd.f32 %v1330, %v1392
    %v1409 = vadd.f32 %v1331, %v1393
    %v1410 = vadd.f32 %v1332, %v1394
    %v1411 = vadd.f32 %v1333, %v1395
    %s1412 = sld [smem:[#allocation2 + $0x29]]
    %v1413 = vstv %s1412
    %v1414 = vmul.f32 %v1413, %v1308
    %v1415 = vmul.f32 %v1413, %v1309
    %v1416 = vmul.f32 %v1413, %v1310
    %v1417 = vmul.f32 %v1413, %v1311
    %v1418 = vmul.f32 %v1413, %v1312
    %v1419 = vmul.f32 %v1413, %v1313
    %v1420 = vmul.f32 %v1413, %v1314
    %v1421 = vmul.f32 %v1413, %v1315
    %v1430 = vrot.slane %v1414, 1
    %v1431 = vrot.slane %v1415, 1
    %v1432 = vrot.slane %v1416, 1
    %v1433 = vrot.slane %v1417, 1
    %v1434 = vrot.slane %v1418, 1
    %v1435 = vrot.slane %v1419, 1
    %v1436 = vrot.slane %v1420, 1
    %v1437 = vrot.slane %v1421, 1
    %v1446 = vadd.f32 %v1344, %v1430
    %v1447 = vadd.f32 %v1345, %v1431
    %v1448 = vadd.f32 %v1346, %v1432
    %v1449 = vadd.f32 %v1347, %v1433
    %v1450 = vadd.f32 %v1348, %v1434
    %v1451 = vadd.f32 %v1349, %v1435
    %v1452 = vadd.f32 %v1350, %v1436
    %v1453 = vadd.f32 %v1351, %v1437
    %s1454 = sld [smem:[#allocation2 + $0x32]]
    %v1455 = vstv %s1454
    %v1456 = vmul.f32 %v1455, %v1308
    %v1457 = vmul.f32 %v1455, %v1309
    %v1458 = vmul.f32 %v1455, %v1310
    %v1459 = vmul.f32 %v1455, %v1311
    %v1460 = vmul.f32 %v1455, %v1312
    %v1461 = vmul.f32 %v1455, %v1313
    %v1462 = vmul.f32 %v1455, %v1314
    %v1463 = vmul.f32 %v1455, %v1315
    %v1472 = vrot.slane %v1456, 1
    %v1473 = vrot.slane %v1457, 1
    %v1474 = vrot.slane %v1458, 1
    %v1475 = vrot.slane %v1459, 1
    %v1476 = vrot.slane %v1460, 1
    %v1477 = vrot.slane %v1461, 1
    %v1478 = vrot.slane %v1462, 1
    %v1479 = vrot.slane %v1463, 1
    %v1488 = vadd.f32 %v1362, %v1472
    %v1489 = vadd.f32 %v1363, %v1473
    %v1490 = vadd.f32 %v1364, %v1474
    %v1491 = vadd.f32 %v1365, %v1475
    %v1492 = vadd.f32 %v1366, %v1476
    %v1493 = vadd.f32 %v1367, %v1477
    %v1494 = vadd.f32 %v1368, %v1478
    %v1495 = vadd.f32 %v1369, %v1479
    %s1496 = sld [smem:[#allocation2 + $0x3b]]
    %v1497 = vstv %s1496
    %v1498 = vmul.f32 %v1497, %v1308
    %v1499 = vmul.f32 %v1497, %v1309
    %v1500 = vmul.f32 %v1497, %v1310
    %v1501 = vmul.f32 %v1497, %v1311
    %v1502 = vmul.f32 %v1497, %v1312
    %v1503 = vmul.f32 %v1497, %v1313
    %v1504 = vmul.f32 %v1497, %v1314
    %v1505 = vmul.f32 %v1497, %v1315
    %v1514 = vrot.slane %v1498, 2
    %v1515 = vrot.slane %v1499, 2
    %v1516 = vrot.slane %v1500, 2
    %v1517 = vrot.slane %v1501, 2
    %v1518 = vrot.slane %v1502, 2
    %v1519 = vrot.slane %v1503, 2
    %v1520 = vrot.slane %v1504, 2
    %v1521 = vrot.slane %v1505, 2
    %v1530 = vadd.f32 %v1404, %v1514
    %v1531 = vadd.f32 %v1405, %v1515
    %v1532 = vadd.f32 %v1406, %v1516
    %v1533 = vadd.f32 %v1407, %v1517
    %v1534 = vadd.f32 %v1408, %v1518
    %v1535 = vadd.f32 %v1409, %v1519
    %v1536 = vadd.f32 %v1410, %v1520
    %v1537 = vadd.f32 %v1411, %v1521
    %s1538 = sld [smem:[#allocation2 + $0x44]]
    %v1539 = vstv %s1538
    %v1540 = vmul.f32 %v1539, %v1308
    %v1541 = vmul.f32 %v1539, %v1309
    %v1542 = vmul.f32 %v1539, %v1310
    %v1543 = vmul.f32 %v1539, %v1311
    %v1544 = vmul.f32 %v1539, %v1312
    %v1545 = vmul.f32 %v1539, %v1313
    %v1546 = vmul.f32 %v1539, %v1314
    %v1547 = vmul.f32 %v1539, %v1315
    %v1556 = vrot.slane %v1540, 2
    %v1557 = vrot.slane %v1541, 2
    %v1558 = vrot.slane %v1542, 2
    %v1559 = vrot.slane %v1543, 2
    %v1560 = vrot.slane %v1544, 2
    %v1561 = vrot.slane %v1545, 2
    %v1562 = vrot.slane %v1546, 2
    %v1563 = vrot.slane %v1547, 2
    %v1572 = vadd.f32 %v1446, %v1556
    %v1573 = vadd.f32 %v1447, %v1557
    %v1574 = vadd.f32 %v1448, %v1558
    %v1575 = vadd.f32 %v1449, %v1559
    %v1576 = vadd.f32 %v1450, %v1560
    %v1577 = vadd.f32 %v1451, %v1561
    %v1578 = vadd.f32 %v1452, %v1562
    %v1579 = vadd.f32 %v1453, %v1563
    %s1580 = sld [smem:[#allocation2 + $0x4d]]
    %v1581 = vstv %s1580
    %v1582 = vmul.f32 %v1581, %v1308
    %v1583 = vmul.f32 %v1581, %v1309
    %v1584 = vmul.f32 %v1581, %v1310
    %v1585 = vmul.f32 %v1581, %v1311
    %v1586 = vmul.f32 %v1581, %v1312
    %v1587 = vmul.f32 %v1581, %v1313
    %v1588 = vmul.f32 %v1581, %v1314
    %v1589 = vmul.f32 %v1581, %v1315
    %v1598 = vrot.slane %v1582, 2
    %v1599 = vrot.slane %v1583, 2
    %v1600 = vrot.slane %v1584, 2
    %v1601 = vrot.slane %v1585, 2
    %v1602 = vrot.slane %v1586, 2
    %v1603 = vrot.slane %v1587, 2
    %v1604 = vrot.slane %v1588, 2
    %v1605 = vrot.slane %v1589, 2
    %v1614 = vadd.f32 %v1488, %v1598
    %v1615 = vadd.f32 %v1489, %v1599
    %v1616 = vadd.f32 %v1490, %v1600
    %v1617 = vadd.f32 %v1491, %v1601
    %v1618 = vadd.f32 %v1492, %v1602
    %v1619 = vadd.f32 %v1493, %v1603
    %v1620 = vadd.f32 %v1494, %v1604
    %v1621 = vadd.f32 %v1495, %v1605
    %s1622 = sld [smem:[#allocation2 + $0x4]]
    %v1623 = vstv %s1622
    %v1624 = vmul.f32 %v1623, %v39
    %v1625 = vmul.f32 %v1623, %v40
    %v1626 = vmul.f32 %v1623, %v41
    %v1627 = vmul.f32 %v1623, %v42
    %v1632 = vperm.slane %v1624, 0
    %v1633 = vperm.slane %v1624, 4
    %v1634 = vperm.slane %v1625, 0
    %v1635 = vperm.slane %v1625, 4
    %v1636 = vperm.slane %v1626, 0
    %v1637 = vperm.slane %v1626, 4
    %v1638 = vperm.slane %v1627, 0
    %v1639 = vperm.slane %v1627, 4
    %v1648 = vadd.f32 %v1530, %v1632
    %v1649 = vadd.f32 %v1531, %v1633
    %v1650 = vadd.f32 %v1532, %v1634
    %v1651 = vadd.f32 %v1533, %v1635
    %v1652 = vadd.f32 %v1534, %v1636
    %v1653 = vadd.f32 %v1535, %v1637
    %v1654 = vadd.f32 %v1536, %v1638
    %v1655 = vadd.f32 %v1537, %v1639
    %s1656 = sld [smem:[#allocation2 + $0xd]]
    %v1657 = vstv %s1656
    %v1658 = vmul.f32 %v1657, %v39
    %v1659 = vmul.f32 %v1657, %v40
    %v1660 = vmul.f32 %v1657, %v41
    %v1661 = vmul.f32 %v1657, %v42
    %v1666 = vperm.slane %v1658, 0
    %v1667 = vperm.slane %v1658, 4
    %v1668 = vperm.slane %v1659, 0
    %v1669 = vperm.slane %v1659, 4
    %v1670 = vperm.slane %v1660, 0
    %v1671 = vperm.slane %v1660, 4
    %v1672 = vperm.slane %v1661, 0
    %v1673 = vperm.slane %v1661, 4
    %v1682 = vadd.f32 %v1572, %v1666
    %v1683 = vadd.f32 %v1573, %v1667
    %v1684 = vadd.f32 %v1574, %v1668
    %v1685 = vadd.f32 %v1575, %v1669
    %v1686 = vadd.f32 %v1576, %v1670
    %v1687 = vadd.f32 %v1577, %v1671
    %v1688 = vadd.f32 %v1578, %v1672
    %v1689 = vadd.f32 %v1579, %v1673
    %s1690 = sld [smem:[#allocation2 + $0x16]]
    %v1691 = vstv %s1690
    %v1692 = vmul.f32 %v1691, %v39
    %v1693 = vmul.f32 %v1691, %v40
    %v1694 = vmul.f32 %v1691, %v41
    %v1695 = vmul.f32 %v1691, %v42
    %v1700 = vperm.slane %v1692, 0
    %v1701 = vperm.slane %v1692, 4
    %v1702 = vperm.slane %v1693, 0
    %v1703 = vperm.slane %v1693, 4
    %v1704 = vperm.slane %v1694, 0
    %v1705 = vperm.slane %v1694, 4
    %v1706 = vperm.slane %v1695, 0
    %v1707 = vperm.slane %v1695, 4
    %v1716 = vadd.f32 %v1614, %v1700
    %v1717 = vadd.f32 %v1615, %v1701
    %v1718 = vadd.f32 %v1616, %v1702
    %v1719 = vadd.f32 %v1617, %v1703
    %v1720 = vadd.f32 %v1618, %v1704
    %v1721 = vadd.f32 %v1619, %v1705
    %v1722 = vadd.f32 %v1620, %v1706
    %v1723 = vadd.f32 %v1621, %v1707
    %s1724 = sld [smem:[#allocation2 + $0x1f]]
    %v1725 = vstv %s1724
    %v1726 = vmul.f32 %v1725, %v39
    %v1727 = vmul.f32 %v1725, %v40
    %v1728 = vmul.f32 %v1725, %v41
    %v1729 = vmul.f32 %v1725, %v42
    %v1734 = vperm.slane %v1726, 1
    %v1735 = vperm.slane %v1726, 5
    %v1736 = vperm.slane %v1727, 1
    %v1737 = vperm.slane %v1727, 5
    %v1738 = vperm.slane %v1728, 1
    %v1739 = vperm.slane %v1728, 5
    %v1740 = vperm.slane %v1729, 1
    %v1741 = vperm.slane %v1729, 5
    %v1750 = vadd.f32 %v1648, %v1734
    %v1751 = vadd.f32 %v1649, %v1735
    %v1752 = vadd.f32 %v1650, %v1736
    %v1753 = vadd.f32 %v1651, %v1737
    %v1754 = vadd.f32 %v1652, %v1738
    %v1755 = vadd.f32 %v1653, %v1739
    %v1756 = vadd.f32 %v1654, %v1740
    %v1757 = vadd.f32 %v1655, %v1741
    %s1758 = sld [smem:[#allocation2 + $0x28]]
    %v1759 = vstv %s1758
    %v1760 = vmul.f32 %v1759, %v39
    %v1761 = vmul.f32 %v1759, %v40
    %v1762 = vmul.f32 %v1759, %v41
    %v1763 = vmul.f32 %v1759, %v42
    %v1768 = vperm.slane %v1760, 1
    %v1769 = vperm.slane %v1760, 5
    %v1770 = vperm.slane %v1761, 1
    %v1771 = vperm.slane %v1761, 5
    %v1772 = vperm.slane %v1762, 1
    %v1773 = vperm.slane %v1762, 5
    %v1774 = vperm.slane %v1763, 1
    %v1775 = vperm.slane %v1763, 5
    %v1784 = vadd.f32 %v1682, %v1768
    %v1785 = vadd.f32 %v1683, %v1769
    %v1786 = vadd.f32 %v1684, %v1770
    %v1787 = vadd.f32 %v1685, %v1771
    %v1788 = vadd.f32 %v1686, %v1772
    %v1789 = vadd.f32 %v1687, %v1773
    %v1790 = vadd.f32 %v1688, %v1774
    %v1791 = vadd.f32 %v1689, %v1775
    %s1792 = sld [smem:[#allocation2 + $0x31]]
    %v1793 = vstv %s1792
    %v1794 = vmul.f32 %v1793, %v39
    %v1795 = vmul.f32 %v1793, %v40
    %v1796 = vmul.f32 %v1793, %v41
    %v1797 = vmul.f32 %v1793, %v42
    %v1802 = vperm.slane %v1794, 1
    %v1803 = vperm.slane %v1794, 5
    %v1804 = vperm.slane %v1795, 1
    %v1805 = vperm.slane %v1795, 5
    %v1806 = vperm.slane %v1796, 1
    %v1807 = vperm.slane %v1796, 5
    %v1808 = vperm.slane %v1797, 1
    %v1809 = vperm.slane %v1797, 5
    %v1818 = vadd.f32 %v1716, %v1802
    %v1819 = vadd.f32 %v1717, %v1803
    %v1820 = vadd.f32 %v1718, %v1804
    %v1821 = vadd.f32 %v1719, %v1805
    %v1822 = vadd.f32 %v1720, %v1806
    %v1823 = vadd.f32 %v1721, %v1807
    %v1824 = vadd.f32 %v1722, %v1808
    %v1825 = vadd.f32 %v1723, %v1809
    %s1826 = sld [smem:[#allocation2 + $0x3a]]
    %v1827 = vstv %s1826
    %v1828 = vmul.f32 %v1827, %v39
    %v1829 = vmul.f32 %v1827, %v40
    %v1830 = vmul.f32 %v1827, %v41
    %v1831 = vmul.f32 %v1827, %v42
    %v1836 = vperm.slane %v1828, 2
    %v1837 = vperm.slane %v1828, 6
    %v1838 = vperm.slane %v1829, 2
    %v1839 = vperm.slane %v1829, 6
    %v1840 = vperm.slane %v1830, 2
    %v1841 = vperm.slane %v1830, 6
    %v1842 = vperm.slane %v1831, 2
    %v1843 = vperm.slane %v1831, 6
    %v1852 = vadd.f32 %v1750, %v1836
    %v1853 = vadd.f32 %v1751, %v1837
    %v1854 = vadd.f32 %v1752, %v1838
    %v1855 = vadd.f32 %v1753, %v1839
    %v1856 = vadd.f32 %v1754, %v1840
    %v1857 = vadd.f32 %v1755, %v1841
    %v1858 = vadd.f32 %v1756, %v1842
    %v1859 = vadd.f32 %v1757, %v1843
    %s1860 = sld [smem:[#allocation2 + $0x43]]
    %v1861 = vstv %s1860
    %v1862 = vmul.f32 %v1861, %v39
    %v1863 = vmul.f32 %v1861, %v40
    %v1864 = vmul.f32 %v1861, %v41
    %v1865 = vmul.f32 %v1861, %v42
    %v1870 = vperm.slane %v1862, 2
    %v1871 = vperm.slane %v1862, 6
    %v1872 = vperm.slane %v1863, 2
    %v1873 = vperm.slane %v1863, 6
    %v1874 = vperm.slane %v1864, 2
    %v1875 = vperm.slane %v1864, 6
    %v1876 = vperm.slane %v1865, 2
    %v1877 = vperm.slane %v1865, 6
    %v1886 = vadd.f32 %v1784, %v1870
    %v1887 = vadd.f32 %v1785, %v1871
    %v1888 = vadd.f32 %v1786, %v1872
    %v1889 = vadd.f32 %v1787, %v1873
    %v1890 = vadd.f32 %v1788, %v1874
    %v1891 = vadd.f32 %v1789, %v1875
    %v1892 = vadd.f32 %v1790, %v1876
    %v1893 = vadd.f32 %v1791, %v1877
    %s1894 = sld [smem:[#allocation2 + $0x4c]]
    %v1895 = vstv %s1894
    %v1896 = vmul.f32 %v1895, %v39
    %v1897 = vmul.f32 %v1895, %v40
    %v1898 = vmul.f32 %v1895, %v41
    %v1899 = vmul.f32 %v1895, %v42
    %v1904 = vperm.slane %v1896, 2
    %v1905 = vperm.slane %v1896, 6
    %v1906 = vperm.slane %v1897, 2
    %v1907 = vperm.slane %v1897, 6
    %v1908 = vperm.slane %v1898, 2
    %v1909 = vperm.slane %v1898, 6
    %v1910 = vperm.slane %v1899, 2
    %v1911 = vperm.slane %v1899, 6
    %v1920 = vadd.f32 %v1818, %v1904
    %v1921 = vadd.f32 %v1819, %v1905
    %v1922 = vadd.f32 %v1820, %v1906
    %v1923 = vadd.f32 %v1821, %v1907
    %v1924 = vadd.f32 %v1822, %v1908
    %v1925 = vadd.f32 %v1823, %v1909
    %v1926 = vadd.f32 %v1824, %v1910
    %v1927 = vadd.f32 %v1825, %v1911
    %1928 = vst [vmem:[#allocation1] ss:$2 sm:$0xff] %v39
    %s1929 = scalar_lea.vmem [#allocation1], 16
    %1930 = vst [vmem:[%s1929] ss:$2 sm:$0xff] %v40
    %s1931 = scalar_lea.vmem [#allocation1], 32
    %1932 = vst [vmem:[%s1931] ss:$2 sm:$0xff] %v41
    %s1933 = scalar_lea.vmem [#allocation1], 48
    %1934 = vst [vmem:[%s1933] ss:$2 sm:$0xff] %v42
    %v1935 = vld.sshfl [vmem:[#allocation1] sm:$0xff pattern:$0x75316420]
    %v1936 = vld.sshfl [vmem:[#allocation1 + $0x8] sm:$0xff pattern:$0x75316420]
    %v1937 = vld.sshfl [vmem:[#allocation1 + $0x10] sm:$0xff pattern:$0x75316420]
    %v1938 = vld.sshfl [vmem:[#allocation1 + $0x18] sm:$0xff pattern:$0x75316420]
    %v1939 = vld.sshfl [vmem:[#allocation1 + $0x20] sm:$0xff pattern:$0x75316420]
    %v1940 = vld.sshfl [vmem:[#allocation1 + $0x28] sm:$0xff pattern:$0x75316420]
    %v1941 = vld.sshfl [vmem:[#allocation1 + $0x30] sm:$0xff pattern:$0x75316420]
    %v1942 = vld.sshfl [vmem:[#allocation1 + $0x38] sm:$0xff pattern:$0x75316420]
    %1951 = vrot.lane.b32.xlu0 %v1935, 127
    %v1952 = vpop.permute.xlu0 %1951
    %1953 = vrot.lane.b32.xlu0 %v1936, 127
    %v1954 = vpop.permute.xlu0 %1953
    %1955 = vrot.lane.b32.xlu0 %v1937, 127
    %v1956 = vpop.permute.xlu0 %1955
    %1957 = vrot.lane.b32.xlu0 %v1938, 127
    %v1958 = vpop.permute.xlu0 %1957
    %1959 = vrot.lane.b32.xlu0 %v1939, 127
    %v1960 = vpop.permute.xlu0 %1959
    %1961 = vrot.lane.b32.xlu0 %v1940, 127
    %v1962 = vpop.permute.xlu0 %1961
    %1963 = vrot.lane.b32.xlu0 %v1941, 127
    %v1964 = vpop.permute.xlu0 %1963
    %1965 = vrot.lane.b32.xlu0 %v1942, 127
    %v1966 = vpop.permute.xlu0 %1965
    %vm1967 = vcmp.lt.s32.totalorder %v44, 127
    %v1968 = vsel %vm1967, %v1964, %v1966
    %v1969 = vsel %vm1967, %v1962, %v1964
    %v1970 = vsel %vm1967, %v1960, %v1962
    %v1971 = vsel %vm1967, %v1958, %v1960
    %v1972 = vsel %vm1967, %v1956, %v1958
    %v1973 = vsel %vm1967, %v1954, %v1956
    %v1974 = vsel %vm1967, %v1952, %v1954
    %v1975 = vsel %vm1967, %v1966, %v1952
    %v1976 = vsel %vm898, 1, 0
    %v1977 = vsel %vm899, 1, 0
    %v1978 = vsel %vm900, 1, 0
    %v1979 = vsel %vm901, 1, 0
    %v1980 = vsel %vm902, 1, 0
    %v1981 = vsel %vm903, 1, 0
    %v1982 = vsel %vm904, 1, 0
    %v1983 = vsel %vm905, 1, 0
    %vm1984 = vcmp.eq.s32.totalorder %v1976, 1
    %vm1985 = vcmp.eq.s32.totalorder %v1977, 1
    %vm1986 = vcmp.eq.s32.totalorder %v1978, 1
    %vm1987 = vcmp.eq.s32.totalorder %v1979, 1
    %vm1988 = vcmp.eq.s32.totalorder %v1980, 1
    %vm1989 = vcmp.eq.s32.totalorder %v1981, 1
    %vm1990 = vcmp.eq.s32.totalorder %v1982, 1
    %vm1991 = vcmp.eq.s32.totalorder %v1983, 1
    %v1992 = vsel %vm1984, %v1974, 0.0
    %v1993 = vsel %vm1985, %v1973, 0.0
    %v1994 = vsel %vm1986, %v1972, 0.0
    %v1995 = vsel %vm1987, %v1971, 0.0
    %v1996 = vsel %vm1988, %v1970, 0.0
    %v1997 = vsel %vm1989, %v1969, 0.0
    %v1998 = vsel %vm1990, %v1968, 0.0
    %v1999 = vsel %vm1991, %v1975, 0.0
    %s2000 = sld [smem:[#allocation2 + $0x3]]
    %v2001 = vstv %s2000
    %v2002 = vmul.f32 %v2001, %v1992
    %v2003 = vmul.f32 %v2001, %v1993
    %v2004 = vmul.f32 %v2001, %v1994
    %v2005 = vmul.f32 %v2001, %v1995
    %v2006 = vmul.f32 %v2001, %v1996
    %v2007 = vmul.f32 %v2001, %v1997
    %v2008 = vmul.f32 %v2001, %v1998
    %v2009 = vmul.f32 %v2001, %v1999
    %v2010 = vadd.f32 %v1852, %v2002
    %v2011 = vadd.f32 %v1853, %v2003
    %v2012 = vadd.f32 %v1854, %v2004
    %v2013 = vadd.f32 %v1855, %v2005
    %v2014 = vadd.f32 %v1856, %v2006
    %v2015 = vadd.f32 %v1857, %v2007
    %v2016 = vadd.f32 %v1858, %v2008
    %v2017 = vadd.f32 %v1859, %v2009
    %s2018 = sld [smem:[#allocation2 + $0xc]]
    %v2019 = vstv %s2018
    %v2020 = vmul.f32 %v2019, %v1992
    %v2021 = vmul.f32 %v2019, %v1993
    %v2022 = vmul.f32 %v2019, %v1994
    %v2023 = vmul.f32 %v2019, %v1995
    %v2024 = vmul.f32 %v2019, %v1996
    %v2025 = vmul.f32 %v2019, %v1997
    %v2026 = vmul.f32 %v2019, %v1998
    %v2027 = vmul.f32 %v2019, %v1999
    %v2028 = vadd.f32 %v1886, %v2020
    %v2029 = vadd.f32 %v1887, %v2021
    %v2030 = vadd.f32 %v1888, %v2022
    %v2031 = vadd.f32 %v1889, %v2023
    %v2032 = vadd.f32 %v1890, %v2024
    %v2033 = vadd.f32 %v1891, %v2025
    %v2034 = vadd.f32 %v1892, %v2026
    %v2035 = vadd.f32 %v1893, %v2027
    %s2036 = sld [smem:[#allocation2 + $0x15]]
    %v2037 = vstv %s2036
    %v2038 = vmul.f32 %v2037, %v1992
    %v2039 = vmul.f32 %v2037, %v1993
    %v2040 = vmul.f32 %v2037, %v1994
    %v2041 = vmul.f32 %v2037, %v1995
    %v2042 = vmul.f32 %v2037, %v1996
    %v2043 = vmul.f32 %v2037, %v1997
    %v2044 = vmul.f32 %v2037, %v1998
    %v2045 = vmul.f32 %v2037, %v1999
    %v2046 = vadd.f32 %v1920, %v2038
    %v2047 = vadd.f32 %v1921, %v2039
    %v2048 = vadd.f32 %v1922, %v2040
    %v2049 = vadd.f32 %v1923, %v2041
    %v2050 = vadd.f32 %v1924, %v2042
    %v2051 = vadd.f32 %v1925, %v2043
    %v2052 = vadd.f32 %v1926, %v2044
    %v2053 = vadd.f32 %v1927, %v2045
    %s2054 = sld [smem:[#allocation2 + $0x1e]]
    %v2055 = vstv %s2054
    %v2056 = vmul.f32 %v2055, %v1992
    %v2057 = vmul.f32 %v2055, %v1993
    %v2058 = vmul.f32 %v2055, %v1994
    %v2059 = vmul.f32 %v2055, %v1995
    %v2060 = vmul.f32 %v2055, %v1996
    %v2061 = vmul.f32 %v2055, %v1997
    %v2062 = vmul.f32 %v2055, %v1998
    %v2063 = vmul.f32 %v2055, %v1999
    %v2072 = vrot.slane %v2056, 1
    %v2073 = vrot.slane %v2057, 1
    %v2074 = vrot.slane %v2058, 1
    %v2075 = vrot.slane %v2059, 1
    %v2076 = vrot.slane %v2060, 1
    %v2077 = vrot.slane %v2061, 1
    %v2078 = vrot.slane %v2062, 1
    %v2079 = vrot.slane %v2063, 1
    %v2088 = vadd.f32 %v2010, %v2072
    %v2089 = vadd.f32 %v2011, %v2073
    %v2090 = vadd.f32 %v2012, %v2074
    %v2091 = vadd.f32 %v2013, %v2075
    %v2092 = vadd.f32 %v2014, %v2076
    %v2093 = vadd.f32 %v2015, %v2077
    %v2094 = vadd.f32 %v2016, %v2078
    %v2095 = vadd.f32 %v2017, %v2079
    %s2096 = sld [smem:[#allocation2 + $0x27]]
    %v2097 = vstv %s2096
    %v2098 = vmul.f32 %v2097, %v1992
    %v2099 = vmul.f32 %v2097, %v1993
    %v2100 = vmul.f32 %v2097, %v1994
    %v2101 = vmul.f32 %v2097, %v1995
    %v2102 = vmul.f32 %v2097, %v1996
    %v2103 = vmul.f32 %v2097, %v1997
    %v2104 = vmul.f32 %v2097, %v1998
    %v2105 = vmul.f32 %v2097, %v1999
    %v2114 = vrot.slane %v2098, 1
    %v2115 = vrot.slane %v2099, 1
    %v2116 = vrot.slane %v2100, 1
    %v2117 = vrot.slane %v2101, 1
    %v2118 = vrot.slane %v2102, 1
    %v2119 = vrot.slane %v2103, 1
    %v2120 = vrot.slane %v2104, 1
    %v2121 = vrot.slane %v2105, 1
    %v2130 = vadd.f32 %v2028, %v2114
    %v2131 = vadd.f32 %v2029, %v2115
    %v2132 = vadd.f32 %v2030, %v2116
    %v2133 = vadd.f32 %v2031, %v2117
    %v2134 = vadd.f32 %v2032, %v2118
    %v2135 = vadd.f32 %v2033, %v2119
    %v2136 = vadd.f32 %v2034, %v2120
    %v2137 = vadd.f32 %v2035, %v2121
    %s2138 = sld [smem:[#allocation2 + $0x30]]
    %v2139 = vstv %s2138
    %v2140 = vmul.f32 %v2139, %v1992
    %v2141 = vmul.f32 %v2139, %v1993
    %v2142 = vmul.f32 %v2139, %v1994
    %v2143 = vmul.f32 %v2139, %v1995
    %v2144 = vmul.f32 %v2139, %v1996
    %v2145 = vmul.f32 %v2139, %v1997
    %v2146 = vmul.f32 %v2139, %v1998
    %v2147 = vmul.f32 %v2139, %v1999
    %v2156 = vrot.slane %v2140, 1
    %v2157 = vrot.slane %v2141, 1
    %v2158 = vrot.slane %v2142, 1
    %v2159 = vrot.slane %v2143, 1
    %v2160 = vrot.slane %v2144, 1
    %v2161 = vrot.slane %v2145, 1
    %v2162 = vrot.slane %v2146, 1
    %v2163 = vrot.slane %v2147, 1
    %v2172 = vadd.f32 %v2046, %v2156
    %v2173 = vadd.f32 %v2047, %v2157
    %v2174 = vadd.f32 %v2048, %v2158
    %v2175 = vadd.f32 %v2049, %v2159
    %v2176 = vadd.f32 %v2050, %v2160
    %v2177 = vadd.f32 %v2051, %v2161
    %v2178 = vadd.f32 %v2052, %v2162
    %v2179 = vadd.f32 %v2053, %v2163
    %s2180 = sld [smem:[#allocation2 + $0x39]]
    %v2181 = vstv %s2180
    %v2182 = vmul.f32 %v2181, %v1992
    %v2183 = vmul.f32 %v2181, %v1993
    %v2184 = vmul.f32 %v2181, %v1994
    %v2185 = vmul.f32 %v2181, %v1995
    %v2186 = vmul.f32 %v2181, %v1996
    %v2187 = vmul.f32 %v2181, %v1997
    %v2188 = vmul.f32 %v2181, %v1998
    %v2189 = vmul.f32 %v2181, %v1999
    %v2198 = vrot.slane %v2182, 2
    %v2199 = vrot.slane %v2183, 2
    %v2200 = vrot.slane %v2184, 2
    %v2201 = vrot.slane %v2185, 2
    %v2202 = vrot.slane %v2186, 2
    %v2203 = vrot.slane %v2187, 2
    %v2204 = vrot.slane %v2188, 2
    %v2205 = vrot.slane %v2189, 2
    %v2214 = vadd.f32 %v2088, %v2198
    %v2215 = vadd.f32 %v2089, %v2199
    %v2216 = vadd.f32 %v2090, %v2200
    %v2217 = vadd.f32 %v2091, %v2201
    %v2218 = vadd.f32 %v2092, %v2202
    %v2219 = vadd.f32 %v2093, %v2203
    %v2220 = vadd.f32 %v2094, %v2204
    %v2221 = vadd.f32 %v2095, %v2205
    %s2222 = sld [smem:[#allocation2 + $0x42]]
    %v2223 = vstv %s2222
    %v2224 = vmul.f32 %v2223, %v1992
    %v2225 = vmul.f32 %v2223, %v1993
    %v2226 = vmul.f32 %v2223, %v1994
    %v2227 = vmul.f32 %v2223, %v1995
    %v2228 = vmul.f32 %v2223, %v1996
    %v2229 = vmul.f32 %v2223, %v1997
    %v2230 = vmul.f32 %v2223, %v1998
    %v2231 = vmul.f32 %v2223, %v1999
    %v2240 = vrot.slane %v2224, 2
    %v2241 = vrot.slane %v2225, 2
    %v2242 = vrot.slane %v2226, 2
    %v2243 = vrot.slane %v2227, 2
    %v2244 = vrot.slane %v2228, 2
    %v2245 = vrot.slane %v2229, 2
    %v2246 = vrot.slane %v2230, 2
    %v2247 = vrot.slane %v2231, 2
    %v2256 = vadd.f32 %v2130, %v2240
    %v2257 = vadd.f32 %v2131, %v2241
    %v2258 = vadd.f32 %v2132, %v2242
    %v2259 = vadd.f32 %v2133, %v2243
    %v2260 = vadd.f32 %v2134, %v2244
    %v2261 = vadd.f32 %v2135, %v2245
    %v2262 = vadd.f32 %v2136, %v2246
    %v2263 = vadd.f32 %v2137, %v2247
    %s2264 = sld [smem:[#allocation2 + $0x4b]]
    %v2265 = vstv %s2264
    %v2266 = vmul.f32 %v2265, %v1992
    %v2267 = vmul.f32 %v2265, %v1993
    %v2268 = vmul.f32 %v2265, %v1994
    %v2269 = vmul.f32 %v2265, %v1995
    %v2270 = vmul.f32 %v2265, %v1996
    %v2271 = vmul.f32 %v2265, %v1997
    %v2272 = vmul.f32 %v2265, %v1998
    %v2273 = vmul.f32 %v2265, %v1999
    %v2282 = vrot.slane %v2266, 2
    %v2283 = vrot.slane %v2267, 2
    %v2284 = vrot.slane %v2268, 2
    %v2285 = vrot.slane %v2269, 2
    %v2286 = vrot.slane %v2270, 2
    %v2287 = vrot.slane %v2271, 2
    %v2288 = vrot.slane %v2272, 2
    %v2289 = vrot.slane %v2273, 2
    %v2298 = vadd.f32 %v2172, %v2282
    %v2299 = vadd.f32 %v2173, %v2283
    %v2300 = vadd.f32 %v2174, %v2284
    %v2301 = vadd.f32 %v2175, %v2285
    %v2302 = vadd.f32 %v2176, %v2286
    %v2303 = vadd.f32 %v2177, %v2287
    %v2304 = vadd.f32 %v2178, %v2288
    %v2305 = vadd.f32 %v2179, %v2289
    %2306 = vst [vmem:[#allocation1] ss:$2 sm:$0xff] %v39
    %s2307 = scalar_lea.vmem [#allocation1], 16
    %2308 = vst [vmem:[%s2307] ss:$2 sm:$0xff] %v40
    %s2309 = scalar_lea.vmem [#allocation1], 32
    %2310 = vst [vmem:[%s2309] ss:$2 sm:$0xff] %v41
    %s2311 = scalar_lea.vmem [#allocation1], 48
    %2312 = vst [vmem:[%s2311] ss:$2 sm:$0xff] %v42
    %v2313 = vld.sshfl [vmem:[#allocation1] sm:$0xff pattern:$0x75316420]
    %v2314 = vld.sshfl [vmem:[#allocation1 + $0x8] sm:$0xff pattern:$0x75316420]
    %v2315 = vld.sshfl [vmem:[#allocation1 + $0x10] sm:$0xff pattern:$0x75316420]
    %v2316 = vld.sshfl [vmem:[#allocation1 + $0x18] sm:$0xff pattern:$0x75316420]
    %v2317 = vld.sshfl [vmem:[#allocation1 + $0x20] sm:$0xff pattern:$0x75316420]
    %v2318 = vld.sshfl [vmem:[#allocation1 + $0x28] sm:$0xff pattern:$0x75316420]
    %v2319 = vld.sshfl [vmem:[#allocation1 + $0x30] sm:$0xff pattern:$0x75316420]
    %v2320 = vld.sshfl [vmem:[#allocation1 + $0x38] sm:$0xff pattern:$0x75316420]
    %2329 = vrot.lane.b32.xlu0 %v2313, 97
    %v2330 = vpop.permute.xlu0 %2329
    %2331 = vrot.lane.b32.xlu0 %v2314, 97
    %v2332 = vpop.permute.xlu0 %2331
    %2333 = vrot.lane.b32.xlu0 %v2315, 97
    %v2334 = vpop.permute.xlu0 %2333
    %2335 = vrot.lane.b32.xlu0 %v2316, 97
    %v2336 = vpop.permute.xlu0 %2335
    %2337 = vrot.lane.b32.xlu0 %v2317, 97
    %v2338 = vpop.permute.xlu0 %2337
    %2339 = vrot.lane.b32.xlu0 %v2318, 97
    %v2340 = vpop.permute.xlu0 %2339
    %2341 = vrot.lane.b32.xlu0 %v2319, 97
    %v2342 = vpop.permute.xlu0 %2341
    %2343 = vrot.lane.b32.xlu0 %v2320, 97
    %v2344 = vpop.permute.xlu0 %2343
    %vm2345 = vcmp.lt.s32.totalorder %v44, 97
    %v2346 = vsel %vm2345, %v2342, %v2344
    %v2347 = vsel %vm2345, %v2340, %v2342
    %v2348 = vsel %vm2345, %v2338, %v2340
    %v2349 = vsel %vm2345, %v2336, %v2338
    %v2350 = vsel %vm2345, %v2334, %v2336
    %v2351 = vsel %vm2345, %v2332, %v2334
    %v2352 = vsel %vm2345, %v2330, %v2332
    %v2353 = vsel %vm2345, %v2344, %v2330
    %vm2354 = vcmp.lt.s32.totalorder %v44, 992
    %vm2355 = vcmp.lt.s32.totalorder %v45, 992
    %vm2356 = vcmp.lt.s32.totalorder %v46, 992
    %vm2357 = vcmp.lt.s32.totalorder %v47, 992
    %vm2358 = vcmp.lt.s32.totalorder %v48, 992
    %vm2359 = vcmp.lt.s32.totalorder %v49, 992
    %vm2360 = vcmp.lt.s32.totalorder %v50, 992
    %vm2361 = vcmp.lt.s32.totalorder %v51, 992
    %vm2362 = vmand %vm2354, %vm126
    %vm2363 = vmand %vm2355, %vm127
    %vm2364 = vmand %vm2356, %vm128
    %vm2365 = vmand %vm2357, %vm129
    %vm2366 = vmand %vm2358, %vm130
    %vm2367 = vmand %vm2359, %vm131
    %vm2368 = vmand %vm2360, %vm132
    %vm2369 = vmand %vm2361, %vm133
    %v2370 = vsel %vm2362, 1, 0
    %v2371 = vsel %vm2363, 1, 0
    %v2372 = vsel %vm2364, 1, 0
    %v2373 = vsel %vm2365, 1, 0
    %v2374 = vsel %vm2366, 1, 0
    %v2375 = vsel %vm2367, 1, 0
    %v2376 = vsel %vm2368, 1, 0
    %v2377 = vsel %vm2369, 1, 0
    %vm2378 = vcmp.eq.s32.totalorder %v2370, 1
    %vm2379 = vcmp.eq.s32.totalorder %v2371, 1
    %vm2380 = vcmp.eq.s32.totalorder %v2372, 1
    %vm2381 = vcmp.eq.s32.totalorder %v2373, 1
    %vm2382 = vcmp.eq.s32.totalorder %v2374, 1
    %vm2383 = vcmp.eq.s32.totalorder %v2375, 1
    %vm2384 = vcmp.eq.s32.totalorder %v2376, 1
    %vm2385 = vcmp.eq.s32.totalorder %v2377, 1
    %v2386 = vsel %vm2378, %v2352, 0.0
    %v2387 = vsel %vm2379, %v2351, 0.0
    %v2388 = vsel %vm2380, %v2350, 0.0
    %v2389 = vsel %vm2381, %v2349, 0.0
    %v2390 = vsel %vm2382, %v2348, 0.0
    %v2391 = vsel %vm2383, %v2347, 0.0
    %v2392 = vsel %vm2384, %v2346, 0.0
    %v2393 = vsel %vm2385, %v2353, 0.0
    %s2394 = sld [smem:[#allocation2 + $0x2]]
    %v2395 = vstv %s2394
    %v2396 = vmul.f32 %v2395, %v2386
    %v2397 = vmul.f32 %v2395, %v2387
    %v2398 = vmul.f32 %v2395, %v2388
    %v2399 = vmul.f32 %v2395, %v2389
    %v2400 = vmul.f32 %v2395, %v2390
    %v2401 = vmul.f32 %v2395, %v2391
    %v2402 = vmul.f32 %v2395, %v2392
    %v2403 = vmul.f32 %v2395, %v2393
    %v2404 = vadd.f32 %v2214, %v2396
    %v2405 = vadd.f32 %v2215, %v2397
    %v2406 = vadd.f32 %v2216, %v2398
    %v2407 = vadd.f32 %v2217, %v2399
    %v2408 = vadd.f32 %v2218, %v2400
    %v2409 = vadd.f32 %v2219, %v2401
    %v2410 = vadd.f32 %v2220, %v2402
    %v2411 = vadd.f32 %v2221, %v2403
    %s2412 = sld [smem:[#allocation2 + $0xb]]
    %v2413 = vstv %s2412
    %v2414 = vmul.f32 %v2413, %v2386
    %v2415 = vmul.f32 %v2413, %v2387
    %v2416 = vmul.f32 %v2413, %v2388
    %v2417 = vmul.f32 %v2413, %v2389
    %v2418 = vmul.f32 %v2413, %v2390
    %v2419 = vmul.f32 %v2413, %v2391
    %v2420 = vmul.f32 %v2413, %v2392
    %v2421 = vmul.f32 %v2413, %v2393
    %v2422 = vadd.f32 %v2256, %v2414
    %v2423 = vadd.f32 %v2257, %v2415
    %v2424 = vadd.f32 %v2258, %v2416
    %v2425 = vadd.f32 %v2259, %v2417
    %v2426 = vadd.f32 %v2260, %v2418
    %v2427 = vadd.f32 %v2261, %v2419
    %v2428 = vadd.f32 %v2262, %v2420
    %v2429 = vadd.f32 %v2263, %v2421
    %s2430 = sld [smem:[#allocation2 + $0x14]]
    %v2431 = vstv %s2430
    %v2432 = vmul.f32 %v2431, %v2386
    %v2433 = vmul.f32 %v2431, %v2387
    %v2434 = vmul.f32 %v2431, %v2388
    %v2435 = vmul.f32 %v2431, %v2389
    %v2436 = vmul.f32 %v2431, %v2390
    %v2437 = vmul.f32 %v2431, %v2391
    %v2438 = vmul.f32 %v2431, %v2392
    %v2439 = vmul.f32 %v2431, %v2393
    %v2440 = vadd.f32 %v2298, %v2432
    %v2441 = vadd.f32 %v2299, %v2433
    %v2442 = vadd.f32 %v2300, %v2434
    %v2443 = vadd.f32 %v2301, %v2435
    %v2444 = vadd.f32 %v2302, %v2436
    %v2445 = vadd.f32 %v2303, %v2437
    %v2446 = vadd.f32 %v2304, %v2438
    %v2447 = vadd.f32 %v2305, %v2439
    %s2448 = sld [smem:[#allocation2 + $0x1d]]
    %v2449 = vstv %s2448
    %v2450 = vmul.f32 %v2449, %v2386
    %v2451 = vmul.f32 %v2449, %v2387
    %v2452 = vmul.f32 %v2449, %v2388
    %v2453 = vmul.f32 %v2449, %v2389
    %v2454 = vmul.f32 %v2449, %v2390
    %v2455 = vmul.f32 %v2449, %v2391
    %v2456 = vmul.f32 %v2449, %v2392
    %v2457 = vmul.f32 %v2449, %v2393
    %v2466 = vrot.slane %v2450, 1
    %v2467 = vrot.slane %v2451, 1
    %v2468 = vrot.slane %v2452, 1
    %v2469 = vrot.slane %v2453, 1
    %v2470 = vrot.slane %v2454, 1
    %v2471 = vrot.slane %v2455, 1
    %v2472 = vrot.slane %v2456, 1
    %v2473 = vrot.slane %v2457, 1
    %v2482 = vadd.f32 %v2404, %v2466
    %v2483 = vadd.f32 %v2405, %v2467
    %v2484 = vadd.f32 %v2406, %v2468
    %v2485 = vadd.f32 %v2407, %v2469
    %v2486 = vadd.f32 %v2408, %v2470
    %v2487 = vadd.f32 %v2409, %v2471
    %v2488 = vadd.f32 %v2410, %v2472
    %v2489 = vadd.f32 %v2411, %v2473
    %s2490 = sld [smem:[#allocation2 + $0x26]]
    %v2491 = vstv %s2490
    %v2492 = vmul.f32 %v2491, %v2386
    %v2493 = vmul.f32 %v2491, %v2387
    %v2494 = vmul.f32 %v2491, %v2388
    %v2495 = vmul.f32 %v2491, %v2389
    %v2496 = vmul.f32 %v2491, %v2390
    %v2497 = vmul.f32 %v2491, %v2391
    %v2498 = vmul.f32 %v2491, %v2392
    %v2499 = vmul.f32 %v2491, %v2393
    %v2508 = vrot.slane %v2492, 1
    %v2509 = vrot.slane %v2493, 1
    %v2510 = vrot.slane %v2494, 1
    %v2511 = vrot.slane %v2495, 1
    %v2512 = vrot.slane %v2496, 1
    %v2513 = vrot.slane %v2497, 1
    %v2514 = vrot.slane %v2498, 1
    %v2515 = vrot.slane %v2499, 1
    %v2524 = vadd.f32 %v2422, %v2508
    %v2525 = vadd.f32 %v2423, %v2509
    %v2526 = vadd.f32 %v2424, %v2510
    %v2527 = vadd.f32 %v2425, %v2511
    %v2528 = vadd.f32 %v2426, %v2512
    %v2529 = vadd.f32 %v2427, %v2513
    %v2530 = vadd.f32 %v2428, %v2514
    %v2531 = vadd.f32 %v2429, %v2515
    %s2532 = sld [smem:[#allocation2 + $0x2f]]
    %v2533 = vstv %s2532
    %v2534 = vmul.f32 %v2533, %v2386
    %v2535 = vmul.f32 %v2533, %v2387
    %v2536 = vmul.f32 %v2533, %v2388
    %v2537 = vmul.f32 %v2533, %v2389
    %v2538 = vmul.f32 %v2533, %v2390
    %v2539 = vmul.f32 %v2533, %v2391
    %v2540 = vmul.f32 %v2533, %v2392
    %v2541 = vmul.f32 %v2533, %v2393
    %v2550 = vrot.slane %v2534, 1
    %v2551 = vrot.slane %v2535, 1
    %v2552 = vrot.slane %v2536, 1
    %v2553 = vrot.slane %v2537, 1
    %v2554 = vrot.slane %v2538, 1
    %v2555 = vrot.slane %v2539, 1
    %v2556 = vrot.slane %v2540, 1
    %v2557 = vrot.slane %v2541, 1
    %v2566 = vadd.f32 %v2440, %v2550
    %v2567 = vadd.f32 %v2441, %v2551
    %v2568 = vadd.f32 %v2442, %v2552
    %v2569 = vadd.f32 %v2443, %v2553
    %v2570 = vadd.f32 %v2444, %v2554
    %v2571 = vadd.f32 %v2445, %v2555
    %v2572 = vadd.f32 %v2446, %v2556
    %v2573 = vadd.f32 %v2447, %v2557
    %s2574 = sld [smem:[#allocation2 + $0x38]]
    %v2575 = vstv %s2574
    %v2576 = vmul.f32 %v2575, %v2386
    %v2577 = vmul.f32 %v2575, %v2387
    %v2578 = vmul.f32 %v2575, %v2388
    %v2579 = vmul.f32 %v2575, %v2389
    %v2580 = vmul.f32 %v2575, %v2390
    %v2581 = vmul.f32 %v2575, %v2391
    %v2582 = vmul.f32 %v2575, %v2392
    %v2583 = vmul.f32 %v2575, %v2393
    %v2592 = vrot.slane %v2576, 2
    %v2593 = vrot.slane %v2577, 2
    %v2594 = vrot.slane %v2578, 2
    %v2595 = vrot.slane %v2579, 2
    %v2596 = vrot.slane %v2580, 2
    %v2597 = vrot.slane %v2581, 2
    %v2598 = vrot.slane %v2582, 2
    %v2599 = vrot.slane %v2583, 2
    %v2608 = vadd.f32 %v2482, %v2592
    %v2609 = vadd.f32 %v2483, %v2593
    %v2610 = vadd.f32 %v2484, %v2594
    %v2611 = vadd.f32 %v2485, %v2595
    %v2612 = vadd.f32 %v2486, %v2596
    %v2613 = vadd.f32 %v2487, %v2597
    %v2614 = vadd.f32 %v2488, %v2598
    %v2615 = vadd.f32 %v2489, %v2599
    %s2616 = sld [smem:[#allocation2 + $0x41]]
    %v2617 = vstv %s2616
    %v2618 = vmul.f32 %v2617, %v2386
    %v2619 = vmul.f32 %v2617, %v2387
    %v2620 = vmul.f32 %v2617, %v2388
    %v2621 = vmul.f32 %v2617, %v2389
    %v2622 = vmul.f32 %v2617, %v2390
    %v2623 = vmul.f32 %v2617, %v2391
    %v2624 = vmul.f32 %v2617, %v2392
    %v2625 = vmul.f32 %v2617, %v2393
    %v2634 = vrot.slane %v2618, 2
    %v2635 = vrot.slane %v2619, 2
    %v2636 = vrot.slane %v2620, 2
    %v2637 = vrot.slane %v2621, 2
    %v2638 = vrot.slane %v2622, 2
    %v2639 = vrot.slane %v2623, 2
    %v2640 = vrot.slane %v2624, 2
    %v2641 = vrot.slane %v2625, 2
    %v2650 = vadd.f32 %v2524, %v2634
    %v2651 = vadd.f32 %v2525, %v2635
    %v2652 = vadd.f32 %v2526, %v2636
    %v2653 = vadd.f32 %v2527, %v2637
    %v2654 = vadd.f32 %v2528, %v2638
    %v2655 = vadd.f32 %v2529, %v2639
    %v2656 = vadd.f32 %v2530, %v2640
    %v2657 = vadd.f32 %v2531, %v2641
    %s2658 = sld [smem:[#allocation2 + $0x4a]]
    %v2659 = vstv %s2658
    %v2660 = vmul.f32 %v2659, %v2386
    %v2661 = vmul.f32 %v2659, %v2387
    %v2662 = vmul.f32 %v2659, %v2388
    %v2663 = vmul.f32 %v2659, %v2389
    %v2664 = vmul.f32 %v2659, %v2390
    %v2665 = vmul.f32 %v2659, %v2391
    %v2666 = vmul.f32 %v2659, %v2392
    %v2667 = vmul.f32 %v2659, %v2393
    %v2676 = vrot.slane %v2660, 2
    %v2677 = vrot.slane %v2661, 2
    %v2678 = vrot.slane %v2662, 2
    %v2679 = vrot.slane %v2663, 2
    %v2680 = vrot.slane %v2664, 2
    %v2681 = vrot.slane %v2665, 2
    %v2682 = vrot.slane %v2666, 2
    %v2683 = vrot.slane %v2667, 2
    %v2692 = vadd.f32 %v2566, %v2676
    %v2693 = vadd.f32 %v2567, %v2677
    %v2694 = vadd.f32 %v2568, %v2678
    %v2695 = vadd.f32 %v2569, %v2679
    %v2696 = vadd.f32 %v2570, %v2680
    %v2697 = vadd.f32 %v2571, %v2681
    %v2698 = vadd.f32 %v2572, %v2682
    %v2699 = vadd.f32 %v2573, %v2683
    %2700 = vst [vmem:[#allocation1] ss:$2 sm:$0xff] %v39
    %s2701 = scalar_lea.vmem [#allocation1], 16
    %2702 = vst [vmem:[%s2701] ss:$2 sm:$0xff] %v40
    %s2703 = scalar_lea.vmem [#allocation1], 32
    %2704 = vst [vmem:[%s2703] ss:$2 sm:$0xff] %v41
    %s2705 = scalar_lea.vmem [#allocation1], 48
    %2706 = vst [vmem:[%s2705] ss:$2 sm:$0xff] %v42
    %v2707 = vld.sshfl [vmem:[#allocation1] sm:$0xff pattern:$0x75316420]
    %v2708 = vld.sshfl [vmem:[#allocation1 + $0x8] sm:$0xff pattern:$0x75316420]
    %v2709 = vld.sshfl [vmem:[#allocation1 + $0x10] sm:$0xff pattern:$0x75316420]
    %v2710 = vld.sshfl [vmem:[#allocation1 + $0x18] sm:$0xff pattern:$0x75316420]
    %v2711 = vld.sshfl [vmem:[#allocation1 + $0x20] sm:$0xff pattern:$0x75316420]
    %v2712 = vld.sshfl [vmem:[#allocation1 + $0x28] sm:$0xff pattern:$0x75316420]
    %v2713 = vld.sshfl [vmem:[#allocation1 + $0x30] sm:$0xff pattern:$0x75316420]
    %v2714 = vld.sshfl [vmem:[#allocation1 + $0x38] sm:$0xff pattern:$0x75316420]
    %2723 = vrot.lane.b32.xlu0 %v2707, 96
    %v2724 = vpop.permute.xlu0 %2723
    %2725 = vrot.lane.b32.xlu0 %v2708, 96
    %v2726 = vpop.permute.xlu0 %2725
    %2727 = vrot.lane.b32.xlu0 %v2709, 96
    %v2728 = vpop.permute.xlu0 %2727
    %2729 = vrot.lane.b32.xlu0 %v2710, 96
    %v2730 = vpop.permute.xlu0 %2729
    %2731 = vrot.lane.b32.xlu0 %v2711, 96
    %v2732 = vpop.permute.xlu0 %2731
    %2733 = vrot.lane.b32.xlu0 %v2712, 96
    %v2734 = vpop.permute.xlu0 %2733
    %2735 = vrot.lane.b32.xlu0 %v2713, 96
    %v2736 = vpop.permute.xlu0 %2735
    %2737 = vrot.lane.b32.xlu0 %v2714, 96
    %v2738 = vpop.permute.xlu0 %2737
    %vm2739 = vcmp.lt.s32.totalorder %v44, 96
    %v2740 = vsel %vm2739, %v2736, %v2738
    %v2741 = vsel %vm2739, %v2734, %v2736
    %v2742 = vsel %vm2739, %v2732, %v2734
    %v2743 = vsel %vm2739, %v2730, %v2732
    %v2744 = vsel %vm2739, %v2728, %v2730
    %v2745 = vsel %vm2739, %v2726, %v2728
    %v2746 = vsel %vm2739, %v2724, %v2726
    %v2747 = vsel %vm2739, %v2738, %v2724
    %v2748 = vsel %vm2354, 1, 0
    %v2749 = vsel %vm2355, 1, 0
    %v2750 = vsel %vm2356, 1, 0
    %v2751 = vsel %vm2357, 1, 0
    %v2752 = vsel %vm2358, 1, 0
    %v2753 = vsel %vm2359, 1, 0
    %v2754 = vsel %vm2360, 1, 0
    %v2755 = vsel %vm2361, 1, 0
    %vm2756 = vcmp.eq.s32.totalorder %v2748, 1
    %vm2757 = vcmp.eq.s32.totalorder %v2749, 1
    %vm2758 = vcmp.eq.s32.totalorder %v2750, 1
    %vm2759 = vcmp.eq.s32.totalorder %v2751, 1
    %vm2760 = vcmp.eq.s32.totalorder %v2752, 1
    %vm2761 = vcmp.eq.s32.totalorder %v2753, 1
    %vm2762 = vcmp.eq.s32.totalorder %v2754, 1
    %vm2763 = vcmp.eq.s32.totalorder %v2755, 1
    %v2764 = vsel %vm2756, %v2746, 0.0
    %v2765 = vsel %vm2757, %v2745, 0.0
    %v2766 = vsel %vm2758, %v2744, 0.0
    %v2767 = vsel %vm2759, %v2743, 0.0
    %v2768 = vsel %vm2760, %v2742, 0.0
    %v2769 = vsel %vm2761, %v2741, 0.0
    %v2770 = vsel %vm2762, %v2740, 0.0
    %v2771 = vsel %vm2763, %v2747, 0.0
    %s2772 = sld [smem:[#allocation2 + $0x1]]
    %v2773 = vstv %s2772
    %v2774 = vmul.f32 %v2773, %v2764
    %v2775 = vmul.f32 %v2773, %v2765
    %v2776 = vmul.f32 %v2773, %v2766
    %v2777 = vmul.f32 %v2773, %v2767
    %v2778 = vmul.f32 %v2773, %v2768
    %v2779 = vmul.f32 %v2773, %v2769
    %v2780 = vmul.f32 %v2773, %v2770
    %v2781 = vmul.f32 %v2773, %v2771
    %v2782 = vadd.f32 %v2608, %v2774
    %v2783 = vadd.f32 %v2609, %v2775
    %v2784 = vadd.f32 %v2610, %v2776
    %v2785 = vadd.f32 %v2611, %v2777
    %v2786 = vadd.f32 %v2612, %v2778
    %v2787 = vadd.f32 %v2613, %v2779
    %v2788 = vadd.f32 %v2614, %v2780
    %v2789 = vadd.f32 %v2615, %v2781
    %s2790 = sld [smem:[#allocation2 + $0xa]]
    %v2791 = vstv %s2790
    %v2792 = vmul.f32 %v2791, %v2764
    %v2793 = vmul.f32 %v2791, %v2765
    %v2794 = vmul.f32 %v2791, %v2766
    %v2795 = vmul.f32 %v2791, %v2767
    %v2796 = vmul.f32 %v2791, %v2768
    %v2797 = vmul.f32 %v2791, %v2769
    %v2798 = vmul.f32 %v2791, %v2770
    %v2799 = vmul.f32 %v2791, %v2771
    %v2800 = vadd.f32 %v2650, %v2792
    %v2801 = vadd.f32 %v2651, %v2793
    %v2802 = vadd.f32 %v2652, %v2794
    %v2803 = vadd.f32 %v2653, %v2795
    %v2804 = vadd.f32 %v2654, %v2796
    %v2805 = vadd.f32 %v2655, %v2797
    %v2806 = vadd.f32 %v2656, %v2798
    %v2807 = vadd.f32 %v2657, %v2799
    %s2808 = sld [smem:[#allocation2 + $0x13]]
    %v2809 = vstv %s2808
    %v2810 = vmul.f32 %v2809, %v2764
    %v2811 = vmul.f32 %v2809, %v2765
    %v2812 = vmul.f32 %v2809, %v2766
    %v2813 = vmul.f32 %v2809, %v2767
    %v2814 = vmul.f32 %v2809, %v2768
    %v2815 = vmul.f32 %v2809, %v2769
    %v2816 = vmul.f32 %v2809, %v2770
    %v2817 = vmul.f32 %v2809, %v2771
    %v2818 = vadd.f32 %v2692, %v2810
    %v2819 = vadd.f32 %v2693, %v2811
    %v2820 = vadd.f32 %v2694, %v2812
    %v2821 = vadd.f32 %v2695, %v2813
    %v2822 = vadd.f32 %v2696, %v2814
    %v2823 = vadd.f32 %v2697, %v2815
    %v2824 = vadd.f32 %v2698, %v2816
    %v2825 = vadd.f32 %v2699, %v2817
    %s2826 = sld [smem:[#allocation2 + $0x1c]]
    %v2827 = vstv %s2826
    %v2828 = vmul.f32 %v2827, %v2764
    %v2829 = vmul.f32 %v2827, %v2765
    %v2830 = vmul.f32 %v2827, %v2766
    %v2831 = vmul.f32 %v2827, %v2767
    %v2832 = vmul.f32 %v2827, %v2768
    %v2833 = vmul.f32 %v2827, %v2769
    %v2834 = vmul.f32 %v2827, %v2770
    %v2835 = vmul.f32 %v2827, %v2771
    %v2844 = vrot.slane %v2828, 1
    %v2845 = vrot.slane %v2829, 1
    %v2846 = vrot.slane %v2830, 1
    %v2847 = vrot.slane %v2831, 1
    %v2848 = vrot.slane %v2832, 1
    %v2849 = vrot.slane %v2833, 1
    %v2850 = vrot.slane %v2834, 1
    %v2851 = vrot.slane %v2835, 1
    %v2860 = vadd.f32 %v2782, %v2844
    %v2861 = vadd.f32 %v2783, %v2845
    %v2862 = vadd.f32 %v2784, %v2846
    %v2863 = vadd.f32 %v2785, %v2847
    %v2864 = vadd.f32 %v2786, %v2848
    %v2865 = vadd.f32 %v2787, %v2849
    %v2866 = vadd.f32 %v2788, %v2850
    %v2867 = vadd.f32 %v2789, %v2851
    %s2868 = sld [smem:[#allocation2 + $0x25]]
    %v2869 = vstv %s2868
    %v2870 = vmul.f32 %v2869, %v2764
    %v2871 = vmul.f32 %v2869, %v2765
    %v2872 = vmul.f32 %v2869, %v2766
    %v2873 = vmul.f32 %v2869, %v2767
    %v2874 = vmul.f32 %v2869, %v2768
    %v2875 = vmul.f32 %v2869, %v2769
    %v2876 = vmul.f32 %v2869, %v2770
    %v2877 = vmul.f32 %v2869, %v2771
    %v2886 = vrot.slane %v2870, 1
    %v2887 = vrot.slane %v2871, 1
    %v2888 = vrot.slane %v2872, 1
    %v2889 = vrot.slane %v2873, 1
    %v2890 = vrot.slane %v2874, 1
    %v2891 = vrot.slane %v2875, 1
    %v2892 = vrot.slane %v2876, 1
    %v2893 = vrot.slane %v2877, 1
    %v2902 = vadd.f32 %v2800, %v2886
    %v2903 = vadd.f32 %v2801, %v2887
    %v2904 = vadd.f32 %v2802, %v2888
    %v2905 = vadd.f32 %v2803, %v2889
    %v2906 = vadd.f32 %v2804, %v2890
    %v2907 = vadd.f32 %v2805, %v2891
    %v2908 = vadd.f32 %v2806, %v2892
    %v2909 = vadd.f32 %v2807, %v2893
    %s2910 = sld [smem:[#allocation2 + $0x2e]]
    %v2911 = vstv %s2910
    %v2912 = vmul.f32 %v2911, %v2764
    %v2913 = vmul.f32 %v2911, %v2765
    %v2914 = vmul.f32 %v2911, %v2766
    %v2915 = vmul.f32 %v2911, %v2767
    %v2916 = vmul.f32 %v2911, %v2768
    %v2917 = vmul.f32 %v2911, %v2769
    %v2918 = vmul.f32 %v2911, %v2770
    %v2919 = vmul.f32 %v2911, %v2771
    %v2928 = vrot.slane %v2912, 1
    %v2929 = vrot.slane %v2913, 1
    %v2930 = vrot.slane %v2914, 1
    %v2931 = vrot.slane %v2915, 1
    %v2932 = vrot.slane %v2916, 1
    %v2933 = vrot.slane %v2917, 1
    %v2934 = vrot.slane %v2918, 1
    %v2935 = vrot.slane %v2919, 1
    %v2944 = vadd.f32 %v2818, %v2928
    %v2945 = vadd.f32 %v2819, %v2929
    %v2946 = vadd.f32 %v2820, %v2930
    %v2947 = vadd.f32 %v2821, %v2931
    %v2948 = vadd.f32 %v2822, %v2932
    %v2949 = vadd.f32 %v2823, %v2933
    %v2950 = vadd.f32 %v2824, %v2934
    %v2951 = vadd.f32 %v2825, %v2935
    %s2952 = sld [smem:[#allocation2 + $0x37]]
    %v2953 = vstv %s2952
    %v2954 = vmul.f32 %v2953, %v2764
    %v2955 = vmul.f32 %v2953, %v2765
    %v2956 = vmul.f32 %v2953, %v2766
    %v2957 = vmul.f32 %v2953, %v2767
    %v2958 = vmul.f32 %v2953, %v2768
    %v2959 = vmul.f32 %v2953, %v2769
    %v2960 = vmul.f32 %v2953, %v2770
    %v2961 = vmul.f32 %v2953, %v2771
    %v2970 = vrot.slane %v2954, 2
    %v2971 = vrot.slane %v2955, 2
    %v2972 = vrot.slane %v2956, 2
    %v2973 = vrot.slane %v2957, 2
    %v2974 = vrot.slane %v2958, 2
    %v2975 = vrot.slane %v2959, 2
    %v2976 = vrot.slane %v2960, 2
    %v2977 = vrot.slane %v2961, 2
    %v2986 = vadd.f32 %v2860, %v2970
    %v2987 = vadd.f32 %v2861, %v2971
    %v2988 = vadd.f32 %v2862, %v2972
    %v2989 = vadd.f32 %v2863, %v2973
    %v2990 = vadd.f32 %v2864, %v2974
    %v2991 = vadd.f32 %v2865, %v2975
    %v2992 = vadd.f32 %v2866, %v2976
    %v2993 = vadd.f32 %v2867, %v2977
    %s2994 = sld [smem:[#allocation2 + $0x40]]
    %v2995 = vstv %s2994
    %v2996 = vmul.f32 %v2995, %v2764
    %v2997 = vmul.f32 %v2995, %v2765
    %v2998 = vmul.f32 %v2995, %v2766
    %v2999 = vmul.f32 %v2995, %v2767
    %v3000 = vmul.f32 %v2995, %v2768
    %v3001 = vmul.f32 %v2995, %v2769
    %v3002 = vmul.f32 %v2995, %v2770
    %v3003 = vmul.f32 %v2995, %v2771
    %v3012 = vrot.slane %v2996, 2
    %v3013 = vrot.slane %v2997, 2
    %v3014 = vrot.slane %v2998, 2
    %v3015 = vrot.slane %v2999, 2
    %v3016 = vrot.slane %v3000, 2
    %v3017 = vrot.slane %v3001, 2
    %v3018 = vrot.slane %v3002, 2
    %v3019 = vrot.slane %v3003, 2
    %v3028 = vadd.f32 %v2902, %v3012
    %v3029 = vadd.f32 %v2903, %v3013
    %v3030 = vadd.f32 %v2904, %v3014
    %v3031 = vadd.f32 %v2905, %v3015
    %v3032 = vadd.f32 %v2906, %v3016
    %v3033 = vadd.f32 %v2907, %v3017
    %v3034 = vadd.f32 %v2908, %v3018
    %v3035 = vadd.f32 %v2909, %v3019
    %s3036 = sld [smem:[#allocation2 + $0x49]]
    %v3037 = vstv %s3036
    %v3038 = vmul.f32 %v3037, %v2764
    %v3039 = vmul.f32 %v3037, %v2765
    %v3040 = vmul.f32 %v3037, %v2766
    %v3041 = vmul.f32 %v3037, %v2767
    %v3042 = vmul.f32 %v3037, %v2768
    %v3043 = vmul.f32 %v3037, %v2769
    %v3044 = vmul.f32 %v3037, %v2770
    %v3045 = vmul.f32 %v3037, %v2771
    %v3054 = vrot.slane %v3038, 2
    %v3055 = vrot.slane %v3039, 2
    %v3056 = vrot.slane %v3040, 2
    %v3057 = vrot.slane %v3041, 2
    %v3058 = vrot.slane %v3042, 2
    %v3059 = vrot.slane %v3043, 2
    %v3060 = vrot.slane %v3044, 2
    %v3061 = vrot.slane %v3045, 2
    %v3070 = vadd.f32 %v2944, %v3054
    %v3071 = vadd.f32 %v2945, %v3055
    %v3072 = vadd.f32 %v2946, %v3056
    %v3073 = vadd.f32 %v2947, %v3057
    %v3074 = vadd.f32 %v2948, %v3058
    %v3075 = vadd.f32 %v2949, %v3059
    %v3076 = vadd.f32 %v2950, %v3060
    %v3077 = vadd.f32 %v2951, %v3061
    %3078 = vst [vmem:[#allocation1] ss:$2 sm:$0xff] %v39
    %s3079 = scalar_lea.vmem [#allocation1], 16
    %3080 = vst [vmem:[%s3079] ss:$2 sm:$0xff] %v40
    %s3081 = scalar_lea.vmem [#allocation1], 32
    %3082 = vst [vmem:[%s3081] ss:$2 sm:$0xff] %v41
    %s3083 = scalar_lea.vmem [#allocation1], 48
    %3084 = vst [vmem:[%s3083] ss:$2 sm:$0xff] %v42
    %v3085 = vld.sshfl [vmem:[#allocation1] sm:$0xff pattern:$0x75316420]
    %v3086 = vld.sshfl [vmem:[#allocation1 + $0x8] sm:$0xff pattern:$0x75316420]
    %v3087 = vld.sshfl [vmem:[#allocation1 + $0x10] sm:$0xff pattern:$0x75316420]
    %v3088 = vld.sshfl [vmem:[#allocation1 + $0x18] sm:$0xff pattern:$0x75316420]
    %v3089 = vld.sshfl [vmem:[#allocation1 + $0x20] sm:$0xff pattern:$0x75316420]
    %v3090 = vld.sshfl [vmem:[#allocation1 + $0x28] sm:$0xff pattern:$0x75316420]
    %v3091 = vld.sshfl [vmem:[#allocation1 + $0x30] sm:$0xff pattern:$0x75316420]
    %v3092 = vld.sshfl [vmem:[#allocation1 + $0x38] sm:$0xff pattern:$0x75316420]
    %3101 = vrot.lane.b32.xlu0 %v3085, 95
    %v3102 = vpop.permute.xlu0 %3101
    %3103 = vrot.lane.b32.xlu0 %v3086, 95
    %v3104 = vpop.permute.xlu0 %3103
    %3105 = vrot.lane.b32.xlu0 %v3087, 95
    %v3106 = vpop.permute.xlu0 %3105
    %3107 = vrot.lane.b32.xlu0 %v3088, 95
    %v3108 = vpop.permute.xlu0 %3107
    %3109 = vrot.lane.b32.xlu0 %v3089, 95
    %v3110 = vpop.permute.xlu0 %3109
    %3111 = vrot.lane.b32.xlu0 %v3090, 95
    %v3112 = vpop.permute.xlu0 %3111
    %3113 = vrot.lane.b32.xlu0 %v3091, 95
    %v3114 = vpop.permute.xlu0 %3113
    %3115 = vrot.lane.b32.xlu0 %v3092, 95
    %v3116 = vpop.permute.xlu0 %3115
    %vm3117 = vcmp.lt.s32.totalorder %v44, 95
    %v3118 = vsel %vm3117, %v3114, %v3116
    %v3119 = vsel %vm3117, %v3112, %v3114
    %v3120 = vsel %vm3117, %v3110, %v3112
    %v3121 = vsel %vm3117, %v3108, %v3110
    %v3122 = vsel %vm3117, %v3106, %v3108
    %v3123 = vsel %vm3117, %v3104, %v3106
    %v3124 = vsel %vm3117, %v3102, %v3104
    %v3125 = vsel %vm3117, %v3116, %v3102
    %vm3126 = vmand %vm2354, %vm898
    %vm3127 = vmand %vm2355, %vm899
    %vm3128 = vmand %vm2356, %vm900
    %vm3129 = vmand %vm2357, %vm901
    %vm3130 = vmand %vm2358, %vm902
    %vm3131 = vmand %vm2359, %vm903
    %vm3132 = vmand %vm2360, %vm904
    %vm3133 = vmand %vm2361, %vm905
    %v3134 = vsel %vm3126, 1, 0
    %v3135 = vsel %vm3127, 1, 0
    %v3136 = vsel %vm3128, 1, 0
    %v3137 = vsel %vm3129, 1, 0
    %v3138 = vsel %vm3130, 1, 0
    %v3139 = vsel %vm3131, 1, 0
    %v3140 = vsel %vm3132, 1, 0
    %v3141 = vsel %vm3133, 1, 0
    %vm3142 = vcmp.eq.s32.totalorder %v3134, 1
    %vm3143 = vcmp.eq.s32.totalorder %v3135, 1
    %vm3144 = vcmp.eq.s32.totalorder %v3136, 1
    %vm3145 = vcmp.eq.s32.totalorder %v3137, 1
    %vm3146 = vcmp.eq.s32.totalorder %v3138, 1
    %vm3147 = vcmp.eq.s32.totalorder %v3139, 1
    %vm3148 = vcmp.eq.s32.totalorder %v3140, 1
    %vm3149 = vcmp.eq.s32.totalorder %v3141, 1
    %v3150 = vsel %vm3142, %v3124, 0.0
    %v3151 = vsel %vm3143, %v3123, 0.0
    %v3152 = vsel %vm3144, %v3122, 0.0
    %v3153 = vsel %vm3145, %v3121, 0.0
    %v3154 = vsel %vm3146, %v3120, 0.0
    %v3155 = vsel %vm3147, %v3119, 0.0
    %v3156 = vsel %vm3148, %v3118, 0.0
    %v3157 = vsel %vm3149, %v3125, 0.0
    %s3158 = sld [smem:[#allocation2]]
    %v3159 = vstv %s3158
    %v3160 = vmul.f32 %v3159, %v3150
    %v3161 = vmul.f32 %v3159, %v3151
    %v3162 = vmul.f32 %v3159, %v3152
    %v3163 = vmul.f32 %v3159, %v3153
    %v3164 = vmul.f32 %v3159, %v3154
    %v3165 = vmul.f32 %v3159, %v3155
    %v3166 = vmul.f32 %v3159, %v3156
    %v3167 = vmul.f32 %v3159, %v3157
    %v3168 = vadd.f32 %v2986, %v3160
    %v3169 = vadd.f32 %v2987, %v3161
    %v3170 = vadd.f32 %v2988, %v3162
    %v3171 = vadd.f32 %v2989, %v3163
    %v3172 = vadd.f32 %v2990, %v3164
    %v3173 = vadd.f32 %v2991, %v3165
    %v3174 = vadd.f32 %v2992, %v3166
    %v3175 = vadd.f32 %v2993, %v3167
    %s3176 = sld [smem:[#allocation2 + $0x9]]
    %v3177 = vstv %s3176
    %v3178 = vmul.f32 %v3177, %v3150
    %v3179 = vmul.f32 %v3177, %v3151
    %v3180 = vmul.f32 %v3177, %v3152
    %v3181 = vmul.f32 %v3177, %v3153
    %v3182 = vmul.f32 %v3177, %v3154
    %v3183 = vmul.f32 %v3177, %v3155
    %v3184 = vmul.f32 %v3177, %v3156
    %v3185 = vmul.f32 %v3177, %v3157
    %v3186 = vadd.f32 %v3028, %v3178
    %v3187 = vadd.f32 %v3029, %v3179
    %v3188 = vadd.f32 %v3030, %v3180
    %v3189 = vadd.f32 %v3031, %v3181
    %v3190 = vadd.f32 %v3032, %v3182
    %v3191 = vadd.f32 %v3033, %v3183
    %v3192 = vadd.f32 %v3034, %v3184
    %v3193 = vadd.f32 %v3035, %v3185
    %s3194 = sld [smem:[#allocation2 + $0x12]]
    %v3195 = vstv %s3194
    %v3196 = vmul.f32 %v3195, %v3150
    %v3197 = vmul.f32 %v3195, %v3151
    %v3198 = vmul.f32 %v3195, %v3152
    %v3199 = vmul.f32 %v3195, %v3153
    %v3200 = vmul.f32 %v3195, %v3154
    %v3201 = vmul.f32 %v3195, %v3155
    %v3202 = vmul.f32 %v3195, %v3156
    %v3203 = vmul.f32 %v3195, %v3157
    %v3204 = vadd.f32 %v3070, %v3196
    %v3205 = vadd.f32 %v3071, %v3197
    %v3206 = vadd.f32 %v3072, %v3198
    %v3207 = vadd.f32 %v3073, %v3199
    %v3208 = vadd.f32 %v3074, %v3200
    %v3209 = vadd.f32 %v3075, %v3201
    %v3210 = vadd.f32 %v3076, %v3202
    %v3211 = vadd.f32 %v3077, %v3203
    %s3212 = sld [smem:[#allocation2 + $0x1b]]
    %v3213 = vstv %s3212
    %v3214 = vmul.f32 %v3213, %v3150
    %v3215 = vmul.f32 %v3213, %v3151
    %v3216 = vmul.f32 %v3213, %v3152
    %v3217 = vmul.f32 %v3213, %v3153
    %v3218 = vmul.f32 %v3213, %v3154
    %v3219 = vmul.f32 %v3213, %v3155
    %v3220 = vmul.f32 %v3213, %v3156
    %v3221 = vmul.f32 %v3213, %v3157
    %v3230 = vrot.slane %v3214, 1
    %v3231 = vrot.slane %v3215, 1
    %v3232 = vrot.slane %v3216, 1
    %v3233 = vrot.slane %v3217, 1
    %v3234 = vrot.slane %v3218, 1
    %v3235 = vrot.slane %v3219, 1
    %v3236 = vrot.slane %v3220, 1
    %v3237 = vrot.slane %v3221, 1
    %v3246 = vadd.f32 %v3168, %v3230
    %v3247 = vadd.f32 %v3169, %v3231
    %v3248 = vadd.f32 %v3170, %v3232
    %v3249 = vadd.f32 %v3171, %v3233
    %v3250 = vadd.f32 %v3172, %v3234
    %v3251 = vadd.f32 %v3173, %v3235
    %v3252 = vadd.f32 %v3174, %v3236
    %v3253 = vadd.f32 %v3175, %v3237
    %s3254 = sld [smem:[#allocation2 + $0x24]]
    %v3255 = vstv %s3254
    %v3256 = vmul.f32 %v3255, %v3150
    %v3257 = vmul.f32 %v3255, %v3151
    %v3258 = vmul.f32 %v3255, %v3152
    %v3259 = vmul.f32 %v3255, %v3153
    %v3260 = vmul.f32 %v3255, %v3154
    %v3261 = vmul.f32 %v3255, %v3155
    %v3262 = vmul.f32 %v3255, %v3156
    %v3263 = vmul.f32 %v3255, %v3157
    %v3272 = vrot.slane %v3256, 1
    %v3273 = vrot.slane %v3257, 1
    %v3274 = vrot.slane %v3258, 1
    %v3275 = vrot.slane %v3259, 1
    %v3276 = vrot.slane %v3260, 1
    %v3277 = vrot.slane %v3261, 1
    %v3278 = vrot.slane %v3262, 1
    %v3279 = vrot.slane %v3263, 1
    %v3288 = vadd.f32 %v3186, %v3272
    %v3289 = vadd.f32 %v3187, %v3273
    %v3290 = vadd.f32 %v3188, %v3274
    %v3291 = vadd.f32 %v3189, %v3275
    %v3292 = vadd.f32 %v3190, %v3276
    %v3293 = vadd.f32 %v3191, %v3277
    %v3294 = vadd.f32 %v3192, %v3278
    %v3295 = vadd.f32 %v3193, %v3279
    %s3296 = sld [smem:[#allocation2 + $0x2d]]
    %v3297 = vstv %s3296
    %v3298 = vmul.f32 %v3297, %v3150
    %v3299 = vmul.f32 %v3297, %v3151
    %v3300 = vmul.f32 %v3297, %v3152
    %v3301 = vmul.f32 %v3297, %v3153
    %v3302 = vmul.f32 %v3297, %v3154
    %v3303 = vmul.f32 %v3297, %v3155
    %v3304 = vmul.f32 %v3297, %v3156
    %v3305 = vmul.f32 %v3297, %v3157
    %v3314 = vrot.slane %v3298, 1
    %v3315 = vrot.slane %v3299, 1
    %v3316 = vrot.slane %v3300, 1
    %v3317 = vrot.slane %v3301, 1
    %v3318 = vrot.slane %v3302, 1
    %v3319 = vrot.slane %v3303, 1
    %v3320 = vrot.slane %v3304, 1
    %v3321 = vrot.slane %v3305, 1
    %v3330 = vadd.f32 %v3204, %v3314
    %v3331 = vadd.f32 %v3205, %v3315
    %v3332 = vadd.f32 %v3206, %v3316
    %v3333 = vadd.f32 %v3207, %v3317
    %v3334 = vadd.f32 %v3208, %v3318
    %v3335 = vadd.f32 %v3209, %v3319
    %v3336 = vadd.f32 %v3210, %v3320
    %v3337 = vadd.f32 %v3211, %v3321
    %s3338 = sld [smem:[#allocation2 + $0x36]]
    %v3339 = vstv %s3338
    %v3340 = vmul.f32 %v3339, %v3150
    %v3341 = vmul.f32 %v3339, %v3151
    %v3342 = vmul.f32 %v3339, %v3152
    %v3343 = vmul.f32 %v3339, %v3153
    %v3344 = vmul.f32 %v3339, %v3154
    %v3345 = vmul.f32 %v3339, %v3155
    %v3346 = vmul.f32 %v3339, %v3156
    %v3347 = vmul.f32 %v3339, %v3157
    %v3356 = vrot.slane %v3340, 2
    %v3357 = vrot.slane %v3341, 2
    %v3358 = vrot.slane %v3342, 2
    %v3359 = vrot.slane %v3343, 2
    %v3360 = vrot.slane %v3344, 2
    %v3361 = vrot.slane %v3345, 2
    %v3362 = vrot.slane %v3346, 2
    %v3363 = vrot.slane %v3347, 2
    %v3372 = vadd.f32 %v3246, %v3356
    %v3373 = vadd.f32 %v3247, %v3357
    %v3374 = vadd.f32 %v3248, %v3358
    %v3375 = vadd.f32 %v3249, %v3359
    %v3376 = vadd.f32 %v3250, %v3360
    %v3377 = vadd.f32 %v3251, %v3361
    %v3378 = vadd.f32 %v3252, %v3362
    %v3379 = vadd.f32 %v3253, %v3363
    %s3380 = sld [smem:[#allocation2 + $0x3f]]
    %v3381 = vstv %s3380
    %v3382 = vmul.f32 %v3381, %v3150
    %v3383 = vmul.f32 %v3381, %v3151
    %v3384 = vmul.f32 %v3381, %v3152
    %v3385 = vmul.f32 %v3381, %v3153
    %v3386 = vmul.f32 %v3381, %v3154
    %v3387 = vmul.f32 %v3381, %v3155
    %v3388 = vmul.f32 %v3381, %v3156
    %v3389 = vmul.f32 %v3381, %v3157
    %v3398 = vrot.slane %v3382, 2
    %v3399 = vrot.slane %v3383, 2
    %v3400 = vrot.slane %v3384, 2
    %v3401 = vrot.slane %v3385, 2
    %v3402 = vrot.slane %v3386, 2
    %v3403 = vrot.slane %v3387, 2
    %v3404 = vrot.slane %v3388, 2
    %v3405 = vrot.slane %v3389, 2
    %v3414 = vadd.f32 %v3288, %v3398
    %v3415 = vadd.f32 %v3289, %v3399
    %v3416 = vadd.f32 %v3290, %v3400
    %v3417 = vadd.f32 %v3291, %v3401
    %v3418 = vadd.f32 %v3292, %v3402
    %v3419 = vadd.f32 %v3293, %v3403
    %v3420 = vadd.f32 %v3294, %v3404
    %v3421 = vadd.f32 %v3295, %v3405
    %s3422 = sld [smem:[#allocation2 + $0x48]]
    %v3423 = vstv %s3422
    %v3424 = vmul.f32 %v3423, %v3150
    %v3425 = vmul.f32 %v3423, %v3151
    %v3426 = vmul.f32 %v3423, %v3152
    %v3427 = vmul.f32 %v3423, %v3153
    %v3428 = vmul.f32 %v3423, %v3154
    %v3429 = vmul.f32 %v3423, %v3155
    %v3430 = vmul.f32 %v3423, %v3156
    %v3431 = vmul.f32 %v3423, %v3157
    %v3440 = vrot.slane %v3424, 2
    %v3441 = vrot.slane %v3425, 2
    %v3442 = vrot.slane %v3426, 2
    %v3443 = vrot.slane %v3427, 2
    %v3444 = vrot.slane %v3428, 2
    %v3445 = vrot.slane %v3429, 2
    %v3446 = vrot.slane %v3430, 2
    %v3447 = vrot.slane %v3431, 2
    %v3456 = vadd.f32 %v3330, %v3440
    %v3457 = vadd.f32 %v3331, %v3441
    %v3458 = vadd.f32 %v3332, %v3442
    %v3459 = vadd.f32 %v3333, %v3443
    %v3460 = vadd.f32 %v3334, %v3444
    %v3461 = vadd.f32 %v3335, %v3445
    %v3462 = vadd.f32 %v3336, %v3446
    %v3463 = vadd.f32 %v3337, %v3447
    %v3472 = vrot.slane %v3414, 7
    %v3473 = vrot.slane %v3415, 7
    %v3474 = vrot.slane %v3416, 7
    %v3475 = vrot.slane %v3417, 7
    %v3476 = vrot.slane %v3418, 7
    %v3477 = vrot.slane %v3419, 7
    %v3478 = vrot.slane %v3420, 7
    %v3479 = vrot.slane %v3421, 7
    %v3496 = vrot.slane %v3456, 6
    %v3497 = vrot.slane %v3457, 6
    %v3498 = vrot.slane %v3458, 6
    %v3499 = vrot.slane %v3459, 6
    %v3500 = vrot.slane %v3460, 6
    %v3501 = vrot.slane %v3461, 6
    %v3502 = vrot.slane %v3462, 6
    %v3503 = vrot.slane %v3463, 6
    %vm3512 = vcmask 1040384
    %v3513 = vsel %vm3512, %v3372, %v3472
    %v3514 = vsel %vm3512, %v3373, %v3473
    %v3515 = vsel %vm3512, %v3374, %v3474
    %v3516 = vsel %vm3512, %v3375, %v3475
    %v3517 = vsel %vm3512, %v3376, %v3476
    %v3518 = vsel %vm3512, %v3377, %v3477
    %v3519 = vsel %vm3512, %v3378, %v3478
    %v3520 = vsel %vm3512, %v3379, %v3479
    %vm3521 = vcmask 1041408
    %v3522 = vsel %vm3521, %v3513, %v3496
    %v3523 = vsel %vm3521, %v3514, %v3497
    %v3524 = vsel %vm3521, %v3515, %v3498
    %v3525 = vsel %vm3521, %v3516, %v3499
    %v3526 = vsel %vm3521, %v3517, %v3500
    %v3527 = vsel %vm3521, %v3518, %v3501
    %v3528 = vsel %vm3521, %v3519, %v3502
    %v3529 = vsel %vm3521, %v3520, %v3503
    %v3530 = vxor.u32 %v3522, 2147483648
    %v3531 = vxor.u32 %v3523, 2147483648
    %v3532 = vxor.u32 %v3524, 2147483648
    %v3533 = vxor.u32 %v3525, 2147483648
    %v3534 = vxor.u32 %v3526, 2147483648
    %v3535 = vxor.u32 %v3527, 2147483648
    %v3536 = vxor.u32 %v3528, 2147483648
    %v3537 = vxor.u32 %v3529, 2147483648
    %v3538 = vmul.f32 %v3530, 1.442695
    %v3539 = vpow.pop %v3538
    %v3540 = vmul.f32 %v3531, 1.442695
    %v3541 = vpow.pop %v3540
    %v3542 = vmul.f32 %v3532, 1.442695
    %v3543 = vpow.pop %v3542
    %v3544 = vmul.f32 %v3533, 1.442695
    %v3545 = vpow.pop %v3544
    %v3546 = vmul.f32 %v3534, 1.442695
    %v3547 = vpow.pop %v3546
    %v3548 = vmul.f32 %v3535, 1.442695
    %v3549 = vpow.pop %v3548
    %v3550 = vmul.f32 %v3536, 1.442695
    %v3551 = vpow.pop %v3550
    %v3552 = vmul.f32 %v3537, 1.442695
    %v3553 = vpow.pop %v3552
    %v3554 = vadd.f32 %v3539, 1.0
    %v3555 = vadd.f32 %v3541, 1.0
    %v3556 = vadd.f32 %v3543, 1.0
    %v3557 = vadd.f32 %v3545, 1.0
    %v3558 = vadd.f32 %v3547, 1.0
    %v3559 = vadd.f32 %v3549, 1.0
    %v3560 = vadd.f32 %v3551, 1.0
    %v3561 = vadd.f32 %v3553, 1.0
    %v3562 = vrcp.pop %v3554
    %v3563 = vmul.f32 %v3554, %v3562
    %v3564 = vsub.f32 1.0, %v3563
    %v3565 = vmul.f32 %v3562, %v3564
    %v3566 = vadd.f32 %v3562, %v3565
    %vm3567 = vweird.f32 %v3554
    %vm3568 = vweird.f32 %v3562
    %vm3569 = vmor %vm3567, %vm3568
    %v3570 = vsel %vm3569, %v3562, %v3566
    %v3571 = vand.u32 2147483647, %v3554
    %vm3572 = vcmp.eq.f32.partialorder %v3571, 8.507059e+37
    %v3573 = vand.u32 %v3554, 2147483648
    %v3574 = vor.u32 1.1754944e-38, %v3573
    %v3575 = vsel %vm3572, %v3574, %v3570
    %v3576 = vmul.f32 1.0, %v3575
    %v3577 = vrcp.pop %v3555
    %v3578 = vmul.f32 %v3555, %v3577
    %v3579 = vsub.f32 1.0, %v3578
    %v3580 = vmul.f32 %v3577, %v3579
    %v3581 = vadd.f32 %v3577, %v3580
    %vm3582 = vweird.f32 %v3555
    %vm3583 = vweird.f32 %v3577
    %vm3584 = vmor %vm3582, %vm3583
    %v3585 = vsel %vm3584, %v3577, %v3581
    %v3586 = vand.u32 2147483647, %v3555
    %vm3587 = vcmp.eq.f32.partialorder %v3586, 8.507059e+37
    %v3588 = vand.u32 %v3555, 2147483648
    %v3589 = vor.u32 1.1754944e-38, %v3588
    %v3590 = vsel %vm3587, %v3589, %v3585
    %v3591 = vmul.f32 1.0, %v3590
    %v3592 = vrcp.pop %v3556
    %v3593 = vmul.f32 %v3556, %v3592
    %v3594 = vsub.f32 1.0, %v3593
    %v3595 = vmul.f32 %v3592, %v3594
    %v3596 = vadd.f32 %v3592, %v3595
    %vm3597 = vweird.f32 %v3556
    %vm3598 = vweird.f32 %v3592
    %vm3599 = vmor %vm3597, %vm3598
    %v3600 = vsel %vm3599, %v3592, %v3596
    %v3601 = vand.u32 2147483647, %v3556
    %vm3602 = vcmp.eq.f32.partialorder %v3601, 8.507059e+37
    %v3603 = vand.u32 %v3556, 2147483648
    %v3604 = vor.u32 1.1754944e-38, %v3603
    %v3605 = vsel %vm3602, %v3604, %v3600
    %v3606 = vmul.f32 1.0, %v3605
    %v3607 = vrcp.pop %v3557
    %v3608 = vmul.f32 %v3557, %v3607
    %v3609 = vsub.f32 1.0, %v3608
    %v3610 = vmul.f32 %v3607, %v3609
    %v3611 = vadd.f32 %v3607, %v3610
    %vm3612 = vweird.f32 %v3557
    %vm3613 = vweird.f32 %v3607
    %vm3614 = vmor %vm3612, %vm3613
    %v3615 = vsel %vm3614, %v3607, %v3611
    %v3616 = vand.u32 2147483647, %v3557
    %vm3617 = vcmp.eq.f32.partialorder %v3616, 8.507059e+37
    %v3618 = vand.u32 %v3557, 2147483648
    %v3619 = vor.u32 1.1754944e-38, %v3618
    %v3620 = vsel %vm3617, %v3619, %v3615
    %v3621 = vmul.f32 1.0, %v3620
    %v3622 = vrcp.pop %v3558
    %v3623 = vmul.f32 %v3558, %v3622
    %v3624 = vsub.f32 1.0, %v3623
    %v3625 = vmul.f32 %v3622, %v3624
    %v3626 = vadd.f32 %v3622, %v3625
    %vm3627 = vweird.f32 %v3558
    %vm3628 = vweird.f32 %v3622
    %vm3629 = vmor %vm3627, %vm3628
    %v3630 = vsel %vm3629, %v3622, %v3626
    %v3631 = vand.u32 2147483647, %v3558
    %vm3632 = vcmp.eq.f32.partialorder %v3631, 8.507059e+37
    %v3633 = vand.u32 %v3558, 2147483648
    %v3634 = vor.u32 1.1754944e-38, %v3633
    %v3635 = vsel %vm3632, %v3634, %v3630
    %v3636 = vmul.f32 1.0, %v3635
    %v3637 = vrcp.pop %v3559
    %v3638 = vmul.f32 %v3559, %v3637
    %v3639 = vsub.f32 1.0, %v3638
    %v3640 = vmul.f32 %v3637, %v3639
    %v3641 = vadd.f32 %v3637, %v3640
    %vm3642 = vweird.f32 %v3559
    %vm3643 = vweird.f32 %v3637
    %vm3644 = vmor %vm3642, %vm3643
    %v3645 = vsel %vm3644, %v3637, %v3641
    %v3646 = vand.u32 2147483647, %v3559
    %vm3647 = vcmp.eq.f32.partialorder %v3646, 8.507059e+37
    %v3648 = vand.u32 %v3559, 2147483648
    %v3649 = vor.u32 1.1754944e-38, %v3648
    %v3650 = vsel %vm3647, %v3649, %v3645
    %v3651 = vmul.f32 1.0, %v3650
    %v3652 = vrcp.pop %v3560
    %v3653 = vmul.f32 %v3560, %v3652
    %v3654 = vsub.f32 1.0, %v3653
    %v3655 = vmul.f32 %v3652, %v3654
    %v3656 = vadd.f32 %v3652, %v3655
    %vm3657 = vweird.f32 %v3560
    %vm3658 = vweird.f32 %v3652
    %vm3659 = vmor %vm3657, %vm3658
    %v3660 = vsel %vm3659, %v3652, %v3656
    %v3661 = vand.u32 2147483647, %v3560
    %vm3662 = vcmp.eq.f32.partialorder %v3661, 8.507059e+37
    %v3663 = vand.u32 %v3560, 2147483648
    %v3664 = vor.u32 1.1754944e-38, %v3663
    %v3665 = vsel %vm3662, %v3664, %v3660
    %v3666 = vmul.f32 1.0, %v3665
    %v3667 = vrcp.pop %v3561
    %v3668 = vmul.f32 %v3561, %v3667
    %v3669 = vsub.f32 1.0, %v3668
    %v3670 = vmul.f32 %v3667, %v3669
    %v3671 = vadd.f32 %v3667, %v3670
    %vm3672 = vweird.f32 %v3561
    %vm3673 = vweird.f32 %v3667
    %vm3674 = vmor %vm3672, %vm3673
    %v3675 = vsel %vm3674, %v3667, %v3671
    %v3676 = vand.u32 2147483647, %v3561
    %vm3677 = vcmp.eq.f32.partialorder %v3676, 8.507059e+37
    %v3678 = vand.u32 %v3561, 2147483648
    %v3679 = vor.u32 1.1754944e-38, %v3678
    %v3680 = vsel %vm3677, %v3679, %v3675
    %v3681 = vmul.f32 1.0, %v3680
    %v3690 = vrot.slane %v3591, 4
    %v3691 = vrot.slane %v3621, 4
    %v3692 = vrot.slane %v3651, 4
    %v3693 = vrot.slane %v3681, 4
    %vm3694 = vcmask 1043456
    %v3695 = vsel %vm3694, %v3576, %v3690
    %v3696 = vsel %vm3694, %v3606, %v3691
    %v3697 = vsel %vm3694, %v3636, %v3692
    %v3698 = vsel %vm3694, %v3666, %v3693
    %3703 = vst [vmem:[%s3] sm:$0x77] %v3695
    %3704 = vst [vmem:[%s3 + $0x8] sm:$0x77] %v3696
    %3705 = vst [vmem:[%s3 + $0x10] sm:$0x77] %v3697
    %3706 = vst [vmem:[%s3 + $0x18] sm:$0x77] %v3698
    // Predicated region
    $region22: #{conv_transpose_sigmoid.1} parent=1 // pred_check
      _
    $region23: #{conv_transpose_sigmoid.1} parent=1 // pred_check_branch
      %3708 = sbr.rel (0) target = $region25
    $region24: #{conv_transpose_sigmoid.1} parent=1 // pred_region
      _
    $region25: #{conv_transpose_sigmoid.1} parent=1 // pred_fallthru
      _
    // Predicated region
    $region26: #{conv_transpose_sigmoid.1} parent=1 // pred_check
      _
    $region27: #{conv_transpose_sigmoid.1} parent=1 // pred_check_branch
      %3710 = sbr.rel (0) target = $region29
    $region28: #{conv_transpose_sigmoid.1} parent=1 // pred_region
      _
    $region29: #{conv_transpose_sigmoid.1} parent=1 // pred_fallthru
      _
    %3711 = vsyncpa [#allocation3], 1
    %3712 = vsyncpa [#allocation5], 1

</llo_original>
